<compile_context>
chip_gen: v5e
topology: v5e:2x2
jax: 0.10.0
libtpu: 0.0.40
codegen_flags: <defaults>
</compile_context>

<pallas_src>
import functools

import jax
import jax.numpy as jnp
from jax.experimental import pallas as pl
from jax.experimental.pallas import tpu as pltpu


# ----------------------------------------------------------------------------
# Fused Pallas kernel: ROIAlign (as matmul) + conv3x3 + conv3x3 + conv1x1
# ----------------------------------------------------------------------------
def _rec_head_kernel(wint_ref, feat_ref, w1_ref, b1_ref, w2t_ref, b2_ref,
                     wpt_ref, bp_ref, x_ref, logits_ref,
                     pad1_ref, pad2_ref, im1_ref, im2_ref):
    """One ROI block per grid step.

    wint_ref : (Rblk, Ph*Pw, N*H*W)  per-ROI bilinear interpolation matrix
    feat_ref : (N*H*W, Cin)          flattened feature maps (shared, VMEM-resident)
    w1_ref   : (9*Cin, hidden)       conv1 im2col weights     b1_ref: (1, hidden)
    w2t_ref  : (hidden, 9*hidden)    conv2 im2col weights^T   b2_ref: (hidden, 1)
    wpt_ref  : (ncls, hidden)        predictor weights^T      bp_ref: (ncls, 1)
    x_ref      : (Rblk, hidden, Ph*Pw)   NCHW (spatially flattened) -> lane dense
    logits_ref : (Rblk, ncls,   Ph*Pw)   NCHW (spatially flattened) -> lane dense
    pad1/pad2  : zero-padded activation scratch for im2col
    im1/im2    : im2col patch-matrix scratch
    """
    rblk, phpw, kroi = wint_ref.shape
    cin = feat_ref.shape[1]
    hidden = w1_ref.shape[1]
    ph = pad1_ref.shape[1] - 2
    pw = pad1_ref.shape[2] - 2
    m = rblk * ph * pw
    taps = [(dy, dx) for dy in range(3) for dx in range(3)]

    # Zero the padded scratch every step (tiny; keeps borders correct and is
    # safe regardless of how grid steps are split across TensorCores).
    pad1_ref[...] = jnp.zeros_like(pad1_ref)
    pad2_ref[...] = jnp.zeros_like(pad2_ref)

    # --- fused ROIAlign: separable bilinear sampling as ONE MXU matmul -------
    wint = wint_ref[...].reshape(m, kroi)                       # [M, N*H*W]
    pooled = jnp.dot(wint, feat_ref[...],
                     preferred_element_type=jnp.float32)        # [M, Cin]
    pad1_ref[:, 1:ph + 1, 1:pw + 1, :] = pooled.reshape(rblk, ph, pw, cin)

    # --- conv1: 3x3 'same' + bias + ReLU  (im2col, K = 9*Cin) ----------------
    for t, (dy, dx) in enumerate(taps):
        im1_ref[:, t * cin:(t + 1) * cin] = (
            pad1_ref[:, dy:dy + ph, dx:dx + pw, :].reshape(m, cin))
    h1 = jnp.dot(im1_ref[...], w1_ref[...],
                 preferred_element_type=jnp.float32)            # [M, hidden]
    h1 = jnp.maximum(h1 + b1_ref[...], 0.0)
    pad2_ref[:, 1:ph + 1, 1:pw + 1, :] = h1.reshape(rblk, ph, pw, hidden)

    # --- conv2: 3x3 'same' + bias + ReLU, channel-major output ---------------
    for t, (dy, dx) in enumerate(taps):
        im2_ref[:, t * hidden:(t + 1) * hidden] = (
            pad2_ref[:, dy:dy + ph, dx:dx + pw, :].reshape(m, hidden))
    # [hidden, 9*hidden] x [M, 9*hidden]^T  ->  [hidden, M]   (A @ B.T pattern)
    h2t = jax.lax.dot_general(
        w2t_ref[...], im2_ref[...],
        dimension_numbers=(((1,), (1,)), ((), ())),
        preferred_element_type=jnp.float32)
    h2t = jnp.maximum(h2t + b2_ref[...], 0.0)                   # [hidden, M]

    # --- predictor: 1x1 conv (pointwise matmul) + bias -----------------------
    logits_t = jnp.dot(wpt_ref[...], h2t,
                       preferred_element_type=jnp.float32) + bp_ref[...]  # [ncls, M]

    # --- lane-dense NCHW stores: (Cout, Ph*Pw) per ROI, 128 lanes minor -------
    for r in range(rblk):
        lo, hi = r * phpw, (r + 1) * phpw
        x_ref[r] = h2t[:, lo:hi].astype(x_ref.dtype)
        logits_ref[r] = logits_t[:, lo:hi].astype(logits_ref.dtype)


def rec_head_fused(wint, feats_flat, w1, b1, w2t, b2, wpt, bp,
                   *, rblk, pool_h, pool_w):
    """wint: [Rpad, Ph*Pw, N*H*W]; feats_flat: [N*H*W, Cin] -> (x, logits) in NCHW."""
    rpad, phpw, kroi = wint.shape
    cin = feats_flat.shape[1]
    hidden = w1.shape[1]
    ncls = wpt.shape[0]
    nblk = rpad // rblk
    m = rblk * phpw

    grid_spec = pltpu.PrefetchScalarGridSpec(
        num_scalar_prefetch=0,
        grid=(nblk,),
        in_specs=[
            pl.BlockSpec((rblk, phpw, kroi), lambda i: (i, 0, 0)),
            pl.BlockSpec((kroi, cin), lambda i: (0, 0)),
            pl.BlockSpec((9 * cin, hidden), lambda i: (0, 0)),
            pl.BlockSpec((1, hidden), lambda i: (0, 0)),
            pl.BlockSpec((hidden, 9 * hidden), lambda i: (0, 0)),
            pl.BlockSpec((hidden, 1), lambda i: (0, 0)),
            pl.BlockSpec((ncls, hidden), lambda i: (0, 0)),
            pl.BlockSpec((ncls, 1), lambda i: (0, 0)),
        ],
        out_specs=[
            pl.BlockSpec((rblk, hidden, phpw), lambda i: (i, 0, 0)),
            pl.BlockSpec((rblk, ncls, phpw), lambda i: (i, 0, 0)),
        ],
        scratch_shapes=[
            pltpu.VMEM((rblk, pool_h + 2, pool_w + 2, cin), jnp.float32),
            pltpu.VMEM((rblk, pool_h + 2, pool_w + 2, hidden), jnp.float32),
            pltpu.VMEM((m, 9 * cin), jnp.float32),
            pltpu.VMEM((m, 9 * hidden), jnp.float32),
        ],
    )
    return pl.pallas_call(
        _rec_head_kernel,
        out_shape=(jax.ShapeDtypeStruct((rpad, hidden, phpw), jnp.float32),
                   jax.ShapeDtypeStruct((rpad, ncls, phpw), jnp.float32)),
        grid_spec=grid_spec,
        compiler_params=pltpu.CompilerParams(
            dimension_semantics=("parallel",)),
    )(wint, feats_flat, w1, b1, w2t, b2, wpt, bp)


# ----------------------------------------------------------------------------
# Plain-JAX glue: box rescale + per-ROI bilinear interpolation matrices
# ----------------------------------------------------------------------------
def rescale_boxes(boxes, margin):
    """proposal.rescale(BOXES_MARGIN): scale each box about its center."""
    x1, y1, x2, y2 = boxes[:, 0], boxes[:, 1], boxes[:, 2], boxes[:, 3]
    cx, cy = (x1 + x2) * 0.5, (y1 + y2) * 0.5
    hw, hh = (x2 - x1) * 0.5 * margin, (y2 - y1) * 0.5 * margin
    return jnp.stack([cx - hw, cy - hh, cx + hw, cy + hh], axis=-1)


def build_interp_matrix(boxes, batch_idx, n, h, w, ph, pw):
    """Per-ROI separable bilinear sampling weights with batch selection folded in.

    Returns [R, Ph*Pw, N*H*W] such that
    pooled[r, p*Pw+q, c] = sum_k wint[r, p*Pw+q, k] * feats_flat[k, c]
    reproduces bilinear crop-and-resize with clamped corner indices.
    """
    r = boxes.shape[0]
    x1, y1, x2, y2 = boxes[:, 0], boxes[:, 1], boxes[:, 2], boxes[:, 3]
    ys = y1[:, None] + (jnp.arange(ph, dtype=jnp.float32)[None, :] + 0.5) / ph * (y2 - y1)[:, None]
    xs = x1[:, None] + (jnp.arange(pw, dtype=jnp.float32)[None, :] + 0.5) / pw * (x2 - x1)[:, None]
    y0f, x0f = jnp.floor(ys), jnp.floor(xs)
    fy, fx = ys - y0f, xs - x0f
    y0 = jnp.clip(y0f, 0, h - 1).astype(jnp.int32)
    y1i = jnp.clip(y0f + 1, 0, h - 1).astype(jnp.int32)
    x0 = jnp.clip(x0f, 0, w - 1).astype(jnp.int32)
    x1i = jnp.clip(x0f + 1, 0, w - 1).astype(jnp.int32)
    wy = ((1.0 - fy)[..., None] * jax.nn.one_hot(y0, h, dtype=jnp.float32)
          + fy[..., None] * jax.nn.one_hot(y1i, h, dtype=jnp.float32))       # [R, Ph, H]
    wx = ((1.0 - fx)[..., None] * jax.nn.one_hot(x0, w, dtype=jnp.float32)
          + fx[..., None] * jax.nn.one_hot(x1i, w, dtype=jnp.float32))       # [R, Pw, W]
    sel = jax.nn.one_hot(batch_idx, n, dtype=jnp.float32)                    # [R, N]
    # [R, Ph, Pw, H, W] then fold batch selection -> [R, Ph, Pw, N, H, W]
    w_spatial = wy[:, :, None, :, None] * wx[:, None, :, None, :]
    wfull = sel[:, None, None, :, None, None] * w_spatial[:, :, :, None, :, :]
    return wfull.reshape(r, ph * pw, n * h * w)


# ----------------------------------------------------------------------------
# ROIRecHead (inference) wrapper
# ----------------------------------------------------------------------------
class ROIRecHeadPallas:
    def __init__(self, in_channels=4, hidden=32, num_classes=37,
                 pool_h=8, pool_w=16, boxes_margin=1.4, rblk=2, key=None):
        self.pool_h, self.pool_w = pool_h, pool_w
        self.hidden, self.num_classes = hidden, num_classes
        self.boxes_margin = boxes_margin
        self.rblk = rblk
        key = jax.random.PRNGKey(0) if key is None else key
        k1, k2, k3, k4, k5, k6 = jax.random.split(key, 6)
        s1 = 1.0 / (in_channels * 9) ** 0.5
        s2 = 1.0 / (hidden * 9) ** 0.5
        s3 = 1.0 / hidden ** 0.5
        # feature extractor: two 3x3 conv + ReLU; weights stored pre-reshaped
        # for the fused kernel (im2col layout, conv2/predictor transposed).
        w1_hwio = jax.random.normal(k1, (3, 3, in_channels, hidden), jnp.float32) * s1
        w2_hwio = jax.random.normal(k3, (3, 3, hidden, hidden), jnp.float32) * s2
        wp_io = jax.random.normal(k5, (hidden, num_classes), jnp.float32) * s3
        self.w1 = w1_hwio.reshape(9 * in_channels, hidden)              # [9*Cin, hidden]
        self.b1 = (jax.random.normal(k2, (hidden,), jnp.float32) * s1).reshape(1, hidden)
        self.w2t = w2_hwio.reshape(9 * hidden, hidden).T                # [hidden, 9*hidden]
        self.b2 = (jax.random.normal(k4, (hidden,), jnp.float32) * s2).reshape(hidden, 1)
        self.wpt = wp_io.T                                              # [ncls, hidden]
        self.bp = (jax.random.normal(k6, (num_classes,), jnp.float32) * s3
                   ).reshape(num_classes, 1)

    @functools.partial(jax.jit, static_argnums=0)
    def forward(self, features_nchw, boxes, box_batch_idx):
        """features_nchw: [N,C,H,W]; boxes: [R,4] (x1,y1,x2,y2) in feature coords;
        box_batch_idx: [R] int32.  Returns (x [R,hidden,Ph,Pw],
        rec_logits [R,ncls,Ph,Pw], {}) in PyTorch NCHW layout."""
        n, c, h, w = features_nchw.shape
        r = boxes.shape[0]
        # eval path: rescale proposals by BOXES_MARGIN
        boxes = rescale_boxes(boxes, self.boxes_margin)
        feats_flat = jnp.transpose(features_nchw, (0, 2, 3, 1)).reshape(n * h * w, c)
        wint = build_interp_matrix(boxes, box_batch_idx, n, h, w,
                                   self.pool_h, self.pool_w)
        rblk = max(1, min(self.rblk, r))
        rpad = ((r + rblk - 1) // rblk) * rblk
        if rpad != r:
            wint = jnp.pad(wint, ((0, rpad - r), (0, 0), (0, 0)))
        x_flat, logits_flat = rec_head_fused(
            wint, feats_flat, self.w1, self.b1, self.w2t, self.b2,
            self.wpt, self.bp, rblk=rblk, pool_h=self.pool_h, pool_w=self.pool_w)
        # outputs are already NCHW with flattened spatial dim -> free reshapes
        x = x_flat[:r].reshape(r, self.hidden, self.pool_h, self.pool_w)
        logits = logits_flat[:r].reshape(r, self.num_classes, self.pool_h, self.pool_w)
        return x, logits, {}


# ----------------------------------------------------------------------------
# Pure-JAX reference (same math, HIGHEST precision) for a correctness check
# ----------------------------------------------------------------------------
def reference_forward(head, features_nchw, boxes, box_batch_idx):
    hp = jax.lax.Precision.HIGHEST
    n, c, h, w = features_nchw.shape
    r = boxes.shape[0]
    boxes = rescale_boxes(boxes, head.boxes_margin)
    feats_flat = jnp.transpose(features_nchw, (0, 2, 3, 1)).reshape(n * h * w, c)
    wint = build_interp_matrix(boxes, box_batch_idx, n, h, w, head.pool_h, head.pool_w)
    pooled = jnp.einsum('rmk,kc->rmc', wint, feats_flat, precision=hp)
    pooled = pooled.reshape(r, head.pool_h, head.pool_w, c)

    def conv3x3_relu(x, w_flat, b_row):
        rr, ph, pw, ci = x.shape
        xp = jnp.pad(x, ((0, 0), (1, 1), (1, 1), (0, 0)))
        taps = [xp[:, dy:dy + ph, dx:dx + pw, :]
                for dy in range(3) for dx in range(3)]
        patches = jnp.concatenate(taps, axis=-1).reshape(rr * ph * pw, 9 * ci)
        y = jnp.dot(patches, w_flat, precision=hp) + b_row
        return jnp.maximum(y, 0.0).reshape(rr, ph, pw, -1)

    h1 = conv3x3_relu(pooled, head.w1, head.b1)
    h2 = conv3x3_relu(h1, head.w2t.T, head.b2.reshape(1, -1))
    logits = (jnp.dot(h2.reshape(-1, head.hidden), head.wpt.T, precision=hp)
              + head.bp.reshape(1, -1))
    logits = logits.reshape(r, head.pool_h, head.pool_w, head.num_classes)
    return jnp.transpose(h2, (0, 3, 1, 2)), jnp.transpose(logits, (0, 3, 1, 2))


if __name__ == "__main__":
    key = jax.random.PRNGKey(0)
    k_feat, k_box = jax.random.split(key)

    N, C, H, W = 2, 4, 16, 16
    features = jax.random.normal(k_feat, (N, C, H, W), jnp.float32)

    # 2 proposals per image, (x1, y1, x2, y2) in feature-map coords
    centers = jax.random.uniform(k_box, (4, 2), minval=4.0, maxval=12.0)
    half = jnp.array([[3.0, 2.0], [4.0, 3.0], [2.5, 2.0], [3.5, 2.5]])
    boxes = jnp.concatenate([centers - half, centers + half], axis=-1)
    box_batch_idx = jnp.array([0, 0, 1, 1], dtype=jnp.int32)

    head = ROIRecHeadPallas(in_channels=C, hidden=32, num_classes=37,
                            pool_h=8, pool_w=16, rblk=2)
    x, rec_logits, losses = head.forward(features, boxes, box_batch_idx)
    jax.block_until_ready((x, rec_logits))

    assert x.shape == (4, 32, 8, 16)
    assert rec_logits.shape == (4, 37, 8, 16)
    assert losses == {}

    # numerical check against the pure-JAX reference
    x_ref, logits_ref = reference_forward(head, features, boxes, box_batch_idx)
    assert float(jnp.max(jnp.abs(x - x_ref))) < 2e-3
    assert float(jnp.max(jnp.abs(rec_logits - logits_ref))) < 2e-3

    print("KERNEL_OK")
</pallas_src>

<mosaic_0001>
module attributes {stable_mosaic.version = 11 : i64} {
  func.func @_rec_head_kernel(%arg0: i32, %arg1: memref<2x128x512xf32, #tpu.memory_space<vmem>>, %arg2: memref<512x4xf32, #tpu.memory_space<vmem>>, %arg3: memref<36x32xf32, #tpu.memory_space<vmem>>, %arg4: memref<1x32xf32, #tpu.memory_space<vmem>>, %arg5: memref<32x288xf32, #tpu.memory_space<vmem>>, %arg6: memref<32x1xf32, #tpu.memory_space<vmem>>, %arg7: memref<37x32xf32, #tpu.memory_space<vmem>>, %arg8: memref<37x1xf32, #tpu.memory_space<vmem>>, %arg9: memref<2x32x128xf32, #tpu.memory_space<vmem>>, %arg10: memref<2x37x128xf32, #tpu.memory_space<vmem>>, %arg11: memref<2x10x18x4xf32, #tpu.memory_space<vmem>>, %arg12: memref<2x10x18x32xf32, #tpu.memory_space<vmem>>, %arg13: memref<256x36xf32, #tpu.memory_space<vmem>>, %arg14: memref<256x288xf32, #tpu.memory_space<vmem>>) attributes {dimension_semantics = [#tpu.dimension_semantics<parallel>], iteration_bounds = array<i64: 2>, scalar_prefetch = 0 : i64, scratch_operands = 4 : i64, tpu.core_type = #tpu.core_type<tc>, window_params = [{transform_indices = @transform_0, window_bounds = array<i64: 2, 128, 512>}, {pipeline_mode = #tpu.pipeline_mode<synchronous>, transform_indices = @transform_1, window_bounds = array<i64: 512, 4>}, {pipeline_mode = #tpu.pipeline_mode<synchronous>, transform_indices = @transform_2, window_bounds = array<i64: 36, 32>}, {pipeline_mode = #tpu.pipeline_mode<synchronous>, transform_indices = @transform_3, window_bounds = array<i64: 1, 32>}, {pipeline_mode = #tpu.pipeline_mode<synchronous>, transform_indices = @transform_4, window_bounds = array<i64: 32, 288>}, {pipeline_mode = #tpu.pipeline_mode<synchronous>, transform_indices = @transform_5, window_bounds = array<i64: 32, 1>}, {pipeline_mode = #tpu.pipeline_mode<synchronous>, transform_indices = @transform_6, window_bounds = array<i64: 37, 32>}, {pipeline_mode = #tpu.pipeline_mode<synchronous>, transform_indices = @transform_7, window_bounds = array<i64: 37, 1>}, {transform_indices = @transform_8, window_bounds = array<i64: 2, 32, 128>}, {transform_indices = @transform_9, window_bounds = array<i64: 2, 37, 128>}]} {
    %cst = arith.constant 0.000000e+00 : f32
    %0 = vector.broadcast %cst : f32 to vector<2x10x18x4xf32>
    %c0 = arith.constant 0 : index
    %c0_0 = arith.constant 0 : index
    %c0_1 = arith.constant 0 : index
    %c0_2 = arith.constant 0 : index
    %1 = vector.load %arg11[%c0, %c0_0, %c0_1, %c0_2] : memref<2x10x18x4xf32, #tpu.memory_space<vmem>>, vector<2x10x18x4xf32>
    tpu.vector_store %arg11[%c0, %c0_0, %c0_1, %c0_2], %0 {strides = array<i32>} : memref<2x10x18x4xf32, #tpu.memory_space<vmem>>, vector<2x10x18x4xf32>,
    %cst_3 = arith.constant 0.000000e+00 : f32
    %2 = vector.broadcast %cst_3 : f32 to vector<2x10x18x32xf32>
    %c0_4 = arith.constant 0 : index
    %c0_5 = arith.constant 0 : index
    %c0_6 = arith.constant 0 : index
    %c0_7 = arith.constant 0 : index
    %3 = vector.load %arg12[%c0_4, %c0_5, %c0_6, %c0_7] : memref<2x10x18x32xf32, #tpu.memory_space<vmem>>, vector<2x10x18x32xf32>
    tpu.vector_store %arg12[%c0_4, %c0_5, %c0_6, %c0_7], %2 {strides = array<i32>} : memref<2x10x18x32xf32, #tpu.memory_space<vmem>>, vector<2x10x18x32xf32>,
    %c0_8 = arith.constant 0 : index
    %c0_9 = arith.constant 0 : index
    %c0_10 = arith.constant 0 : index
    %4 = vector.load %arg1[%c0_8, %c0_9, %c0_10] : memref<2x128x512xf32, #tpu.memory_space<vmem>>, vector<2x128x512xf32>
    %5 = vector.shape_cast %4 : vector<2x128x512xf32> to vector<256x512xf32>
    %c0_11 = arith.constant 0 : index
    %c0_12 = arith.constant 0 : index
    %6 = vector.load %arg2[%c0_11, %c0_12] : memref<512x4xf32, #tpu.memory_space<vmem>>, vector<512x4xf32>
    %cst_13 = arith.constant dense<0.000000e+00> : vector<256x4xf32>
    %7 = tpu.matmul %5, %6, %cst_13 {dimension_numbers = #tpu.dot_dimension_numbers<[1], [0], [0], [1], [0, 0, 1, 1], [], []>} : vector<256x512xf32>, vector<512x4xf32>, vector<256x4xf32> -> vector<256x4xf32>
    %8 = vector.shape_cast %7 : vector<256x4xf32> to vector<2x8x16x4xf32>
    %c0_14 = arith.constant 0 : index
    %c1 = arith.constant 1 : index
    %c1_15 = arith.constant 1 : index
    %c0_16 = arith.constant 0 : index
    %9 = vector.load %arg11[%c0_14, %c1, %c1_15, %c0_16] : memref<2x10x18x4xf32, #tpu.memory_space<vmem>>, vector<2x8x16x4xf32>
    tpu.vector_store %arg11[%c0_14, %c1, %c1_15, %c0_16], %8 {strides = array<i32>} : memref<2x10x18x4xf32, #tpu.memory_space<vmem>>, vector<2x8x16x4xf32>,
    %c0_17 = arith.constant 0 : index
    %c0_18 = arith.constant 0 : index
    %c0_19 = arith.constant 0 : index
    %c0_20 = arith.constant 0 : index
    %10 = vector.load %arg11[%c0_17, %c0_18, %c0_19, %c0_20] : memref<2x10x18x4xf32, #tpu.memory_space<vmem>>, vector<2x8x16x4xf32>
    %11 = vector.shape_cast %10 : vector<2x8x16x4xf32> to vector<256x4xf32>
    %c0_21 = arith.constant 0 : index
    %c0_22 = arith.constant 0 : index
    %12 = vector.load %arg13[%c0_21, %c0_22] : memref<256x36xf32, #tpu.memory_space<vmem>>, vector<256x4xf32>
    tpu.vector_store %arg13[%c0_21, %c0_22], %11 {strides = array<i32>} : memref<256x36xf32, #tpu.memory_space<vmem>>, vector<256x4xf32>,
    %c0_23 = arith.constant 0 : index
    %c0_24 = arith.constant 0 : index
    %c1_25 = arith.constant 1 : index
    %c0_26 = arith.constant 0 : index
    %13 = vector.load %arg11[%c0_23, %c0_24, %c1_25, %c0_26] : memref<2x10x18x4xf32, #tpu.memory_space<vmem>>, vector<2x8x16x4xf32>
    %14 = vector.shape_cast %13 : vector<2x8x16x4xf32> to vector<256x4xf32>
    %c0_27 = arith.constant 0 : index
    %c4 = arith.constant 4 : index
    %15 = vector.load %arg13[%c0_27, %c4] : memref<256x36xf32, #tpu.memory_space<vmem>>, vector<256x4xf32>
    tpu.vector_store %arg13[%c0_27, %c4], %14 {strides = array<i32>} : memref<256x36xf32, #tpu.memory_space<vmem>>, vector<256x4xf32>,
    %c0_28 = arith.constant 0 : index
    %c0_29 = arith.constant 0 : index
    %c2 = arith.constant 2 : index
    %c0_30 = arith.constant 0 : index
    %16 = vector.load %arg11[%c0_28, %c0_29, %c2, %c0_30] : memref<2x10x18x4xf32, #tpu.memory_space<vmem>>, vector<2x8x16x4xf32>
    %17 = vector.shape_cast %16 : vector<2x8x16x4xf32> to vector<256x4xf32>
    %c0_31 = arith.constant 0 : index
    %c8 = arith.constant 8 : index
    %18 = vector.load %arg13[%c0_31, %c8] : memref<256x36xf32, #tpu.memory_space<vmem>>, vector<256x4xf32>
    tpu.vector_store %arg13[%c0_31, %c8], %17 {strides = array<i32>} : memref<256x36xf32, #tpu.memory_space<vmem>>, vector<256x4xf32>,
    %c0_32 = arith.constant 0 : index
    %c1_33 = arith.constant 1 : index
    %c0_34 = arith.constant 0 : index
    %c0_35 = arith.constant 0 : index
    %19 = vector.load %arg11[%c0_32, %c1_33, %c0_34, %c0_35] : memref<2x10x18x4xf32, #tpu.memory_space<vmem>>, vector<2x8x16x4xf32>
    %20 = vector.shape_cast %19 : vector<2x8x16x4xf32> to vector<256x4xf32>
    %c0_36 = arith.constant 0 : index
    %c12 = arith.constant 12 : index
    %21 = vector.load %arg13[%c0_36, %c12] : memref<256x36xf32, #tpu.memory_space<vmem>>, vector<256x4xf32>
    tpu.vector_store %arg13[%c0_36, %c12], %20 {strides = array<i32>} : memref<256x36xf32, #tpu.memory_space<vmem>>, vector<256x4xf32>,
    %c0_37 = arith.constant 0 : index
    %c1_38 = arith.constant 1 : index
    %c1_39 = arith.constant 1 : index
    %c0_40 = arith.constant 0 : index
    %22 = vector.load %arg11[%c0_37, %c1_38, %c1_39, %c0_40] : memref<2x10x18x4xf32, #tpu.memory_space<vmem>>, vector<2x8x16x4xf32>
    %23 = vector.shape_cast %22 : vector<2x8x16x4xf32> to vector<256x4xf32>
    %c0_41 = arith.constant 0 : index
    %c16 = arith.constant 16 : index
    %24 = vector.load %arg13[%c0_41, %c16] : memref<256x36xf32, #tpu.memory_space<vmem>>, vector<256x4xf32>
    tpu.vector_store %arg13[%c0_41, %c16], %23 {strides = array<i32>} : memref<256x36xf32, #tpu.memory_space<vmem>>, vector<256x4xf32>,
    %c0_42 = arith.constant 0 : index
    %c1_43 = arith.constant 1 : index
    %c2_44 = arith.constant 2 : index
    %c0_45 = arith.constant 0 : index
    %25 = vector.load %arg11[%c0_42, %c1_43, %c2_44, %c0_45] : memref<2x10x18x4xf32, #tpu.memory_space<vmem>>, vector<2x8x16x4xf32>
    %26 = vector.shape_cast %25 : vector<2x8x16x4xf32> to vector<256x4xf32>
    %c0_46 = arith.constant 0 : index
    %c20 = arith.constant 20 : index
    %27 = vector.load %arg13[%c0_46, %c20] : memref<256x36xf32, #tpu.memory_space<vmem>>, vector<256x4xf32>
    tpu.vector_store %arg13[%c0_46, %c20], %26 {strides = array<i32>} : memref<256x36xf32, #tpu.memory_space<vmem>>, vector<256x4xf32>,
    %c0_47 = arith.constant 0 : index
    %c2_48 = arith.constant 2 : index
    %c0_49 = arith.constant 0 : index
    %c0_50 = arith.constant 0 : index
    %28 = vector.load %arg11[%c0_47, %c2_48, %c0_49, %c0_50] : memref<2x10x18x4xf32, #tpu.memory_space<vmem>>, vector<2x8x16x4xf32>
    %29 = vector.shape_cast %28 : vector<2x8x16x4xf32> to vector<256x4xf32>
    %c0_51 = arith.constant 0 : index
    %c24 = arith.constant 24 : index
    %30 = vector.load %arg13[%c0_51, %c24] : memref<256x36xf32, #tpu.memory_space<vmem>>, vector<256x4xf32>
    tpu.vector_store %arg13[%c0_51, %c24], %29 {strides = array<i32>} : memref<256x36xf32, #tpu.memory_space<vmem>>, vector<256x4xf32>,
    %c0_52 = arith.constant 0 : index
    %c2_53 = arith.constant 2 : index
    %c1_54 = arith.constant 1 : index
    %c0_55 = arith.constant 0 : index
    %31 = vector.load %arg11[%c0_52, %c2_53, %c1_54, %c0_55] : memref<2x10x18x4xf32, #tpu.memory_space<vmem>>, vector<2x8x16x4xf32>
    %32 = vector.shape_cast %31 : vector<2x8x16x4xf32> to vector<256x4xf32>
    %c0_56 = arith.constant 0 : index
    %c28 = arith.constant 28 : index
    %33 = vector.load %arg13[%c0_56, %c28] : memref<256x36xf32, #tpu.memory_space<vmem>>, vector<256x4xf32>
    tpu.vector_store %arg13[%c0_56, %c28], %32 {strides = array<i32>} : memref<256x36xf32, #tpu.memory_space<vmem>>, vector<256x4xf32>,
    %c0_57 = arith.constant 0 : index
    %c2_58 = arith.constant 2 : index
    %c2_59 = arith.constant 2 : index
    %c0_60 = arith.constant 0 : index
    %34 = vector.load %arg11[%c0_57, %c2_58, %c2_59, %c0_60] : memref<2x10x18x4xf32, #tpu.memory_space<vmem>>, vector<2x8x16x4xf32>
    %35 = vector.shape_cast %34 : vector<2x8x16x4xf32> to vector<256x4xf32>
    %c0_61 = arith.constant 0 : index
    %c32 = arith.constant 32 : index
    %36 = vector.load %arg13[%c0_61, %c32] : memref<256x36xf32, #tpu.memory_space<vmem>>, vector<256x4xf32>
    tpu.vector_store %arg13[%c0_61, %c32], %35 {strides = array<i32>} : memref<256x36xf32, #tpu.memory_space<vmem>>, vector<256x4xf32>,
    %c0_62 = arith.constant 0 : index
    %c0_63 = arith.constant 0 : index
    %37 = vector.load %arg13[%c0_62, %c0_63] : memref<256x36xf32, #tpu.memory_space<vmem>>, vector<256x36xf32>
    %c0_64 = arith.constant 0 : index
    %c0_65 = arith.constant 0 : index
    %38 = vector.load %arg3[%c0_64, %c0_65] : memref<36x32xf32, #tpu.memory_space<vmem>>, vector<36x32xf32>
    %cst_66 = arith.constant dense<0.000000e+00> : vector<256x32xf32>
    %39 = tpu.matmul %37, %38, %cst_66 {dimension_numbers = #tpu.dot_dimension_numbers<[1], [0], [0], [1], [0, 0, 1, 1], [], []>} : vector<256x36xf32>, vector<36x32xf32>, vector<256x32xf32> -> vector<256x32xf32>
    %c0_67 = arith.constant 0 : index
    %c0_68 = arith.constant 0 : index
    %40 = vector.load %arg4[%c0_67, %c0_68] : memref<1x32xf32, #tpu.memory_space<vmem>>, vector<1x32xf32>
    %41 = vector.broadcast %40 : vector<1x32xf32> to vector<256x32xf32>
    %42 = arith.addf %39, %41 : vector<256x32xf32>
    %cst_69 = arith.constant 0.000000e+00 : f32
    %43 = vector.broadcast %cst_69 : f32 to vector<256x32xf32>
    %44 = arith.maximumf %42, %43 : vector<256x32xf32>
    %45 = vector.shape_cast %44 : vector<256x32xf32> to vector<2x8x16x32xf32>
    %c0_70 = arith.constant 0 : index
    %c1_71 = arith.constant 1 : index
    %c1_72 = arith.constant 1 : index
    %c0_73 = arith.constant 0 : index
    %46 = vector.load %arg12[%c0_70, %c1_71, %c1_72, %c0_73] : memref<2x10x18x32xf32, #tpu.memory_space<vmem>>, vector<2x8x16x32xf32>
    tpu.vector_store %arg12[%c0_70, %c1_71, %c1_72, %c0_73], %45 {strides = array<i32>} : memref<2x10x18x32xf32, #tpu.memory_space<vmem>>, vector<2x8x16x32xf32>,
    %c0_74 = arith.constant 0 : index
    %c0_75 = arith.constant 0 : index
    %c0_76 = arith.constant 0 : index
    %c0_77 = arith.constant 0 : index
    %47 = vector.load %arg12[%c0_74, %c0_75, %c0_76, %c0_77] : memref<2x10x18x32xf32, #tpu.memory_space<vmem>>, vector<2x8x16x32xf32>
    %48 = vector.shape_cast %47 : vector<2x8x16x32xf32> to vector<256x32xf32>
    %c0_78 = arith.constant 0 : index
    %c0_79 = arith.constant 0 : index
    %49 = vector.load %arg14[%c0_78, %c0_79] : memref<256x288xf32, #tpu.memory_space<vmem>>, vector<256x32xf32>
    tpu.vector_store %arg14[%c0_78, %c0_79], %48 {strides = array<i32>} : memref<256x288xf32, #tpu.memory_space<vmem>>, vector<256x32xf32>,
    %c0_80 = arith.constant 0 : index
    %c0_81 = arith.constant 0 : index
    %c1_82 = arith.constant 1 : index
    %c0_83 = arith.constant 0 : index
    %50 = vector.load %arg12[%c0_80, %c0_81, %c1_82, %c0_83] : memref<2x10x18x32xf32, #tpu.memory_space<vmem>>, vector<2x8x16x32xf32>
    %51 = vector.shape_cast %50 : vector<2x8x16x32xf32> to vector<256x32xf32>
    %c0_84 = arith.constant 0 : index
    %c32_85 = arith.constant 32 : index
    %52 = vector.load %arg14[%c0_84, %c32_85] : memref<256x288xf32, #tpu.memory_space<vmem>>, vector<256x32xf32>
    tpu.vector_store %arg14[%c0_84, %c32_85], %51 {strides = array<i32>} : memref<256x288xf32, #tpu.memory_space<vmem>>, vector<256x32xf32>,
    %c0_86 = arith.constant 0 : index
    %c0_87 = arith.constant 0 : index
    %c2_88 = arith.constant 2 : index
    %c0_89 = arith.constant 0 : index
    %53 = vector.load %arg12[%c0_86, %c0_87, %c2_88, %c0_89] : memref<2x10x18x32xf32, #tpu.memory_space<vmem>>, vector<2x8x16x32xf32>
    %54 = vector.shape_cast %53 : vector<2x8x16x32xf32> to vector<256x32xf32>
    %c0_90 = arith.constant 0 : index
    %c64 = arith.constant 64 : index
    %55 = vector.load %arg14[%c0_90, %c64] : memref<256x288xf32, #tpu.memory_space<vmem>>, vector<256x32xf32>
    tpu.vector_store %arg14[%c0_90, %c64], %54 {strides = array<i32>} : memref<256x288xf32, #tpu.memory_space<vmem>>, vector<256x32xf32>,
    %c0_91 = arith.constant 0 : index
    %c1_92 = arith.constant 1 : index
    %c0_93 = arith.constant 0 : index
    %c0_94 = arith.constant 0 : index
    %56 = vector.load %arg12[%c0_91, %c1_92, %c0_93, %c0_94] : memref<2x10x18x32xf32, #tpu.memory_space<vmem>>, vector<2x8x16x32xf32>
    %57 = vector.shape_cast %56 : vector<2x8x16x32xf32> to vector<256x32xf32>
    %c0_95 = arith.constant 0 : index
    %c96 = arith.constant 96 : index
    %58 = vector.load %arg14[%c0_95, %c96] : memref<256x288xf32, #tpu.memory_space<vmem>>, vector<256x32xf32>
    tpu.vector_store %arg14[%c0_95, %c96], %57 {strides = array<i32>} : memref<256x288xf32, #tpu.memory_space<vmem>>, vector<256x32xf32>,
    %c0_96 = arith.constant 0 : index
    %c1_97 = arith.constant 1 : index
    %c1_98 = arith.constant 1 : index
    %c0_99 = arith.constant 0 : index
    %59 = vector.load %arg12[%c0_96, %c1_97, %c1_98, %c0_99] : memref<2x10x18x32xf32, #tpu.memory_space<vmem>>, vector<2x8x16x32xf32>
    %60 = vector.shape_cast %59 : vector<2x8x16x32xf32> to vector<256x32xf32>
    %c0_100 = arith.constant 0 : index
    %c128 = arith.constant 128 : index
    %61 = vector.load %arg14[%c0_100, %c128] : memref<256x288xf32, #tpu.memory_space<vmem>>, vector<256x32xf32>
    tpu.vector_store %arg14[%c0_100, %c128], %60 {strides = array<i32>} : memref<256x288xf32, #tpu.memory_space<vmem>>, vector<256x32xf32>,
    %c0_101 = arith.constant 0 : index
    %c1_102 = arith.constant 1 : index
    %c2_103 = arith.constant 2 : index
    %c0_104 = arith.constant 0 : index
    %62 = vector.load %arg12[%c0_101, %c1_102, %c2_103, %c0_104] : memref<2x10x18x32xf32, #tpu.memory_space<vmem>>, vector<2x8x16x32xf32>
    %63 = vector.shape_cast %62 : vector<2x8x16x32xf32> to vector<256x32xf32>
    %c0_105 = arith.constant 0 : index
    %c160 = arith.constant 160 : index
    %64 = vector.load %arg14[%c0_105, %c160] : memref<256x288xf32, #tpu.memory_space<vmem>>, vector<256x32xf32>
    tpu.vector_store %arg14[%c0_105, %c160], %63 {strides = array<i32>} : memref<256x288xf32, #tpu.memory_space<vmem>>, vector<256x32xf32>,
    %c0_106 = arith.constant 0 : index
    %c2_107 = arith.constant 2 : index
    %c0_108 = arith.constant 0 : index
    %c0_109 = arith.constant 0 : index
    %65 = vector.load %arg12[%c0_106, %c2_107, %c0_108, %c0_109] : memref<2x10x18x32xf32, #tpu.memory_space<vmem>>, vector<2x8x16x32xf32>
    %66 = vector.shape_cast %65 : vector<2x8x16x32xf32> to vector<256x32xf32>
    %c0_110 = arith.constant 0 : index
    %c192 = arith.constant 192 : index
    %67 = vector.load %arg14[%c0_110, %c192] : memref<256x288xf32, #tpu.memory_space<vmem>>, vector<256x32xf32>
    tpu.vector_store %arg14[%c0_110, %c192], %66 {strides = array<i32>} : memref<256x288xf32, #tpu.memory_space<vmem>>, vector<256x32xf32>,
    %c0_111 = arith.constant 0 : index
    %c2_112 = arith.constant 2 : index
    %c1_113 = arith.constant 1 : index
    %c0_114 = arith.constant 0 : index
    %68 = vector.load %arg12[%c0_111, %c2_112, %c1_113, %c0_114] : memref<2x10x18x32xf32, #tpu.memory_space<vmem>>, vector<2x8x16x32xf32>
    %69 = vector.shape_cast %68 : vector<2x8x16x32xf32> to vector<256x32xf32>
    %c0_115 = arith.constant 0 : index
    %c224 = arith.constant 224 : index
    %70 = vector.load %arg14[%c0_115, %c224] : memref<256x288xf32, #tpu.memory_space<vmem>>, vector<256x32xf32>
    tpu.vector_store %arg14[%c0_115, %c224], %69 {strides = array<i32>} : memref<256x288xf32, #tpu.memory_space<vmem>>, vector<256x32xf32>,
    %c0_116 = arith.constant 0 : index
    %c2_117 = arith.constant 2 : index
    %c2_118 = arith.constant 2 : index
    %c0_119 = arith.constant 0 : index
    %71 = vector.load %arg12[%c0_116, %c2_117, %c2_118, %c0_119] : memref<2x10x18x32xf32, #tpu.memory_space<vmem>>, vector<2x8x16x32xf32>
    %72 = vector.shape_cast %71 : vector<2x8x16x32xf32> to vector<256x32xf32>
    %c0_120 = arith.constant 0 : index
    %c256 = arith.constant 256 : index
    %73 = vector.load %arg14[%c0_120, %c256] : memref<256x288xf32, #tpu.memory_space<vmem>>, vector<256x32xf32>
    tpu.vector_store %arg14[%c0_120, %c256], %72 {strides = array<i32>} : memref<256x288xf32, #tpu.memory_space<vmem>>, vector<256x32xf32>,
    %c0_121 = arith.constant 0 : index
    %c0_122 = arith.constant 0 : index
    %74 = vector.load %arg5[%c0_121, %c0_122] : memref<32x288xf32, #tpu.memory_space<vmem>>, vector<32x288xf32>
    %c0_123 = arith.constant 0 : index
    %c0_124 = arith.constant 0 : index
    %75 = vector.load %arg14[%c0_123, %c0_124] : memref<256x288xf32, #tpu.memory_space<vmem>>, vector<256x288xf32>
    %cst_125 = arith.constant dense<0.000000e+00> : vector<32x256xf32>
    %76 = tpu.matmul %74, %75, %cst_125 {dimension_numbers = #tpu.dot_dimension_numbers<[1], [1], [0], [0], [0, 0, 1, 0], [], []>} : vector<32x288xf32>, vector<256x288xf32>, vector<32x256xf32> -> vector<32x256xf32>
    %c0_126 = arith.constant 0 : index
    %c0_127 = arith.constant 0 : index
    %77 = vector.load %arg6[%c0_126, %c0_127] : memref<32x1xf32, #tpu.memory_space<vmem>>, vector<32x1xf32>
    %78 = vector.broadcast %77 : vector<32x1xf32> to vector<32x256xf32>
    %79 = arith.addf %76, %78 : vector<32x256xf32>
    %cst_128 = arith.constant 0.000000e+00 : f32
    %80 = vector.broadcast %cst_128 : f32 to vector<32x256xf32>
    %81 = arith.maximumf %79, %80 : vector<32x256xf32>
    %c0_129 = arith.constant 0 : index
    %c0_130 = arith.constant 0 : index
    %82 = vector.load %arg7[%c0_129, %c0_130] : memref<37x32xf32, #tpu.memory_space<vmem>>, vector<37x32xf32>
    %cst_131 = arith.constant dense<0.000000e+00> : vector<37x256xf32>
    %83 = tpu.matmul %82, %81, %cst_131 {dimension_numbers = #tpu.dot_dimension_numbers<[1], [0], [0], [1], [0, 0, 1, 1], [], []>} : vector<37x32xf32>, vector<32x256xf32>, vector<37x256xf32> -> vector<37x256xf32>
    %c0_132 = arith.constant 0 : index
    %c0_133 = arith.constant 0 : index
    %84 = vector.load %arg8[%c0_132, %c0_133] : memref<37x1xf32, #tpu.memory_space<vmem>>, vector<37x1xf32>
    %85 = vector.broadcast %84 : vector<37x1xf32> to vector<37x256xf32>
    %86 = arith.addf %83, %85 : vector<37x256xf32>
    %87 = vector.extract_strided_slice %81 {offsets = [0, 0], sizes = [32, 128], strides = [1, 1]} : vector<32x256xf32> to vector<32x128xf32>
    %c0_134 = arith.constant 0 : index
    %c0_135 = arith.constant 0 : index
    %c0_136 = arith.constant 0 : index
    %88 = vector.load %arg9[%c0_134, %c0_135, %c0_136] : memref<2x32x128xf32, #tpu.memory_space<vmem>>, vector<1x32x128xf32>
    %89 = vector.shape_cast %88 : vector<1x32x128xf32> to vector<32x128xf32>
    %90 = vector.shape_cast %87 : vector<32x128xf32> to vector<1x32x128xf32>
    tpu.vector_store %arg9[%c0_134, %c0_135, %c0_136], %90 {strides = array<i32>} : memref<2x32x128xf32, #tpu.memory_space<vmem>>, vector<1x32x128xf32>,
    %91 = vector.extract_strided_slice %86 {offsets = [0, 0], sizes = [37, 128], strides = [1, 1]} : vector<37x256xf32> to vector<37x128xf32>
    %c0_137 = arith.constant 0 : index
    %c0_138 = arith.constant 0 : index
    %c0_139 = arith.constant 0 : index
    %92 = vector.load %arg10[%c0_137, %c0_138, %c0_139] : memref<2x37x128xf32, #tpu.memory_space<vmem>>, vector<1x37x128xf32>
    %93 = vector.shape_cast %92 : vector<1x37x128xf32> to vector<37x128xf32>
    %94 = vector.shape_cast %91 : vector<37x128xf32> to vector<1x37x128xf32>
    tpu.vector_store %arg10[%c0_137, %c0_138, %c0_139], %94 {strides = array<i32>} : memref<2x37x128xf32, #tpu.memory_space<vmem>>, vector<1x37x128xf32>,
    %95 = vector.extract_strided_slice %81 {offsets = [0, 128], sizes = [32, 128], strides = [1, 1]} : vector<32x256xf32> to vector<32x128xf32>
    %c1_140 = arith.constant 1 : index
    %c0_141 = arith.constant 0 : index
    %c0_142 = arith.constant 0 : index
    %96 = vector.load %arg9[%c1_140, %c0_141, %c0_142] : memref<2x32x128xf32, #tpu.memory_space<vmem>>, vector<1x32x128xf32>
    %97 = vector.shape_cast %96 : vector<1x32x128xf32> to vector<32x128xf32>
    %98 = vector.shape_cast %95 : vector<32x128xf32> to vector<1x32x128xf32>
    tpu.vector_store %arg9[%c1_140, %c0_141, %c0_142], %98 {strides = array<i32>} : memref<2x32x128xf32, #tpu.memory_space<vmem>>, vector<1x32x128xf32>,
    %99 = vector.extract_strided_slice %86 {offsets = [0, 128], sizes = [37, 128], strides = [1, 1]} : vector<37x256xf32> to vector<37x128xf32>
    %c1_143 = arith.constant 1 : index
    %c0_144 = arith.constant 0 : index
    %c0_145 = arith.constant 0 : index
    %100 = vector.load %arg10[%c1_143, %c0_144, %c0_145] : memref<2x37x128xf32, #tpu.memory_space<vmem>>, vector<1x37x128xf32>
    %101 = vector.shape_cast %100 : vector<1x37x128xf32> to vector<37x128xf32>
    %102 = vector.shape_cast %99 : vector<37x128xf32> to vector<1x37x128xf32>
    tpu.vector_store %arg10[%c1_143, %c0_144, %c0_145], %102 {strides = array<i32>} : memref<2x37x128xf32, #tpu.memory_space<vmem>>, vector<1x37x128xf32>,
    return
  }
  func.func @transform_0(%arg0: i32) -> (i32, i32, i32) {
    %c0_i32 = arith.constant 0 : i32
    %c0_i32_0 = arith.constant 0 : i32
    %c0_i32_1 = arith.constant 0 : i32
    return %arg0, %c0_i32, %c0_i32_0 : i32, i32, i32
  }
  func.func @transform_1(%arg0: i32) -> (i32, i32) {
    %c0_i32 = arith.constant 0 : i32
    %c0_i32_0 = arith.constant 0 : i32
    %c0_i32_1 = arith.constant 0 : i32
    return %c0_i32, %c0_i32_0 : i32, i32
  }
  func.func @transform_2(%arg0: i32) -> (i32, i32) {
    %c0_i32 = arith.constant 0 : i32
    %c0_i32_0 = arith.constant 0 : i32
    %c0_i32_1 = arith.constant 0 : i32
    return %c0_i32, %c0_i32_0 : i32, i32
  }
  func.func @transform_3(%arg0: i32) -> (i32, i32) {
    %c0_i32 = arith.constant 0 : i32
    %c0_i32_0 = arith.constant 0 : i32
    %c0_i32_1 = arith.constant 0 : i32
    return %c0_i32, %c0_i32_0 : i32, i32
  }
  func.func @transform_4(%arg0: i32) -> (i32, i32) {
    %c0_i32 = arith.constant 0 : i32
    %c0_i32_0 = arith.constant 0 : i32
    %c0_i32_1 = arith.constant 0 : i32
    return %c0_i32, %c0_i32_0 : i32, i32
  }
  func.func @transform_5(%arg0: i32) -> (i32, i32) {
    %c0_i32 = arith.constant 0 : i32
    %c0_i32_0 = arith.constant 0 : i32
    %c0_i32_1 = arith.constant 0 : i32
    return %c0_i32, %c0_i32_0 : i32, i32
  }
  func.func @transform_6(%arg0: i32) -> (i32, i32) {
    %c0_i32 = arith.constant 0 : i32
    %c0_i32_0 = arith.constant 0 : i32
    %c0_i32_1 = arith.constant 0 : i32
    return %c0_i32, %c0_i32_0 : i32, i32
  }
  func.func @transform_7(%arg0: i32) -> (i32, i32) {
    %c0_i32 = arith.constant 0 : i32
    %c0_i32_0 = arith.constant 0 : i32
    %c0_i32_1 = arith.constant 0 : i32
    return %c0_i32, %c0_i32_0 : i32, i32
  }
  func.func @transform_8(%arg0: i32) -> (i32, i32, i32) {
    %c0_i32 = arith.constant 0 : i32
    %c0_i32_0 = arith.constant 0 : i32
    %c0_i32_1 = arith.constant 0 : i32
    return %arg0, %c0_i32, %c0_i32_0 : i32, i32, i32
  }
  func.func @transform_9(%arg0: i32) -> (i32, i32, i32) {
    %c0_i32 = arith.constant 0 : i32
    %c0_i32_0 = arith.constant 0 : i32
    %c0_i32_1 = arith.constant 0 : i32
    return %arg0, %c0_i32, %c0_i32_0 : i32, i32, i32
  }
}

</mosaic_0001>

<llo_original>
// kernel: forward.1
$region0: #{forward.1}
  #allocation0 [shape = 'u32[]', space=smem, size = 0x4, offset = 0x4, fixed_abs, tag = 'smem constant byte address 0x4 - core index']
  #allocation1 [shape = 'u32[72,128]{1,0:T(1,128)}', space=vmem, size = 0x9000, scoped, tag = 'internal scratch']
  #allocation2 [shape = 'f32[2,10,18,4]{3,2,1,0:T(8,128)}', space=vmem, size = 0x3c000, scoped, tag = 'scratch operand']
  #allocation3 [shape = 'f32[2,10,18,32]{3,2,1,0:T(8,128)}', space=vmem, size = 0x3c000, scoped, tag = 'scratch operand']
  #allocation4 [shape = 'f32[256,36]{1,0:T(8,128)}', space=vmem, size = 0x20000, scoped, tag = 'scratch operand']
  #allocation5 [shape = 'f32[256,288]{1,0:T(8,128)}', space=vmem, size = 0x60000, scoped, tag = 'scratch operand']
  %s0 = inlined_call_operand.vmem [shape: f32[4,128,512], index: 0, kind: input, shape index: {}]
  %s1 = inlined_call_operand.vmem [shape: f32[512,4], index: 1, kind: input, shape index: {}]
  %s2 = inlined_call_operand.vmem [shape: f32[36,32], index: 2, kind: input, shape index: {}]
  %s3 = inlined_call_operand.vmem [shape: f32[1,32], index: 3, kind: input, shape index: {}]
  %s4 = inlined_call_operand.vmem [shape: f32[32,288], index: 4, kind: input, shape index: {}]
  %s5 = inlined_call_operand.vmem [shape: f32[32,1], index: 5, kind: input, shape index: {}]
  %s6 = inlined_call_operand.vmem [shape: f32[37,32], index: 6, kind: input, shape index: {}]
  %s7 = inlined_call_operand.vmem [shape: f32[37,1], index: 7, kind: input, shape index: {}]
  %s8 = inlined_call_operand.vmem [shape: f32[4,32,128], index: 8, kind: output, shape index: {0}]
  %s9 = inlined_call_operand.vmem [shape: f32[4,37,128], index: 9, kind: output, shape index: {1}]
  %10 = xla_tuple %s8, %s9
  %s11 = sld [smem:[#allocation0]]
  $region73: #{forward.1} parent=0
    _
  %s13 = ssub.s32 1, %s11
  %s14 = scalar_select 0, %s13, %s11
  loop: start=0, step=1, limit=4
  $region2: #{forward.1} parent=0 // loop_pre_header
    _
  $region3: #{forward.1} parent=0 // loop_header
    %s16 = sphi 0, %s20
    %p17 = scmp.ge.s32.totalorder %s16, 4
    %s26 = sphi 0, %s28
    %s29 = sphi 0, %s26
    %s30 = sphi 0, %s29
    %s46 = sphi 0, %s30
    %s50 = sphi 0, %s50
    %s52 = sphi 0, %s50
    %s53 = sphi 0, %s52
    %s67 = sphi 0, %s53
    %s71 = sphi 0, %s71
    %s73 = sphi 0, %s71
    %s74 = sphi 0, %s73
    %s88 = sphi 0, %s74
    %s92 = sphi 0, %s92
    %s94 = sphi 0, %s92
    %s95 = sphi 0, %s94
    %s109 = sphi 0, %s95
    %s113 = sphi 0, %s113
    %s115 = sphi 0, %s113
    %s116 = sphi 0, %s115
    %s130 = sphi 0, %s116
    %s134 = sphi 0, %s134
    %s136 = sphi 0, %s134
    %s137 = sphi 0, %s136
    %s151 = sphi 0, %s137
    %s155 = sphi 0, %s155
    %s157 = sphi 0, %s155
    %s158 = sphi 0, %s157
    %s172 = sphi 0, %s158
    %s176 = sphi 0, %s176
    %s178 = sphi 0, %s176
    %s179 = sphi 0, %s178
    %s193 = sphi 0, %s179
    %s199 = sphi 0, %s201
    %s202 = sphi 0, %s199
    %s203 = sphi 0, %s202
    %s219 = sphi 0, %s203
    %s225 = sphi 0, %s227
    %s228 = sphi 0, %s225
    %s229 = sphi 0, %s228
    %s245 = sphi 0, %s229
  $region4: #{forward.1} parent=0 // loop_header_branch
    %19 = sbr.rel (%p17) target = $region8
  $region5: #{forward.1} parent=0 // loop_body
    %s21 = ssub.s32 %s16, 1
    %s22 = ssub.s32 %s16, 2
    %s23 = sadd.s32 %s16, 1
    %s24 = ssub.s32 %s16, %s23
    %p25 = scmp.eq.s32.totalorder %s24, 0
    %s27 = sadd.s32 %s26, 1
    %s28 = scalar_select %p25, %s26, %s27
    %p31 = pneg %p25
    %p32 = scmp.eq.s32.totalorder %s16, 1
    %p33 = por %p31, %p32
    %p34 = scmp.ne.s32.totalorder %s26, %s29
    %p35 = scmp.eq.s32.totalorder %s16, 0
    %p36 = por %p34, %p35
    %p37 = scmp.ne.s32.totalorder %s26, %s29
    %p38 = scmp.eq.s32.totalorder %s21, 1
    %p39 = por %p37, %p38
    %p40 = scmp.ne.s32.totalorder %s29, %s30
    %p41 = scmp.eq.s32.totalorder %s21, 0
    %p42 = por %p40, %p41
    %p43 = scmp.ne.s32.totalorder %s29, %s30
    %p44 = scmp.eq.s32.totalorder %s22, 1
    %p45 = por %p43, %p44
    %p47 = scmp.ne.s32.totalorder %s30, %s46
    %p48 = scmp.eq.s32.totalorder %s22, 0
    %p49 = por %p47, %p48
    %s51 = sadd.s32 %s50, 1
    %p54 = scmp.eq.s32.totalorder %s16, 1
    %p55 = scmp.ne.s32.totalorder %s50, %s52
    %p56 = scmp.eq.s32.totalorder %s16, 0
    %p57 = por %p55, %p56
    %p58 = scmp.ne.s32.totalorder %s50, %s52
    %p59 = scmp.eq.s32.totalorder %s21, 1
    %p60 = por %p58, %p59
    %p61 = scmp.ne.s32.totalorder %s52, %s53
    %p62 = scmp.eq.s32.totalorder %s21, 0
    %p63 = por %p61, %p62
    %p64 = scmp.ne.s32.totalorder %s52, %s53
    %p65 = scmp.eq.s32.totalorder %s22, 1
    %p66 = por %p64, %p65
    %p68 = scmp.ne.s32.totalorder %s53, %s67
    %p69 = scmp.eq.s32.totalorder %s22, 0
    %p70 = por %p68, %p69
    %s72 = sadd.s32 %s71, 1
    %p75 = scmp.eq.s32.totalorder %s16, 1
    %p76 = scmp.ne.s32.totalorder %s71, %s73
    %p77 = scmp.eq.s32.totalorder %s16, 0
    %p78 = por %p76, %p77
    %p79 = scmp.ne.s32.totalorder %s71, %s73
    %p80 = scmp.eq.s32.totalorder %s21, 1
    %p81 = por %p79, %p80
    %p82 = scmp.ne.s32.totalorder %s73, %s74
    %p83 = scmp.eq.s32.totalorder %s21, 0
    %p84 = por %p82, %p83
    %p85 = scmp.ne.s32.totalorder %s73, %s74
    %p86 = scmp.eq.s32.totalorder %s22, 1
    %p87 = por %p85, %p86
    %p89 = scmp.ne.s32.totalorder %s74, %s88
    %p90 = scmp.eq.s32.totalorder %s22, 0
    %p91 = por %p89, %p90
    %s93 = sadd.s32 %s92, 1
    %p96 = scmp.eq.s32.totalorder %s16, 1
    %p97 = scmp.ne.s32.totalorder %s92, %s94
    %p98 = scmp.eq.s32.totalorder %s16, 0
    %p99 = por %p97, %p98
    %p100 = scmp.ne.s32.totalorder %s92, %s94
    %p101 = scmp.eq.s32.totalorder %s21, 1
    %p102 = por %p100, %p101
    %p103 = scmp.ne.s32.totalorder %s94, %s95
    %p104 = scmp.eq.s32.totalorder %s21, 0
    %p105 = por %p103, %p104
    %p106 = scmp.ne.s32.totalorder %s94, %s95
    %p107 = scmp.eq.s32.totalorder %s22, 1
    %p108 = por %p106, %p107
    %p110 = scmp.ne.s32.totalorder %s95, %s109
    %p111 = scmp.eq.s32.totalorder %s22, 0
    %p112 = por %p110, %p111
    %s114 = sadd.s32 %s113, 1
    %p117 = scmp.eq.s32.totalorder %s16, 1
    %p118 = scmp.ne.s32.totalorder %s113, %s115
    %p119 = scmp.eq.s32.totalorder %s16, 0
    %p120 = por %p118, %p119
    %p121 = scmp.ne.s32.totalorder %s113, %s115
    %p122 = scmp.eq.s32.totalorder %s21, 1
    %p123 = por %p121, %p122
    %p124 = scmp.ne.s32.totalorder %s115, %s116
    %p125 = scmp.eq.s32.totalorder %s21, 0
    %p126 = por %p124, %p125
    %p127 = scmp.ne.s32.totalorder %s115, %s116
    %p128 = scmp.eq.s32.totalorder %s22, 1
    %p129 = por %p127, %p128
    %p131 = scmp.ne.s32.totalorder %s116, %s130
    %p132 = scmp.eq.s32.totalorder %s22, 0
    %p133 = por %p131, %p132
    %s135 = sadd.s32 %s134, 1
    %p138 = scmp.eq.s32.totalorder %s16, 1
    %p139 = scmp.ne.s32.totalorder %s134, %s136
    %p140 = scmp.eq.s32.totalorder %s16, 0
    %p141 = por %p139, %p140
    %p142 = scmp.ne.s32.totalorder %s134, %s136
    %p143 = scmp.eq.s32.totalorder %s21, 1
    %p144 = por %p142, %p143
    %p145 = scmp.ne.s32.totalorder %s136, %s137
    %p146 = scmp.eq.s32.totalorder %s21, 0
    %p147 = por %p145, %p146
    %p148 = scmp.ne.s32.totalorder %s136, %s137
    %p149 = scmp.eq.s32.totalorder %s22, 1
    %p150 = por %p148, %p149
    %p152 = scmp.ne.s32.totalorder %s137, %s151
    %p153 = scmp.eq.s32.totalorder %s22, 0
    %p154 = por %p152, %p153
    %s156 = sadd.s32 %s155, 1
    %p159 = scmp.eq.s32.totalorder %s16, 1
    %p160 = scmp.ne.s32.totalorder %s155, %s157
    %p161 = scmp.eq.s32.totalorder %s16, 0
    %p162 = por %p160, %p161
    %p163 = scmp.ne.s32.totalorder %s155, %s157
    %p164 = scmp.eq.s32.totalorder %s21, 1
    %p165 = por %p163, %p164
    %p166 = scmp.ne.s32.totalorder %s157, %s158
    %p167 = scmp.eq.s32.totalorder %s21, 0
    %p168 = por %p166, %p167
    %p169 = scmp.ne.s32.totalorder %s157, %s158
    %p170 = scmp.eq.s32.totalorder %s22, 1
    %p171 = por %p169, %p170
    %p173 = scmp.ne.s32.totalorder %s158, %s172
    %p174 = scmp.eq.s32.totalorder %s22, 0
    %p175 = por %p173, %p174
    %s177 = sadd.s32 %s176, 1
    %p180 = scmp.eq.s32.totalorder %s16, 1
    %p181 = scmp.ne.s32.totalorder %s176, %s178
    %p182 = scmp.eq.s32.totalorder %s16, 0
    %p183 = por %p181, %p182
    %p184 = scmp.ne.s32.totalorder %s176, %s178
    %p185 = scmp.eq.s32.totalorder %s21, 1
    %p186 = por %p184, %p185
    %p187 = scmp.ne.s32.totalorder %s178, %s179
    %p188 = scmp.eq.s32.totalorder %s21, 0
    %p189 = por %p187, %p188
    %p190 = scmp.ne.s32.totalorder %s178, %s179
    %p191 = scmp.eq.s32.totalorder %s22, 1
    %p192 = por %p190, %p191
    %p194 = scmp.ne.s32.totalorder %s179, %s193
    %p195 = scmp.eq.s32.totalorder %s22, 0
    %p196 = por %p194, %p195
    %s197 = ssub.s32 %s16, %s23
    %p198 = scmp.eq.s32.totalorder %s197, 0
    %s200 = sadd.s32 %s199, 1
    %s201 = scalar_select %p198, %s199, %s200
    %p204 = pneg %p198
    %p205 = scmp.eq.s32.totalorder %s16, 1
    %p206 = por %p204, %p205
    %p207 = scmp.ne.s32.totalorder %s199, %s202
    %p208 = scmp.eq.s32.totalorder %s16, 0
    %p209 = por %p207, %p208
    %p210 = scmp.ne.s32.totalorder %s199, %s202
    %p211 = scmp.eq.s32.totalorder %s21, 1
    %p212 = por %p210, %p211
    %p213 = scmp.ne.s32.totalorder %s202, %s203
    %p214 = scmp.eq.s32.totalorder %s21, 0
    %p215 = por %p213, %p214
    %p216 = scmp.ne.s32.totalorder %s202, %s203
    %p217 = scmp.eq.s32.totalorder %s22, 1
    %p218 = por %p216, %p217
    %p220 = scmp.ne.s32.totalorder %s203, %s219
    %p221 = scmp.eq.s32.totalorder %s22, 0
    %p222 = por %p220, %p221
    %s223 = ssub.s32 %s16, %s23
    %p224 = scmp.eq.s32.totalorder %s223, 0
    %s226 = sadd.s32 %s225, 1
    %s227 = scalar_select %p224, %s225, %s226
    %p230 = pneg %p224
    %p231 = scmp.eq.s32.totalorder %s16, 1
    %p232 = por %p230, %p231
    %p233 = scmp.ne.s32.totalorder %s225, %s228
    %p234 = scmp.eq.s32.totalorder %s16, 0
    %p235 = por %p233, %p234
    %p236 = scmp.ne.s32.totalorder %s225, %s228
    %p237 = scmp.eq.s32.totalorder %s21, 1
    %p238 = por %p236, %p237
    %p239 = scmp.ne.s32.totalorder %s228, %s229
    %p240 = scmp.eq.s32.totalorder %s21, 0
    %p241 = por %p239, %p240
    %p242 = scmp.ne.s32.totalorder %s228, %s229
    %p243 = scmp.eq.s32.totalorder %s22, 1
    %p244 = por %p242, %p243
    %p246 = scmp.ne.s32.totalorder %s229, %s245
    %p247 = scmp.eq.s32.totalorder %s22, 0
    %p248 = por %p246, %p247
    %p249 = scmp.le.s32.totalorder 1, %s16
    %p250 = scmp.lt.s32.totalorder %s16, 3
    %p251 = pnand %p249, %p250
    %p252 = pneg %p251
    // Predicated region
    $region9: #{forward.1} parent=5 // pred_check
      _
    $region10: #{forward.1} parent=5 // pred_check_branch
      %254 = sbr.rel (%p251) target = $region12
    $region11: #{forward.1} parent=5 // pred_region
      %s255 = ssub.s32 %s16, 1
      // Predicated region
      $region13: #{forward.1} parent=11 // pred_check
        %p256 = pneg %p63
      $region14: #{forward.1} parent=11 // pred_check_branch
        %258 = sbr.rel (%p256) target = $region16
      $region15: #{forward.1} parent=11 // pred_region
        _
      $region16: #{forward.1} parent=11 // pred_fallthru
        _
      // Predicated region
      $region17: #{forward.1} parent=11 // pred_check
        %p259 = pneg %p84
      $region18: #{forward.1} parent=11 // pred_check_branch
        %261 = sbr.rel (%p259) target = $region20
      $region19: #{forward.1} parent=11 // pred_region
        _
      $region20: #{forward.1} parent=11 // pred_fallthru
        _
      // Predicated region
      $region21: #{forward.1} parent=11 // pred_check
        %p262 = pneg %p105
      $region22: #{forward.1} parent=11 // pred_check_branch
        %264 = sbr.rel (%p262) target = $region24
      $region23: #{forward.1} parent=11 // pred_region
        _
      $region24: #{forward.1} parent=11 // pred_fallthru
        _
      // Predicated region
      $region25: #{forward.1} parent=11 // pred_check
        %p265 = pneg %p126
      $region26: #{forward.1} parent=11 // pred_check_branch
        %267 = sbr.rel (%p265) target = $region28
      $region27: #{forward.1} parent=11 // pred_region
        _
      $region28: #{forward.1} parent=11 // pred_fallthru
        _
      // Predicated region
      $region29: #{forward.1} parent=11 // pred_check
        %p268 = pneg %p147
      $region30: #{forward.1} parent=11 // pred_check_branch
        %270 = sbr.rel (%p268) target = $region32
      $region31: #{forward.1} parent=11 // pred_region
        _
      $region32: #{forward.1} parent=11 // pred_fallthru
        _
      // Predicated region
      $region33: #{forward.1} parent=11 // pred_check
        %p271 = pneg %p168
      $region34: #{forward.1} parent=11 // pred_check_branch
        %273 = sbr.rel (%p271) target = $region36
      $region35: #{forward.1} parent=11 // pred_region
        _
      $region36: #{forward.1} parent=11 // pred_fallthru
        _
      // Predicated region
      $region37: #{forward.1} parent=11 // pred_check
        %p274 = pneg %p189
      $region38: #{forward.1} parent=11 // pred_check_branch
        %276 = sbr.rel (%p274) target = $region40
      $region39: #{forward.1} parent=11 // pred_region
        _
      $region40: #{forward.1} parent=11 // pred_fallthru
        _
    $region12: #{forward.1} parent=5 // pred_fallthru
      _
    %p277 = scmp.lt.s32.totalorder %s16, 2
    // Predicated region
    $region41: #{forward.1} parent=5 // pred_check
      %p278 = pneg %p277
    $region42: #{forward.1} parent=5 // pred_check_branch
      %280 = sbr.rel (%p278) target = $region44
    $region43: #{forward.1} parent=5 // pred_region
      // Predicated region
      $region45: #{forward.1} parent=43 // pred_check
        %p281 = pneg %p36
      $region46: #{forward.1} parent=43 // pred_check_branch
        %283 = sbr.rel (%p281) target = $region48
      $region47: #{forward.1} parent=43 // pred_region
        %s284 = smul.u32 2, %s16
        %p285 = scmp.lt.s32.totalorder %s284, 3
        %s286 = scalar_select %p285, %s284, 3
        %s287 = smul.addr %s286, 64
        %s288 = smul.addr %s287, 8
        %s289 = scalar_lea.vmem %s0, %s288
        %s290 = smul.u32 2, %s16
      $region48: #{forward.1} parent=43 // pred_fallthru
        _
    $region44: #{forward.1} parent=5 // pred_fallthru
      _
    %p291 = scmp.le.s32.totalorder 1, %s16
    %p292 = scmp.lt.s32.totalorder %s16, 3
    %p293 = pnand %p291, %p292
    %p294 = pneg %p293
    // Predicated region
    $region49: #{forward.1} parent=5 // pred_check
      _
    $region50: #{forward.1} parent=5 // pred_check_branch
      %296 = sbr.rel (%p293) target = $region52
    $region51: #{forward.1} parent=5 // pred_region
      %s297 = ssub.s32 %s16, 1
      %s298 = smul.u32 2, %s21
      %p299 = scmp.lt.s32.totalorder %s298, 3
      %s300 = scalar_select %p299, %s298, 3
      %s301 = smul.addr %s300, 64
      %s302 = smul.addr %s301, 8
      %s303 = scalar_lea.vmem %s0, %s302
      %p304 = pneg %p42
      %p305 = pneg %p39
      %p306 = pneg %p63
      %p307 = pneg %p60
      %p308 = pneg %p84
      %p309 = pneg %p81
      %p310 = pneg %p105
      %p311 = pneg %p102
      %p312 = pneg %p126
      %p313 = pneg %p123
      %p314 = pneg %p147
      %p315 = pneg %p144
      %p316 = pneg %p168
      %p317 = pneg %p165
      %p318 = pneg %p189
      %p319 = pneg %p186
      %p320 = pneg %p215
      %p321 = pneg %p212
      %s322 = smul.u32 2, %s21
      %p323 = scmp.lt.s32.totalorder %s322, 3
      %s324 = scalar_select %p323, %s322, 3
      %s325 = smul.addr %s324, 4
      %s326 = smul.addr %s325, 8
      %s327 = scalar_lea.vmem %s8, %s326
      %p328 = pneg %p241
      %p329 = pneg %p238
      %s330 = smul.u32 2, %s21
      %p331 = scmp.lt.s32.totalorder %s330, 3
      %s332 = scalar_select %p331, %s330, 3
      %s333 = smul.addr %s332, 5
      %s334 = smul.addr %s333, 8
      %s335 = scalar_lea.vmem %s9, %s334
      %s336 = smul.u32 2, %s21
      %p337 = scmp.lt.s32.totalorder %s336, 3
      %s338 = scalar_select %p337, %s336, 3
      %s339 = smul.addr %s338, 64
      %s340 = smul.addr %s339, 8
      %s341 = scalar_lea.vmem %s0, %s340
      %s342 = smul.u32 2, %s21
      %s343 = smul.u32 2, %s21
      %p344 = scmp.lt.s32.totalorder %s343, 3
      %s345 = scalar_select %p344, %s343, 3
      %s346 = smul.addr %s345, 4
      %s347 = smul.addr %s346, 8
      %s348 = scalar_lea.vmem %s8, %s347
      %s349 = smul.u32 2, %s21
      %s350 = smul.u32 2, %s21
      %p351 = scmp.lt.s32.totalorder %s350, 3
      %s352 = scalar_select %p351, %s350, 3
      %s353 = smul.addr %s352, 5
      %s354 = smul.addr %s353, 8
      %s355 = scalar_lea.vmem %s9, %s354
      %s356 = smul.u32 2, %s21
      %vm357 = vcmask 31744
      %358 = vst.msk [vmem:[#allocation2] sm:$0xff] %vm357, 0.0
      %359 = vst.msk [vmem:[#allocation2 + $0x8] sm:$0xff] %vm357, 0.0
      %vm360 = vcmask 25600
      %361 = vst.msk [vmem:[#allocation2 + $0x10] sm:$0x3] %vm360, 0.0
      %362 = vst.msk [vmem:[#allocation2 + $0x18] sm:$0xff] %vm357, 0.0
      %363 = vst.msk [vmem:[#allocation2 + $0x20] sm:$0xff] %vm357, 0.0
      %364 = vst.msk [vmem:[#allocation2 + $0x28] sm:$0x3] %vm360, 0.0
      %365 = vst.msk [vmem:[#allocation2 + $0x30] sm:$0xff] %vm357, 0.0
      %366 = vst.msk [vmem:[#allocation2 + $0x38] sm:$0xff] %vm357, 0.0
      %367 = vst.msk [vmem:[#allocation2 + $0x40] sm:$0x3] %vm360, 0.0
      %368 = vst.msk [vmem:[#allocation2 + $0x48] sm:$0xff] %vm357, 0.0
      %369 = vst.msk [vmem:[#allocation2 + $0x50] sm:$0xff] %vm357, 0.0
      %370 = vst.msk [vmem:[#allocation2 + $0x58] sm:$0x3] %vm360, 0.0
      %371 = vst.msk [vmem:[#allocation2 + $0x60] sm:$0xff] %vm357, 0.0
      %372 = vst.msk [vmem:[#allocation2 + $0x68] sm:$0xff] %vm357, 0.0
      %373 = vst.msk [vmem:[#allocation2 + $0x70] sm:$0x3] %vm360, 0.0
      %374 = vst.msk [vmem:[#allocation2 + $0x78] sm:$0xff] %vm357, 0.0
      %375 = vst.msk [vmem:[#allocation2 + $0x80] sm:$0xff] %vm357, 0.0
      %376 = vst.msk [vmem:[#allocation2 + $0x88] sm:$0x3] %vm360, 0.0
      %377 = vst.msk [vmem:[#allocation2 + $0x90] sm:$0xff] %vm357, 0.0
      %378 = vst.msk [vmem:[#allocation2 + $0x98] sm:$0xff] %vm357, 0.0
      %379 = vst.msk [vmem:[#allocation2 + $0xa0] sm:$0x3] %vm360, 0.0
      %380 = vst.msk [vmem:[#allocation2 + $0xa8] sm:$0xff] %vm357, 0.0
      %381 = vst.msk [vmem:[#allocation2 + $0xb0] sm:$0xff] %vm357, 0.0
      %382 = vst.msk [vmem:[#allocation2 + $0xb8] sm:$0x3] %vm360, 0.0
      %383 = vst.msk [vmem:[#allocation2 + $0xc0] sm:$0xff] %vm357, 0.0
      %384 = vst.msk [vmem:[#allocation2 + $0xc8] sm:$0xff] %vm357, 0.0
      %385 = vst.msk [vmem:[#allocation2 + $0xd0] sm:$0x3] %vm360, 0.0
      %386 = vst.msk [vmem:[#allocation2 + $0xd8] sm:$0xff] %vm357, 0.0
      %387 = vst.msk [vmem:[#allocation2 + $0xe0] sm:$0xff] %vm357, 0.0
      %388 = vst.msk [vmem:[#allocation2 + $0xe8] sm:$0x3] %vm360, 0.0
      %389 = vst.msk [vmem:[#allocation2 + $0xf0] sm:$0xff] %vm357, 0.0
      %390 = vst.msk [vmem:[#allocation2 + $0xf8] sm:$0xff] %vm357, 0.0
      %391 = vst.msk [vmem:[#allocation2 + $0x100] sm:$0x3] %vm360, 0.0
      %392 = vst.msk [vmem:[#allocation2 + $0x108] sm:$0xff] %vm357, 0.0
      %393 = vst.msk [vmem:[#allocation2 + $0x110] sm:$0xff] %vm357, 0.0
      %394 = vst.msk [vmem:[#allocation2 + $0x118] sm:$0x3] %vm360, 0.0
      %395 = vst.msk [vmem:[#allocation2 + $0x120] sm:$0xff] %vm357, 0.0
      %396 = vst.msk [vmem:[#allocation2 + $0x128] sm:$0xff] %vm357, 0.0
      %397 = vst.msk [vmem:[#allocation2 + $0x130] sm:$0x3] %vm360, 0.0
      %398 = vst.msk [vmem:[#allocation2 + $0x138] sm:$0xff] %vm357, 0.0
      %399 = vst.msk [vmem:[#allocation2 + $0x140] sm:$0xff] %vm357, 0.0
      %400 = vst.msk [vmem:[#allocation2 + $0x148] sm:$0x3] %vm360, 0.0
      %401 = vst.msk [vmem:[#allocation2 + $0x150] sm:$0xff] %vm357, 0.0
      %402 = vst.msk [vmem:[#allocation2 + $0x158] sm:$0xff] %vm357, 0.0
      %403 = vst.msk [vmem:[#allocation2 + $0x160] sm:$0x3] %vm360, 0.0
      %404 = vst.msk [vmem:[#allocation2 + $0x168] sm:$0xff] %vm357, 0.0
      %405 = vst.msk [vmem:[#allocation2 + $0x170] sm:$0xff] %vm357, 0.0
      %406 = vst.msk [vmem:[#allocation2 + $0x178] sm:$0x3] %vm360, 0.0
      %407 = vst.msk [vmem:[#allocation2 + $0x180] sm:$0xff] %vm357, 0.0
      %408 = vst.msk [vmem:[#allocation2 + $0x188] sm:$0xff] %vm357, 0.0
      %409 = vst.msk [vmem:[#allocation2 + $0x190] sm:$0x3] %vm360, 0.0
      %410 = vst.msk [vmem:[#allocation2 + $0x198] sm:$0xff] %vm357, 0.0
      %411 = vst.msk [vmem:[#allocation2 + $0x1a0] sm:$0xff] %vm357, 0.0
      %412 = vst.msk [vmem:[#allocation2 + $0x1a8] sm:$0x3] %vm360, 0.0
      %413 = vst.msk [vmem:[#allocation2 + $0x1b0] sm:$0xff] %vm357, 0.0
      %414 = vst.msk [vmem:[#allocation2 + $0x1b8] sm:$0xff] %vm357, 0.0
      %415 = vst.msk [vmem:[#allocation2 + $0x1c0] sm:$0x3] %vm360, 0.0
      %416 = vst.msk [vmem:[#allocation2 + $0x1c8] sm:$0xff] %vm357, 0.0
      %417 = vst.msk [vmem:[#allocation2 + $0x1d0] sm:$0xff] %vm357, 0.0
      %418 = vst.msk [vmem:[#allocation2 + $0x1d8] sm:$0x3] %vm360, 0.0
      %vm419 = vcmask 261120
      %420 = vst.msk [vmem:[#allocation3] sm:$0xff] %vm419, 0.0
      %421 = vst.msk [vmem:[#allocation3 + $0x8] sm:$0xff] %vm419, 0.0
      %vm422 = vcmask 254976
      %423 = vst.msk [vmem:[#allocation3 + $0x10] sm:$0x3] %vm422, 0.0
      %424 = vst.msk [vmem:[#allocation3 + $0x18] sm:$0xff] %vm419, 0.0
      %425 = vst.msk [vmem:[#allocation3 + $0x20] sm:$0xff] %vm419, 0.0
      %426 = vst.msk [vmem:[#allocation3 + $0x28] sm:$0x3] %vm422, 0.0
      %427 = vst.msk [vmem:[#allocation3 + $0x30] sm:$0xff] %vm419, 0.0
      %428 = vst.msk [vmem:[#allocation3 + $0x38] sm:$0xff] %vm419, 0.0
      %429 = vst.msk [vmem:[#allocation3 + $0x40] sm:$0x3] %vm422, 0.0
      %430 = vst.msk [vmem:[#allocation3 + $0x48] sm:$0xff] %vm419, 0.0
      %431 = vst.msk [vmem:[#allocation3 + $0x50] sm:$0xff] %vm419, 0.0
      %432 = vst.msk [vmem:[#allocation3 + $0x58] sm:$0x3] %vm422, 0.0
      %433 = vst.msk [vmem:[#allocation3 + $0x60] sm:$0xff] %vm419, 0.0
      %434 = vst.msk [vmem:[#allocation3 + $0x68] sm:$0xff] %vm419, 0.0
      %435 = vst.msk [vmem:[#allocation3 + $0x70] sm:$0x3] %vm422, 0.0
      %436 = vst.msk [vmem:[#allocation3 + $0x78] sm:$0xff] %vm419, 0.0
      %437 = vst.msk [vmem:[#allocation3 + $0x80] sm:$0xff] %vm419, 0.0
      %438 = vst.msk [vmem:[#allocation3 + $0x88] sm:$0x3] %vm422, 0.0
      %439 = vst.msk [vmem:[#allocation3 + $0x90] sm:$0xff] %vm419, 0.0
      %440 = vst.msk [vmem:[#allocation3 + $0x98] sm:$0xff] %vm419, 0.0
      %441 = vst.msk [vmem:[#allocation3 + $0xa0] sm:$0x3] %vm422, 0.0
      %442 = vst.msk [vmem:[#allocation3 + $0xa8] sm:$0xff] %vm419, 0.0
      %443 = vst.msk [vmem:[#allocation3 + $0xb0] sm:$0xff] %vm419, 0.0
      %444 = vst.msk [vmem:[#allocation3 + $0xb8] sm:$0x3] %vm422, 0.0
      %445 = vst.msk [vmem:[#allocation3 + $0xc0] sm:$0xff] %vm419, 0.0
      %446 = vst.msk [vmem:[#allocation3 + $0xc8] sm:$0xff] %vm419, 0.0
      %447 = vst.msk [vmem:[#allocation3 + $0xd0] sm:$0x3] %vm422, 0.0
      %448 = vst.msk [vmem:[#allocation3 + $0xd8] sm:$0xff] %vm419, 0.0
      %449 = vst.msk [vmem:[#allocation3 + $0xe0] sm:$0xff] %vm419, 0.0
      %450 = vst.msk [vmem:[#allocation3 + $0xe8] sm:$0x3] %vm422, 0.0
      %451 = vst.msk [vmem:[#allocation3 + $0xf0] sm:$0xff] %vm419, 0.0
      %452 = vst.msk [vmem:[#allocation3 + $0xf8] sm:$0xff] %vm419, 0.0
      %453 = vst.msk [vmem:[#allocation3 + $0x100] sm:$0x3] %vm422, 0.0
      %454 = vst.msk [vmem:[#allocation3 + $0x108] sm:$0xff] %vm419, 0.0
      %455 = vst.msk [vmem:[#allocation3 + $0x110] sm:$0xff] %vm419, 0.0
      %456 = vst.msk [vmem:[#allocation3 + $0x118] sm:$0x3] %vm422, 0.0
      %457 = vst.msk [vmem:[#allocation3 + $0x120] sm:$0xff] %vm419, 0.0
      %458 = vst.msk [vmem:[#allocation3 + $0x128] sm:$0xff] %vm419, 0.0
      %459 = vst.msk [vmem:[#allocation3 + $0x130] sm:$0x3] %vm422, 0.0
      %460 = vst.msk [vmem:[#allocation3 + $0x138] sm:$0xff] %vm419, 0.0
      %461 = vst.msk [vmem:[#allocation3 + $0x140] sm:$0xff] %vm419, 0.0
      %462 = vst.msk [vmem:[#allocation3 + $0x148] sm:$0x3] %vm422, 0.0
      %463 = vst.msk [vmem:[#allocation3 + $0x150] sm:$0xff] %vm419, 0.0
      %464 = vst.msk [vmem:[#allocation3 + $0x158] sm:$0xff] %vm419, 0.0
      %465 = vst.msk [vmem:[#allocation3 + $0x160] sm:$0x3] %vm422, 0.0
      %466 = vst.msk [vmem:[#allocation3 + $0x168] sm:$0xff] %vm419, 0.0
      %467 = vst.msk [vmem:[#allocation3 + $0x170] sm:$0xff] %vm419, 0.0
      %468 = vst.msk [vmem:[#allocation3 + $0x178] sm:$0x3] %vm422, 0.0
      %469 = vst.msk [vmem:[#allocation3 + $0x180] sm:$0xff] %vm419, 0.0
      %470 = vst.msk [vmem:[#allocation3 + $0x188] sm:$0xff] %vm419, 0.0
      %471 = vst.msk [vmem:[#allocation3 + $0x190] sm:$0x3] %vm422, 0.0
      %472 = vst.msk [vmem:[#allocation3 + $0x198] sm:$0xff] %vm419, 0.0
      %473 = vst.msk [vmem:[#allocation3 + $0x1a0] sm:$0xff] %vm419, 0.0
      %474 = vst.msk [vmem:[#allocation3 + $0x1a8] sm:$0x3] %vm422, 0.0
      %475 = vst.msk [vmem:[#allocation3 + $0x1b0] sm:$0xff] %vm419, 0.0
      %476 = vst.msk [vmem:[#allocation3 + $0x1b8] sm:$0xff] %vm419, 0.0
      %477 = vst.msk [vmem:[#allocation3 + $0x1c0] sm:$0x3] %vm422, 0.0
      %478 = vst.msk [vmem:[#allocation3 + $0x1c8] sm:$0xff] %vm419, 0.0
      %479 = vst.msk [vmem:[#allocation3 + $0x1d0] sm:$0xff] %vm419, 0.0
      %480 = vst.msk [vmem:[#allocation3 + $0x1d8] sm:$0x3] %vm422, 0.0
      %v481 = vld [vmem:[%s341] sm:$0xff]
      %v482 = vld [vmem:[%s341 + $0x8] sm:$0xff]
      %v483 = vld [vmem:[%s341 + $0x10] sm:$0xff]
      %v484 = vld [vmem:[%s341 + $0x18] sm:$0xff]
      %v485 = vld [vmem:[%s341 + $0x20] sm:$0xff]
      %v486 = vld [vmem:[%s341 + $0x28] sm:$0xff]
      %v487 = vld [vmem:[%s341 + $0x30] sm:$0xff]
      %v488 = vld [vmem:[%s341 + $0x38] sm:$0xff]
      %v489 = vld [vmem:[%s341 + $0x40] sm:$0xff]
      %v490 = vld [vmem:[%s341 + $0x48] sm:$0xff]
      %v491 = vld [vmem:[%s341 + $0x50] sm:$0xff]
      %v492 = vld [vmem:[%s341 + $0x58] sm:$0xff]
      %v493 = vld [vmem:[%s341 + $0x60] sm:$0xff]
      %v494 = vld [vmem:[%s341 + $0x68] sm:$0xff]
      %v495 = vld [vmem:[%s341 + $0x70] sm:$0xff]
      %v496 = vld [vmem:[%s341 + $0x78] sm:$0xff]
      %v497 = vld [vmem:[%s341 + $0x80] sm:$0xff]
      %v498 = vld [vmem:[%s341 + $0x88] sm:$0xff]
      %v499 = vld [vmem:[%s341 + $0x90] sm:$0xff]
      %v500 = vld [vmem:[%s341 + $0x98] sm:$0xff]
      %v501 = vld [vmem:[%s341 + $0xa0] sm:$0xff]
      %v502 = vld [vmem:[%s341 + $0xa8] sm:$0xff]
      %v503 = vld [vmem:[%s341 + $0xb0] sm:$0xff]
      %v504 = vld [vmem:[%s341 + $0xb8] sm:$0xff]
      %v505 = vld [vmem:[%s341 + $0xc0] sm:$0xff]
      %v506 = vld [vmem:[%s341 + $0xc8] sm:$0xff]
      %v507 = vld [vmem:[%s341 + $0xd0] sm:$0xff]
      %v508 = vld [vmem:[%s341 + $0xd8] sm:$0xff]
      %v509 = vld [vmem:[%s341 + $0xe0] sm:$0xff]
      %v510 = vld [vmem:[%s341 + $0xe8] sm:$0xff]
      %v511 = vld [vmem:[%s341 + $0xf0] sm:$0xff]
      %v512 = vld [vmem:[%s341 + $0xf8] sm:$0xff]
      %v513 = vld [vmem:[%s341 + $0x100] sm:$0xff]
      %v514 = vld [vmem:[%s341 + $0x108] sm:$0xff]
      %v515 = vld [vmem:[%s341 + $0x110] sm:$0xff]
      %v516 = vld [vmem:[%s341 + $0x118] sm:$0xff]
      %v517 = vld [vmem:[%s341 + $0x120] sm:$0xff]
      %v518 = vld [vmem:[%s341 + $0x128] sm:$0xff]
      %v519 = vld [vmem:[%s341 + $0x130] sm:$0xff]
      %v520 = vld [vmem:[%s341 + $0x138] sm:$0xff]
      %v521 = vld [vmem:[%s341 + $0x140] sm:$0xff]
      %v522 = vld [vmem:[%s341 + $0x148] sm:$0xff]
      %v523 = vld [vmem:[%s341 + $0x150] sm:$0xff]
      %v524 = vld [vmem:[%s341 + $0x158] sm:$0xff]
      %v525 = vld [vmem:[%s341 + $0x160] sm:$0xff]
      %v526 = vld [vmem:[%s341 + $0x168] sm:$0xff]
      %v527 = vld [vmem:[%s341 + $0x170] sm:$0xff]
      %v528 = vld [vmem:[%s341 + $0x178] sm:$0xff]
      %v529 = vld [vmem:[%s341 + $0x180] sm:$0xff]
      %v530 = vld [vmem:[%s341 + $0x188] sm:$0xff]
      %v531 = vld [vmem:[%s341 + $0x190] sm:$0xff]
      %v532 = vld [vmem:[%s341 + $0x198] sm:$0xff]
      %v533 = vld [vmem:[%s341 + $0x1a0] sm:$0xff]
      %v534 = vld [vmem:[%s341 + $0x1a8] sm:$0xff]
      %v535 = vld [vmem:[%s341 + $0x1b0] sm:$0xff]
      %v536 = vld [vmem:[%s341 + $0x1b8] sm:$0xff]
      %v537 = vld [vmem:[%s341 + $0x1c0] sm:$0xff]
      %v538 = vld [vmem:[%s341 + $0x1c8] sm:$0xff]
      %v539 = vld [vmem:[%s341 + $0x1d0] sm:$0xff]
      %v540 = vld [vmem:[%s341 + $0x1d8] sm:$0xff]
      %v541 = vld [vmem:[%s341 + $0x1e0] sm:$0xff]
      %v542 = vld [vmem:[%s341 + $0x1e8] sm:$0xff]
      %v543 = vld [vmem:[%s341 + $0x1f0] sm:$0xff]
      %v544 = vld [vmem:[%s341 + $0x1f8] sm:$0xff]
      %v545 = vld [vmem:[%s341 + $0x200] sm:$0xff]
      %v546 = vld [vmem:[%s341 + $0x208] sm:$0xff]
      %v547 = vld [vmem:[%s341 + $0x210] sm:$0xff]
      %v548 = vld [vmem:[%s341 + $0x218] sm:$0xff]
      %v549 = vld [vmem:[%s341 + $0x220] sm:$0xff]
      %v550 = vld [vmem:[%s341 + $0x228] sm:$0xff]
      %v551 = vld [vmem:[%s341 + $0x230] sm:$0xff]
      %v552 = vld [vmem:[%s341 + $0x238] sm:$0xff]
      %v553 = vld [vmem:[%s341 + $0x240] sm:$0xff]
      %v554 = vld [vmem:[%s341 + $0x248] sm:$0xff]
      %v555 = vld [vmem:[%s341 + $0x250] sm:$0xff]
      %v556 = vld [vmem:[%s341 + $0x258] sm:$0xff]
      %v557 = vld [vmem:[%s341 + $0x260] sm:$0xff]
      %v558 = vld [vmem:[%s341 + $0x268] sm:$0xff]
      %v559 = vld [vmem:[%s341 + $0x270] sm:$0xff]
      %v560 = vld [vmem:[%s341 + $0x278] sm:$0xff]
      %v561 = vld [vmem:[%s341 + $0x280] sm:$0xff]
      %v562 = vld [vmem:[%s341 + $0x288] sm:$0xff]
      %v563 = vld [vmem:[%s341 + $0x290] sm:$0xff]
      %v564 = vld [vmem:[%s341 + $0x298] sm:$0xff]
      %v565 = vld [vmem:[%s341 + $0x2a0] sm:$0xff]
      %v566 = vld [vmem:[%s341 + $0x2a8] sm:$0xff]
      %v567 = vld [vmem:[%s341 + $0x2b0] sm:$0xff]
      %v568 = vld [vmem:[%s341 + $0x2b8] sm:$0xff]
      %v569 = vld [vmem:[%s341 + $0x2c0] sm:$0xff]
      %v570 = vld [vmem:[%s341 + $0x2c8] sm:$0xff]
      %v571 = vld [vmem:[%s341 + $0x2d0] sm:$0xff]
      %v572 = vld [vmem:[%s341 + $0x2d8] sm:$0xff]
      %v573 = vld [vmem:[%s341 + $0x2e0] sm:$0xff]
      %v574 = vld [vmem:[%s341 + $0x2e8] sm:$0xff]
      %v575 = vld [vmem:[%s341 + $0x2f0] sm:$0xff]
      %v576 = vld [vmem:[%s341 + $0x2f8] sm:$0xff]
      %v577 = vld [vmem:[%s341 + $0x300] sm:$0xff]
      %v578 = vld [vmem:[%s341 + $0x308] sm:$0xff]
      %v579 = vld [vmem:[%s341 + $0x310] sm:$0xff]
      %v580 = vld [vmem:[%s341 + $0x318] sm:$0xff]
      %v581 = vld [vmem:[%s341 + $0x320] sm:$0xff]
      %v582 = vld [vmem:[%s341 + $0x328] sm:$0xff]
      %v583 = vld [vmem:[%s341 + $0x330] sm:$0xff]
      %v584 = vld [vmem:[%s341 + $0x338] sm:$0xff]
      %v585 = vld [vmem:[%s341 + $0x340] sm:$0xff]
      %v586 = vld [vmem:[%s341 + $0x348] sm:$0xff]
      %v587 = vld [vmem:[%s341 + $0x350] sm:$0xff]
      %v588 = vld [vmem:[%s341 + $0x358] sm:$0xff]
      %v589 = vld [vmem:[%s341 + $0x360] sm:$0xff]
      %v590 = vld [vmem:[%s341 + $0x368] sm:$0xff]
      %v591 = vld [vmem:[%s341 + $0x370] sm:$0xff]
      %v592 = vld [vmem:[%s341 + $0x378] sm:$0xff]
      %v593 = vld [vmem:[%s341 + $0x380] sm:$0xff]
      %v594 = vld [vmem:[%s341 + $0x388] sm:$0xff]
      %v595 = vld [vmem:[%s341 + $0x390] sm:$0xff]
      %v596 = vld [vmem:[%s341 + $0x398] sm:$0xff]
      %v597 = vld [vmem:[%s341 + $0x3a0] sm:$0xff]
      %v598 = vld [vmem:[%s341 + $0x3a8] sm:$0xff]
      %v599 = vld [vmem:[%s341 + $0x3b0] sm:$0xff]
      %v600 = vld [vmem:[%s341 + $0x3b8] sm:$0xff]
      %v601 = vld [vmem:[%s341 + $0x3c0] sm:$0xff]
      %v602 = vld [vmem:[%s341 + $0x3c8] sm:$0xff]
      %v603 = vld [vmem:[%s341 + $0x3d0] sm:$0xff]
      %v604 = vld [vmem:[%s341 + $0x3d8] sm:$0xff]
      %v605 = vld [vmem:[%s341 + $0x3e0] sm:$0xff]
      %v606 = vld [vmem:[%s341 + $0x3e8] sm:$0xff]
      %v607 = vld [vmem:[%s341 + $0x3f0] sm:$0xff]
      %v608 = vld [vmem:[%s341 + $0x3f8] sm:$0xff]
      %v609 = vld [vmem:[%s1] sm:$0xff]
      %v610 = vld [vmem:[%s1 + $0x8] sm:$0xff]
      %v611 = vld [vmem:[%s1 + $0x10] sm:$0xff]
      %v612 = vld [vmem:[%s1 + $0x18] sm:$0xff]
      %v613 = vld [vmem:[%s1 + $0x20] sm:$0xff]
      %v614 = vld [vmem:[%s1 + $0x28] sm:$0xff]
      %v615 = vld [vmem:[%s1 + $0x30] sm:$0xff]
      %v616 = vld [vmem:[%s1 + $0x38] sm:$0xff]
      %v617 = vld [vmem:[%s1 + $0x40] sm:$0xff]
      %v618 = vld [vmem:[%s1 + $0x48] sm:$0xff]
      %v619 = vld [vmem:[%s1 + $0x50] sm:$0xff]
      %v620 = vld [vmem:[%s1 + $0x58] sm:$0xff]
      %v621 = vld [vmem:[%s1 + $0x60] sm:$0xff]
      %v622 = vld [vmem:[%s1 + $0x68] sm:$0xff]
      %v623 = vld [vmem:[%s1 + $0x70] sm:$0xff]
      %v624 = vld [vmem:[%s1 + $0x78] sm:$0xff]
      %v625 = vld [vmem:[%s1 + $0x80] sm:$0xff]
      %v626 = vld [vmem:[%s1 + $0x88] sm:$0xff]
      %v627 = vld [vmem:[%s1 + $0x90] sm:$0xff]
      %v628 = vld [vmem:[%s1 + $0x98] sm:$0xff]
      %v629 = vld [vmem:[%s1 + $0xa0] sm:$0xff]
      %v630 = vld [vmem:[%s1 + $0xa8] sm:$0xff]
      %v631 = vld [vmem:[%s1 + $0xb0] sm:$0xff]
      %v632 = vld [vmem:[%s1 + $0xb8] sm:$0xff]
      %v633 = vld [vmem:[%s1 + $0xc0] sm:$0xff]
      %v634 = vld [vmem:[%s1 + $0xc8] sm:$0xff]
      %v635 = vld [vmem:[%s1 + $0xd0] sm:$0xff]
      %v636 = vld [vmem:[%s1 + $0xd8] sm:$0xff]
      %v637 = vld [vmem:[%s1 + $0xe0] sm:$0xff]
      %v638 = vld [vmem:[%s1 + $0xe8] sm:$0xff]
      %v639 = vld [vmem:[%s1 + $0xf0] sm:$0xff]
      %v640 = vld [vmem:[%s1 + $0xf8] sm:$0xff]
      %v641 = vld [vmem:[%s1 + $0x100] sm:$0xff]
      %v642 = vld [vmem:[%s1 + $0x108] sm:$0xff]
      %v643 = vld [vmem:[%s1 + $0x110] sm:$0xff]
      %v644 = vld [vmem:[%s1 + $0x118] sm:$0xff]
      %v645 = vld [vmem:[%s1 + $0x120] sm:$0xff]
      %v646 = vld [vmem:[%s1 + $0x128] sm:$0xff]
      %v647 = vld [vmem:[%s1 + $0x130] sm:$0xff]
      %v648 = vld [vmem:[%s1 + $0x138] sm:$0xff]
      %v649 = vld [vmem:[%s1 + $0x140] sm:$0xff]
      %v650 = vld [vmem:[%s1 + $0x148] sm:$0xff]
      %v651 = vld [vmem:[%s1 + $0x150] sm:$0xff]
      %v652 = vld [vmem:[%s1 + $0x158] sm:$0xff]
      %v653 = vld [vmem:[%s1 + $0x160] sm:$0xff]
      %v654 = vld [vmem:[%s1 + $0x168] sm:$0xff]
      %v655 = vld [vmem:[%s1 + $0x170] sm:$0xff]
      %v656 = vld [vmem:[%s1 + $0x178] sm:$0xff]
      %v657 = vld [vmem:[%s1 + $0x180] sm:$0xff]
      %v658 = vld [vmem:[%s1 + $0x188] sm:$0xff]
      %v659 = vld [vmem:[%s1 + $0x190] sm:$0xff]
      %v660 = vld [vmem:[%s1 + $0x198] sm:$0xff]
      %v661 = vld [vmem:[%s1 + $0x1a0] sm:$0xff]
      %v662 = vld [vmem:[%s1 + $0x1a8] sm:$0xff]
      %v663 = vld [vmem:[%s1 + $0x1b0] sm:$0xff]
      %v664 = vld [vmem:[%s1 + $0x1b8] sm:$0xff]
      %v665 = vld [vmem:[%s1 + $0x1c0] sm:$0xff]
      %v666 = vld [vmem:[%s1 + $0x1c8] sm:$0xff]
      %v667 = vld [vmem:[%s1 + $0x1d0] sm:$0xff]
      %v668 = vld [vmem:[%s1 + $0x1d8] sm:$0xff]
      %v669 = vld [vmem:[%s1 + $0x1e0] sm:$0xff]
      %v670 = vld [vmem:[%s1 + $0x1e8] sm:$0xff]
      %v671 = vld [vmem:[%s1 + $0x1f0] sm:$0xff]
      %v672 = vld [vmem:[%s1 + $0x1f8] sm:$0xff]
      %673 = vmatpush.msra.mxu0 %v624
      %674 = vmatpush.msra.mxu0 %v623
      %675 = vmatpush.msra.mxu0 %v622
      %676 = vmatpush.msra.mxu0 %v621
      %677 = vmatpush.msra.mxu0 %v620
      %678 = vmatpush.msra.mxu0 %v619
      %679 = vmatpush.msra.mxu0 %v618
      %680 = vmatpush.msra.mxu0 %v617
      %681 = vmatpush.msra.mxu0 %v616
      %682 = vmatpush.msra.mxu0 %v615
      %683 = vmatpush.msra.mxu0 %v614
      %684 = vmatpush.msra.mxu0 %v613
      %685 = vmatpush.msra.mxu0 %v612
      %686 = vmatpush.msra.mxu0 %v611
      %687 = vmatpush.msra.mxu0 %v610
      %688 = vmatpush.msra.mxu0 %v609
      %689 = vmatmul.f32.gmra.mxu0 %v481
      %v690 = vpop.f32.mrf.mxu0
      %v691 = vadd.f32 0.0, %v690
      %692 = vmatmul.f32.gmra.mxu0 %v485
      %v693 = vpop.f32.mrf.mxu0
      %v694 = vadd.f32 0.0, %v693
      %695 = vmatmul.f32.gmra.mxu0 %v489
      %v696 = vpop.f32.mrf.mxu0
      %v697 = vadd.f32 0.0, %v696
      %698 = vmatmul.f32.gmra.mxu0 %v493
      %v699 = vpop.f32.mrf.mxu0
      %v700 = vadd.f32 0.0, %v699
      %701 = vmatmul.f32.gmra.mxu0 %v497
      %v702 = vpop.f32.mrf.mxu0
      %v703 = vadd.f32 0.0, %v702
      %704 = vmatmul.f32.gmra.mxu0 %v501
      %v705 = vpop.f32.mrf.mxu0
      %v706 = vadd.f32 0.0, %v705
      %707 = vmatmul.f32.gmra.mxu0 %v505
      %v708 = vpop.f32.mrf.mxu0
      %v709 = vadd.f32 0.0, %v708
      %710 = vmatmul.f32.gmra.mxu0 %v509
      %v711 = vpop.f32.mrf.mxu0
      %v712 = vadd.f32 0.0, %v711
      %713 = vmatmul.f32.gmra.mxu0 %v513
      %v714 = vpop.f32.mrf.mxu0
      %v715 = vadd.f32 0.0, %v714
      %716 = vmatmul.f32.gmra.mxu0 %v517
      %v717 = vpop.f32.mrf.mxu0
      %v718 = vadd.f32 0.0, %v717
      %719 = vmatmul.f32.gmra.mxu0 %v521
      %v720 = vpop.f32.mrf.mxu0
      %v721 = vadd.f32 0.0, %v720
      %722 = vmatmul.f32.gmra.mxu0 %v525
      %v723 = vpop.f32.mrf.mxu0
      %v724 = vadd.f32 0.0, %v723
      %725 = vmatmul.f32.gmra.mxu0 %v529
      %v726 = vpop.f32.mrf.mxu0
      %v727 = vadd.f32 0.0, %v726
      %728 = vmatmul.f32.gmra.mxu0 %v533
      %v729 = vpop.f32.mrf.mxu0
      %v730 = vadd.f32 0.0, %v729
      %731 = vmatmul.f32.gmra.mxu0 %v537
      %v732 = vpop.f32.mrf.mxu0
      %v733 = vadd.f32 0.0, %v732
      %734 = vmatmul.f32.gmra.mxu0 %v541
      %v735 = vpop.f32.mrf.mxu0
      %v736 = vadd.f32 0.0, %v735
      %737 = vmatmul.f32.gmra.mxu0 %v545
      %v738 = vpop.f32.mrf.mxu0
      %v739 = vadd.f32 0.0, %v738
      %740 = vmatmul.f32.gmra.mxu0 %v549
      %v741 = vpop.f32.mrf.mxu0
      %v742 = vadd.f32 0.0, %v741
      %743 = vmatmul.f32.gmra.mxu0 %v553
      %v744 = vpop.f32.mrf.mxu0
      %v745 = vadd.f32 0.0, %v744
      %746 = vmatmul.f32.gmra.mxu0 %v557
      %v747 = vpop.f32.mrf.mxu0
      %v748 = vadd.f32 0.0, %v747
      %749 = vmatmul.f32.gmra.mxu0 %v561
      %v750 = vpop.f32.mrf.mxu0
      %v751 = vadd.f32 0.0, %v750
      %752 = vmatmul.f32.gmra.mxu0 %v565
      %v753 = vpop.f32.mrf.mxu0
      %v754 = vadd.f32 0.0, %v753
      %755 = vmatmul.f32.gmra.mxu0 %v569
      %v756 = vpop.f32.mrf.mxu0
      %v757 = vadd.f32 0.0, %v756
      %758 = vmatmul.f32.gmra.mxu0 %v573
      %v759 = vpop.f32.mrf.mxu0
      %v760 = vadd.f32 0.0, %v759
      %761 = vmatmul.f32.gmra.mxu0 %v577
      %v762 = vpop.f32.mrf.mxu0
      %v763 = vadd.f32 0.0, %v762
      %764 = vmatmul.f32.gmra.mxu0 %v581
      %v765 = vpop.f32.mrf.mxu0
      %v766 = vadd.f32 0.0, %v765
      %767 = vmatmul.f32.gmra.mxu0 %v585
      %v768 = vpop.f32.mrf.mxu0
      %v769 = vadd.f32 0.0, %v768
      %770 = vmatmul.f32.gmra.mxu0 %v589
      %v771 = vpop.f32.mrf.mxu0
      %v772 = vadd.f32 0.0, %v771
      %773 = vmatmul.f32.gmra.mxu0 %v593
      %v774 = vpop.f32.mrf.mxu0
      %v775 = vadd.f32 0.0, %v774
      %776 = vmatmul.f32.gmra.mxu0 %v597
      %v777 = vpop.f32.mrf.mxu0
      %v778 = vadd.f32 0.0, %v777
      %779 = vmatmul.f32.gmra.mxu0 %v601
      %v780 = vpop.f32.mrf.mxu0
      %v781 = vadd.f32 0.0, %v780
      %782 = vmatmul.f32.gmra.mxu0 %v605
      %v783 = vpop.f32.mrf.mxu0
      %v784 = vadd.f32 0.0, %v783
      %785 = vdwg.mxu0
      %786 = vmatpush.msra.mxu0 %v640
      %787 = vmatpush.msra.mxu0 %v639
      %788 = vmatpush.msra.mxu0 %v638
      %789 = vmatpush.msra.mxu0 %v637
      %790 = vmatpush.msra.mxu0 %v636
      %791 = vmatpush.msra.mxu0 %v635
      %792 = vmatpush.msra.mxu0 %v634
      %793 = vmatpush.msra.mxu0 %v633
      %794 = vmatpush.msra.mxu0 %v632
      %795 = vmatpush.msra.mxu0 %v631
      %796 = vmatpush.msra.mxu0 %v630
      %797 = vmatpush.msra.mxu0 %v629
      %798 = vmatpush.msra.mxu0 %v628
      %799 = vmatpush.msra.mxu0 %v627
      %800 = vmatpush.msra.mxu0 %v626
      %801 = vmatpush.msra.mxu0 %v625
      %802 = vmatmul.f32.gmra.mxu0 %v482
      %v803 = vpop.f32.mrf.mxu0
      %v804 = vadd.f32 %v691, %v803
      %805 = vmatmul.f32.gmra.mxu0 %v486
      %v806 = vpop.f32.mrf.mxu0
      %v807 = vadd.f32 %v694, %v806
      %808 = vmatmul.f32.gmra.mxu0 %v490
      %v809 = vpop.f32.mrf.mxu0
      %v810 = vadd.f32 %v697, %v809
      %811 = vmatmul.f32.gmra.mxu0 %v494
      %v812 = vpop.f32.mrf.mxu0
      %v813 = vadd.f32 %v700, %v812
      %814 = vmatmul.f32.gmra.mxu0 %v498
      %v815 = vpop.f32.mrf.mxu0
      %v816 = vadd.f32 %v703, %v815
      %817 = vmatmul.f32.gmra.mxu0 %v502
      %v818 = vpop.f32.mrf.mxu0
      %v819 = vadd.f32 %v706, %v818
      %820 = vmatmul.f32.gmra.mxu0 %v506
      %v821 = vpop.f32.mrf.mxu0
      %v822 = vadd.f32 %v709, %v821
      %823 = vmatmul.f32.gmra.mxu0 %v510
      %v824 = vpop.f32.mrf.mxu0
      %v825 = vadd.f32 %v712, %v824
      %826 = vmatmul.f32.gmra.mxu0 %v514
      %v827 = vpop.f32.mrf.mxu0
      %v828 = vadd.f32 %v715, %v827
      %829 = vmatmul.f32.gmra.mxu0 %v518
      %v830 = vpop.f32.mrf.mxu0
      %v831 = vadd.f32 %v718, %v830
      %832 = vmatmul.f32.gmra.mxu0 %v522
      %v833 = vpop.f32.mrf.mxu0
      %v834 = vadd.f32 %v721, %v833
      %835 = vmatmul.f32.gmra.mxu0 %v526
      %v836 = vpop.f32.mrf.mxu0
      %v837 = vadd.f32 %v724, %v836
      %838 = vmatmul.f32.gmra.mxu0 %v530
      %v839 = vpop.f32.mrf.mxu0
      %v840 = vadd.f32 %v727, %v839
      %841 = vmatmul.f32.gmra.mxu0 %v534
      %v842 = vpop.f32.mrf.mxu0
      %v843 = vadd.f32 %v730, %v842
      %844 = vmatmul.f32.gmra.mxu0 %v538
      %v845 = vpop.f32.mrf.mxu0
      %v846 = vadd.f32 %v733, %v845
      %847 = vmatmul.f32.gmra.mxu0 %v542
      %v848 = vpop.f32.mrf.mxu0
      %v849 = vadd.f32 %v736, %v848
      %850 = vmatmul.f32.gmra.mxu0 %v546
      %v851 = vpop.f32.mrf.mxu0
      %v852 = vadd.f32 %v739, %v851
      %853 = vmatmul.f32.gmra.mxu0 %v550
      %v854 = vpop.f32.mrf.mxu0
      %v855 = vadd.f32 %v742, %v854
      %856 = vmatmul.f32.gmra.mxu0 %v554
      %v857 = vpop.f32.mrf.mxu0
      %v858 = vadd.f32 %v745, %v857
      %859 = vmatmul.f32.gmra.mxu0 %v558
      %v860 = vpop.f32.mrf.mxu0
      %v861 = vadd.f32 %v748, %v860
      %862 = vmatmul.f32.gmra.mxu0 %v562
      %v863 = vpop.f32.mrf.mxu0
      %v864 = vadd.f32 %v751, %v863
      %865 = vmatmul.f32.gmra.mxu0 %v566
      %v866 = vpop.f32.mrf.mxu0
      %v867 = vadd.f32 %v754, %v866
      %868 = vmatmul.f32.gmra.mxu0 %v570
      %v869 = vpop.f32.mrf.mxu0
      %v870 = vadd.f32 %v757, %v869
      %871 = vmatmul.f32.gmra.mxu0 %v574
      %v872 = vpop.f32.mrf.mxu0
      %v873 = vadd.f32 %v760, %v872
      %874 = vmatmul.f32.gmra.mxu0 %v578
      %v875 = vpop.f32.mrf.mxu0
      %v876 = vadd.f32 %v763, %v875
      %877 = vmatmul.f32.gmra.mxu0 %v582
      %v878 = vpop.f32.mrf.mxu0
      %v879 = vadd.f32 %v766, %v878
      %880 = vmatmul.f32.gmra.mxu0 %v586
      %v881 = vpop.f32.mrf.mxu0
      %v882 = vadd.f32 %v769, %v881
      %883 = vmatmul.f32.gmra.mxu0 %v590
      %v884 = vpop.f32.mrf.mxu0
      %v885 = vadd.f32 %v772, %v884
      %886 = vmatmul.f32.gmra.mxu0 %v594
      %v887 = vpop.f32.mrf.mxu0
      %v888 = vadd.f32 %v775, %v887
      %889 = vmatmul.f32.gmra.mxu0 %v598
      %v890 = vpop.f32.mrf.mxu0
      %v891 = vadd.f32 %v778, %v890
      %892 = vmatmul.f32.gmra.mxu0 %v602
      %v893 = vpop.f32.mrf.mxu0
      %v894 = vadd.f32 %v781, %v893
      %895 = vmatmul.f32.gmra.mxu0 %v606
      %v896 = vpop.f32.mrf.mxu0
      %v897 = vadd.f32 %v784, %v896
      %898 = vdwg.mxu0
      %899 = vmatpush.msra.mxu0 %v656
      %900 = vmatpush.msra.mxu0 %v655
      %901 = vmatpush.msra.mxu0 %v654
      %902 = vmatpush.msra.mxu0 %v653
      %903 = vmatpush.msra.mxu0 %v652
      %904 = vmatpush.msra.mxu0 %v651
      %905 = vmatpush.msra.mxu0 %v650
      %906 = vmatpush.msra.mxu0 %v649
      %907 = vmatpush.msra.mxu0 %v648
      %908 = vmatpush.msra.mxu0 %v647
      %909 = vmatpush.msra.mxu0 %v646
      %910 = vmatpush.msra.mxu0 %v645
      %911 = vmatpush.msra.mxu0 %v644
      %912 = vmatpush.msra.mxu0 %v643
      %913 = vmatpush.msra.mxu0 %v642
      %914 = vmatpush.msra.mxu0 %v641
      %915 = vmatmul.f32.gmra.mxu0 %v483
      %v916 = vpop.f32.mrf.mxu0
      %v917 = vadd.f32 %v804, %v916
      %918 = vmatmul.f32.gmra.mxu0 %v487
      %v919 = vpop.f32.mrf.mxu0
      %v920 = vadd.f32 %v807, %v919
      %921 = vmatmul.f32.gmra.mxu0 %v491
      %v922 = vpop.f32.mrf.mxu0
      %v923 = vadd.f32 %v810, %v922
      %924 = vmatmul.f32.gmra.mxu0 %v495
      %v925 = vpop.f32.mrf.mxu0
      %v926 = vadd.f32 %v813, %v925
      %927 = vmatmul.f32.gmra.mxu0 %v499
      %v928 = vpop.f32.mrf.mxu0
      %v929 = vadd.f32 %v816, %v928
      %930 = vmatmul.f32.gmra.mxu0 %v503
      %v931 = vpop.f32.mrf.mxu0
      %v932 = vadd.f32 %v819, %v931
      %933 = vmatmul.f32.gmra.mxu0 %v507
      %v934 = vpop.f32.mrf.mxu0
      %v935 = vadd.f32 %v822, %v934
      %936 = vmatmul.f32.gmra.mxu0 %v511
      %v937 = vpop.f32.mrf.mxu0
      %v938 = vadd.f32 %v825, %v937
      %939 = vmatmul.f32.gmra.mxu0 %v515
      %v940 = vpop.f32.mrf.mxu0
      %v941 = vadd.f32 %v828, %v940
      %942 = vmatmul.f32.gmra.mxu0 %v519
      %v943 = vpop.f32.mrf.mxu0
      %v944 = vadd.f32 %v831, %v943
      %945 = vmatmul.f32.gmra.mxu0 %v523
      %v946 = vpop.f32.mrf.mxu0
      %v947 = vadd.f32 %v834, %v946
      %948 = vmatmul.f32.gmra.mxu0 %v527
      %v949 = vpop.f32.mrf.mxu0
      %v950 = vadd.f32 %v837, %v949
      %951 = vmatmul.f32.gmra.mxu0 %v531
      %v952 = vpop.f32.mrf.mxu0
      %v953 = vadd.f32 %v840, %v952
      %954 = vmatmul.f32.gmra.mxu0 %v535
      %v955 = vpop.f32.mrf.mxu0
      %v956 = vadd.f32 %v843, %v955
      %957 = vmatmul.f32.gmra.mxu0 %v539
      %v958 = vpop.f32.mrf.mxu0
      %v959 = vadd.f32 %v846, %v958
      %960 = vmatmul.f32.gmra.mxu0 %v543
      %v961 = vpop.f32.mrf.mxu0
      %v962 = vadd.f32 %v849, %v961
      %963 = vmatmul.f32.gmra.mxu0 %v547
      %v964 = vpop.f32.mrf.mxu0
      %v965 = vadd.f32 %v852, %v964
      %966 = vmatmul.f32.gmra.mxu0 %v551
      %v967 = vpop.f32.mrf.mxu0
      %v968 = vadd.f32 %v855, %v967
      %969 = vmatmul.f32.gmra.mxu0 %v555
      %v970 = vpop.f32.mrf.mxu0
      %v971 = vadd.f32 %v858, %v970
      %972 = vmatmul.f32.gmra.mxu0 %v559
      %v973 = vpop.f32.mrf.mxu0
      %v974 = vadd.f32 %v861, %v973
      %975 = vmatmul.f32.gmra.mxu0 %v563
      %v976 = vpop.f32.mrf.mxu0
      %v977 = vadd.f32 %v864, %v976
      %978 = vmatmul.f32.gmra.mxu0 %v567
      %v979 = vpop.f32.mrf.mxu0
      %v980 = vadd.f32 %v867, %v979
      %981 = vmatmul.f32.gmra.mxu0 %v571
      %v982 = vpop.f32.mrf.mxu0
      %v983 = vadd.f32 %v870, %v982
      %984 = vmatmul.f32.gmra.mxu0 %v575
      %v985 = vpop.f32.mrf.mxu0
      %v986 = vadd.f32 %v873, %v985
      %987 = vmatmul.f32.gmra.mxu0 %v579
      %v988 = vpop.f32.mrf.mxu0
      %v989 = vadd.f32 %v876, %v988
      %990 = vmatmul.f32.gmra.mxu0 %v583
      %v991 = vpop.f32.mrf.mxu0
      %v992 = vadd.f32 %v879, %v991
      %993 = vmatmul.f32.gmra.mxu0 %v587
      %v994 = vpop.f32.mrf.mxu0
      %v995 = vadd.f32 %v882, %v994
      %996 = vmatmul.f32.gmra.mxu0 %v591
      %v997 = vpop.f32.mrf.mxu0
      %v998 = vadd.f32 %v885, %v997
      %999 = vmatmul.f32.gmra.mxu0 %v595
      %v1000 = vpop.f32.mrf.mxu0
      %v1001 = vadd.f32 %v888, %v1000
      %1002 = vmatmul.f32.gmra.mxu0 %v599
      %v1003 = vpop.f32.mrf.mxu0
      %v1004 = vadd.f32 %v891, %v1003
      %1005 = vmatmul.f32.gmra.mxu0 %v603
      %v1006 = vpop.f32.mrf.mxu0
      %v1007 = vadd.f32 %v894, %v1006
      %1008 = vmatmul.f32.gmra.mxu0 %v607
      %v1009 = vpop.f32.mrf.mxu0
      %v1010 = vadd.f32 %v897, %v1009
      %1011 = vdwg.mxu0
      %1012 = vmatpush.msra.mxu0 %v672
      %1013 = vmatpush.msra.mxu0 %v671
      %1014 = vmatpush.msra.mxu0 %v670
      %1015 = vmatpush.msra.mxu0 %v669
      %1016 = vmatpush.msra.mxu0 %v668
      %1017 = vmatpush.msra.mxu0 %v667
      %1018 = vmatpush.msra.mxu0 %v666
      %1019 = vmatpush.msra.mxu0 %v665
      %1020 = vmatpush.msra.mxu0 %v664
      %1021 = vmatpush.msra.mxu0 %v663
      %1022 = vmatpush.msra.mxu0 %v662
      %1023 = vmatpush.msra.mxu0 %v661
      %1024 = vmatpush.msra.mxu0 %v660
      %1025 = vmatpush.msra.mxu0 %v659
      %1026 = vmatpush.msra.mxu0 %v658
      %1027 = vmatpush.msra.mxu0 %v657
      %1028 = vmatmul.f32.gmra.mxu0 %v484
      %v1029 = vpop.f32.mrf.mxu0
      %v1030 = vadd.f32 %v917, %v1029
      %1031 = vmatmul.f32.gmra.mxu0 %v488
      %v1032 = vpop.f32.mrf.mxu0
      %v1033 = vadd.f32 %v920, %v1032
      %1034 = vmatmul.f32.gmra.mxu0 %v492
      %v1035 = vpop.f32.mrf.mxu0
      %v1036 = vadd.f32 %v923, %v1035
      %1037 = vmatmul.f32.gmra.mxu0 %v496
      %v1038 = vpop.f32.mrf.mxu0
      %v1039 = vadd.f32 %v926, %v1038
      %1040 = vmatmul.f32.gmra.mxu0 %v500
      %v1041 = vpop.f32.mrf.mxu0
      %v1042 = vadd.f32 %v929, %v1041
      %1043 = vmatmul.f32.gmra.mxu0 %v504
      %v1044 = vpop.f32.mrf.mxu0
      %v1045 = vadd.f32 %v932, %v1044
      %1046 = vmatmul.f32.gmra.mxu0 %v508
      %v1047 = vpop.f32.mrf.mxu0
      %v1048 = vadd.f32 %v935, %v1047
      %1049 = vmatmul.f32.gmra.mxu0 %v512
      %v1050 = vpop.f32.mrf.mxu0
      %v1051 = vadd.f32 %v938, %v1050
      %1052 = vmatmul.f32.gmra.mxu0 %v516
      %v1053 = vpop.f32.mrf.mxu0
      %v1054 = vadd.f32 %v941, %v1053
      %1055 = vmatmul.f32.gmra.mxu0 %v520
      %v1056 = vpop.f32.mrf.mxu0
      %v1057 = vadd.f32 %v944, %v1056
      %1058 = vmatmul.f32.gmra.mxu0 %v524
      %v1059 = vpop.f32.mrf.mxu0
      %v1060 = vadd.f32 %v947, %v1059
      %1061 = vmatmul.f32.gmra.mxu0 %v528
      %v1062 = vpop.f32.mrf.mxu0
      %v1063 = vadd.f32 %v950, %v1062
      %1064 = vmatmul.f32.gmra.mxu0 %v532
      %v1065 = vpop.f32.mrf.mxu0
      %v1066 = vadd.f32 %v953, %v1065
      %1067 = vmatmul.f32.gmra.mxu0 %v536
      %v1068 = vpop.f32.mrf.mxu0
      %v1069 = vadd.f32 %v956, %v1068
      %1070 = vmatmul.f32.gmra.mxu0 %v540
      %v1071 = vpop.f32.mrf.mxu0
      %v1072 = vadd.f32 %v959, %v1071
      %1073 = vmatmul.f32.gmra.mxu0 %v544
      %v1074 = vpop.f32.mrf.mxu0
      %v1075 = vadd.f32 %v962, %v1074
      %1076 = vmatmul.f32.gmra.mxu0 %v548
      %v1077 = vpop.f32.mrf.mxu0
      %v1078 = vadd.f32 %v965, %v1077
      %1079 = vmatmul.f32.gmra.mxu0 %v552
      %v1080 = vpop.f32.mrf.mxu0
      %v1081 = vadd.f32 %v968, %v1080
      %1082 = vmatmul.f32.gmra.mxu0 %v556
      %v1083 = vpop.f32.mrf.mxu0
      %v1084 = vadd.f32 %v971, %v1083
      %1085 = vmatmul.f32.gmra.mxu0 %v560
      %v1086 = vpop.f32.mrf.mxu0
      %v1087 = vadd.f32 %v974, %v1086
      %1088 = vmatmul.f32.gmra.mxu0 %v564
      %v1089 = vpop.f32.mrf.mxu0
      %v1090 = vadd.f32 %v977, %v1089
      %1091 = vmatmul.f32.gmra.mxu0 %v568
      %v1092 = vpop.f32.mrf.mxu0
      %v1093 = vadd.f32 %v980, %v1092
      %1094 = vmatmul.f32.gmra.mxu0 %v572
      %v1095 = vpop.f32.mrf.mxu0
      %v1096 = vadd.f32 %v983, %v1095
      %1097 = vmatmul.f32.gmra.mxu0 %v576
      %v1098 = vpop.f32.mrf.mxu0
      %v1099 = vadd.f32 %v986, %v1098
      %1100 = vmatmul.f32.gmra.mxu0 %v580
      %v1101 = vpop.f32.mrf.mxu0
      %v1102 = vadd.f32 %v989, %v1101
      %1103 = vmatmul.f32.gmra.mxu0 %v584
      %v1104 = vpop.f32.mrf.mxu0
      %v1105 = vadd.f32 %v992, %v1104
      %1106 = vmatmul.f32.gmra.mxu0 %v588
      %v1107 = vpop.f32.mrf.mxu0
      %v1108 = vadd.f32 %v995, %v1107
      %1109 = vmatmul.f32.gmra.mxu0 %v592
      %v1110 = vpop.f32.mrf.mxu0
      %v1111 = vadd.f32 %v998, %v1110
      %1112 = vmatmul.f32.gmra.mxu0 %v596
      %v1113 = vpop.f32.mrf.mxu0
      %v1114 = vadd.f32 %v1001, %v1113
      %1115 = vmatmul.f32.gmra.mxu0 %v600
      %v1116 = vpop.f32.mrf.mxu0
      %v1117 = vadd.f32 %v1004, %v1116
      %1118 = vmatmul.f32.gmra.mxu0 %v604
      %v1119 = vpop.f32.mrf.mxu0
      %v1120 = vadd.f32 %v1007, %v1119
      %1121 = vmatmul.f32.gmra.mxu0 %v608
      %v1122 = vpop.f32.mrf.mxu0
      %v1123 = vadd.f32 %v1010, %v1122
      %1124 = vdwg.mxu0
      %s1125 = scalar_lea.vmem [#allocation2], 24
      %1126 = vst.msk [vmem:[%s1125 + $0x1] sm:$0xff] %vm357, %v1030
      %1127 = vst.msk [vmem:[%s1125 + $0x9] sm:$0xff] %vm357, %v1033
      %1128 = vst.msk [vmem:[%s1125 + $0x19] sm:$0xff] %vm357, %v1036
      %1129 = vst.msk [vmem:[%s1125 + $0x21] sm:$0xff] %vm357, %v1039
      %1130 = vst.msk [vmem:[%s1125 + $0x31] sm:$0xff] %vm357, %v1042
      %1131 = vst.msk [vmem:[%s1125 + $0x39] sm:$0xff] %vm357, %v1045
      %1132 = vst.msk [vmem:[%s1125 + $0x49] sm:$0xff] %vm357, %v1048
      %1133 = vst.msk [vmem:[%s1125 + $0x51] sm:$0xff] %vm357, %v1051
      %1134 = vst.msk [vmem:[%s1125 + $0x61] sm:$0xff] %vm357, %v1054
      %1135 = vst.msk [vmem:[%s1125 + $0x69] sm:$0xff] %vm357, %v1057
      %1136 = vst.msk [vmem:[%s1125 + $0x79] sm:$0xff] %vm357, %v1060
      %1137 = vst.msk [vmem:[%s1125 + $0x81] sm:$0xff] %vm357, %v1063
      %1138 = vst.msk [vmem:[%s1125 + $0x91] sm:$0xff] %vm357, %v1066
      %1139 = vst.msk [vmem:[%s1125 + $0x99] sm:$0xff] %vm357, %v1069
      %1140 = vst.msk [vmem:[%s1125 + $0xa9] sm:$0xff] %vm357, %v1072
      %1141 = vst.msk [vmem:[%s1125 + $0xb1] sm:$0xff] %vm357, %v1075
      %1142 = vst.msk [vmem:[%s1125 + $0xf1] sm:$0xff] %vm357, %v1078
      %1143 = vst.msk [vmem:[%s1125 + $0xf9] sm:$0xff] %vm357, %v1081
      %1144 = vst.msk [vmem:[%s1125 + $0x109] sm:$0xff] %vm357, %v1084
      %1145 = vst.msk [vmem:[%s1125 + $0x111] sm:$0xff] %vm357, %v1087
      %1146 = vst.msk [vmem:[%s1125 + $0x121] sm:$0xff] %vm357, %v1090
      %1147 = vst.msk [vmem:[%s1125 + $0x129] sm:$0xff] %vm357, %v1093
      %1148 = vst.msk [vmem:[%s1125 + $0x139] sm:$0xff] %vm357, %v1096
      %1149 = vst.msk [vmem:[%s1125 + $0x141] sm:$0xff] %vm357, %v1099
      %1150 = vst.msk [vmem:[%s1125 + $0x151] sm:$0xff] %vm357, %v1102
      %1151 = vst.msk [vmem:[%s1125 + $0x159] sm:$0xff] %vm357, %v1105
      %1152 = vst.msk [vmem:[%s1125 + $0x169] sm:$0xff] %vm357, %v1108
      %1153 = vst.msk [vmem:[%s1125 + $0x171] sm:$0xff] %vm357, %v1111
      %1154 = vst.msk [vmem:[%s1125 + $0x181] sm:$0xff] %vm357, %v1114
      %1155 = vst.msk [vmem:[%s1125 + $0x189] sm:$0xff] %vm357, %v1117
      %1156 = vst.msk [vmem:[%s1125 + $0x199] sm:$0xff] %vm357, %v1120
      %1157 = vst.msk [vmem:[%s1125 + $0x1a1] sm:$0xff] %vm357, %v1123
      %v1158 = vld [vmem:[#allocation2] sm:$0xff]
      %v1159 = vld [vmem:[#allocation2 + $0x8] sm:$0xff]
      %v1160 = vld [vmem:[#allocation2 + $0x18] sm:$0xff]
      %v1161 = vld [vmem:[#allocation2 + $0x20] sm:$0xff]
      %v1162 = vld [vmem:[#allocation2 + $0x30] sm:$0xff]
      %v1163 = vld [vmem:[#allocation2 + $0x38] sm:$0xff]
      %v1164 = vld [vmem:[#allocation2 + $0x48] sm:$0xff]
      %v1165 = vld [vmem:[#allocation2 + $0x50] sm:$0xff]
      %v1166 = vld [vmem:[#allocation2 + $0x60] sm:$0xff]
      %v1167 = vld [vmem:[#allocation2 + $0x68] sm:$0xff]
      %v1168 = vld [vmem:[#allocation2 + $0x78] sm:$0xff]
      %v1169 = vld [vmem:[#allocation2 + $0x80] sm:$0xff]
      %v1170 = vld [vmem:[#allocation2 + $0x90] sm:$0xff]
      %v1171 = vld [vmem:[#allocation2 + $0x98] sm:$0xff]
      %v1172 = vld [vmem:[#allocation2 + $0xa8] sm:$0xff]
      %v1173 = vld [vmem:[#allocation2 + $0xb0] sm:$0xff]
      %v1174 = vld [vmem:[#allocation2 + $0xf0] sm:$0xff]
      %v1175 = vld [vmem:[#allocation2 + $0xf8] sm:$0xff]
      %v1176 = vld [vmem:[#allocation2 + $0x108] sm:$0xff]
      %v1177 = vld [vmem:[#allocation2 + $0x110] sm:$0xff]
      %v1178 = vld [vmem:[#allocation2 + $0x120] sm:$0xff]
      %v1179 = vld [vmem:[#allocation2 + $0x128] sm:$0xff]
      %v1180 = vld [vmem:[#allocation2 + $0x138] sm:$0xff]
      %v1181 = vld [vmem:[#allocation2 + $0x140] sm:$0xff]
      %v1182 = vld [vmem:[#allocation2 + $0x150] sm:$0xff]
      %v1183 = vld [vmem:[#allocation2 + $0x158] sm:$0xff]
      %v1184 = vld [vmem:[#allocation2 + $0x168] sm:$0xff]
      %v1185 = vld [vmem:[#allocation2 + $0x170] sm:$0xff]
      %v1186 = vld [vmem:[#allocation2 + $0x180] sm:$0xff]
      %v1187 = vld [vmem:[#allocation2 + $0x188] sm:$0xff]
      %v1188 = vld [vmem:[#allocation2 + $0x198] sm:$0xff]
      %v1189 = vld [vmem:[#allocation2 + $0x1a0] sm:$0xff]
      %1190 = vst.msk [vmem:[#allocation4] sm:$0xff] %vm357, %v1158
      %1191 = vst.msk [vmem:[#allocation4 + $0x8] sm:$0xff] %vm357, %v1159
      %1192 = vst.msk [vmem:[#allocation4 + $0x10] sm:$0xff] %vm357, %v1160
      %1193 = vst.msk [vmem:[#allocation4 + $0x18] sm:$0xff] %vm357, %v1161
      %1194 = vst.msk [vmem:[#allocation4 + $0x20] sm:$0xff] %vm357, %v1162
      %1195 = vst.msk [vmem:[#allocation4 + $0x28] sm:$0xff] %vm357, %v1163
      %1196 = vst.msk [vmem:[#allocation4 + $0x30] sm:$0xff] %vm357, %v1164
      %1197 = vst.msk [vmem:[#allocation4 + $0x38] sm:$0xff] %vm357, %v1165
      %1198 = vst.msk [vmem:[#allocation4 + $0x40] sm:$0xff] %vm357, %v1166
      %1199 = vst.msk [vmem:[#allocation4 + $0x48] sm:$0xff] %vm357, %v1167
      %1200 = vst.msk [vmem:[#allocation4 + $0x50] sm:$0xff] %vm357, %v1168
      %1201 = vst.msk [vmem:[#allocation4 + $0x58] sm:$0xff] %vm357, %v1169
      %1202 = vst.msk [vmem:[#allocation4 + $0x60] sm:$0xff] %vm357, %v1170
      %1203 = vst.msk [vmem:[#allocation4 + $0x68] sm:$0xff] %vm357, %v1171
      %1204 = vst.msk [vmem:[#allocation4 + $0x70] sm:$0xff] %vm357, %v1172
      %1205 = vst.msk [vmem:[#allocation4 + $0x78] sm:$0xff] %vm357, %v1173
      %1206 = vst.msk [vmem:[#allocation4 + $0x80] sm:$0xff] %vm357, %v1174
      %1207 = vst.msk [vmem:[#allocation4 + $0x88] sm:$0xff] %vm357, %v1175
      %1208 = vst.msk [vmem:[#allocation4 + $0x90] sm:$0xff] %vm357, %v1176
      %1209 = vst.msk [vmem:[#allocation4 + $0x98] sm:$0xff] %vm357, %v1177
      %1210 = vst.msk [vmem:[#allocation4 + $0xa0] sm:$0xff] %vm357, %v1178
      %1211 = vst.msk [vmem:[#allocation4 + $0xa8] sm:$0xff] %vm357, %v1179
      %1212 = vst.msk [vmem:[#allocation4 + $0xb0] sm:$0xff] %vm357, %v1180
      %1213 = vst.msk [vmem:[#allocation4 + $0xb8] sm:$0xff] %vm357, %v1181
      %1214 = vst.msk [vmem:[#allocation4 + $0xc0] sm:$0xff] %vm357, %v1182
      %1215 = vst.msk [vmem:[#allocation4 + $0xc8] sm:$0xff] %vm357, %v1183
      %1216 = vst.msk [vmem:[#allocation4 + $0xd0] sm:$0xff] %vm357, %v1184
      %1217 = vst.msk [vmem:[#allocation4 + $0xd8] sm:$0xff] %vm357, %v1185
      %1218 = vst.msk [vmem:[#allocation4 + $0xe0] sm:$0xff] %vm357, %v1186
      %1219 = vst.msk [vmem:[#allocation4 + $0xe8] sm:$0xff] %vm357, %v1187
      %1220 = vst.msk [vmem:[#allocation4 + $0xf0] sm:$0xff] %vm357, %v1188
      %1221 = vst.msk [vmem:[#allocation4 + $0xf8] sm:$0xff] %vm357, %v1189
      %v1222 = vld [vmem:[#allocation2 + $0x1] sm:$0xff]
      %v1223 = vld [vmem:[#allocation2 + $0x9] sm:$0xff]
      %v1224 = vld [vmem:[#allocation2 + $0x19] sm:$0xff]
      %v1225 = vld [vmem:[#allocation2 + $0x21] sm:$0xff]
      %v1226 = vld [vmem:[#allocation2 + $0x31] sm:$0xff]
      %v1227 = vld [vmem:[#allocation2 + $0x39] sm:$0xff]
      %v1228 = vld [vmem:[#allocation2 + $0x49] sm:$0xff]
      %v1229 = vld [vmem:[#allocation2 + $0x51] sm:$0xff]
      %v1230 = vld [vmem:[#allocation2 + $0x61] sm:$0xff]
      %v1231 = vld [vmem:[#allocation2 + $0x69] sm:$0xff]
      %v1232 = vld [vmem:[#allocation2 + $0x79] sm:$0xff]
      %v1233 = vld [vmem:[#allocation2 + $0x81] sm:$0xff]
      %v1234 = vld [vmem:[#allocation2 + $0x91] sm:$0xff]
      %v1235 = vld [vmem:[#allocation2 + $0x99] sm:$0xff]
      %v1236 = vld [vmem:[#allocation2 + $0xa9] sm:$0xff]
      %v1237 = vld [vmem:[#allocation2 + $0xb1] sm:$0xff]
      %v1238 = vld [vmem:[#allocation2 + $0xf1] sm:$0xff]
      %v1239 = vld [vmem:[#allocation2 + $0xf9] sm:$0xff]
      %v1240 = vld [vmem:[#allocation2 + $0x109] sm:$0xff]
      %v1241 = vld [vmem:[#allocation2 + $0x111] sm:$0xff]
      %v1242 = vld [vmem:[#allocation2 + $0x121] sm:$0xff]
      %v1243 = vld [vmem:[#allocation2 + $0x129] sm:$0xff]
      %v1244 = vld [vmem:[#allocation2 + $0x139] sm:$0xff]
      %v1245 = vld [vmem:[#allocation2 + $0x141] sm:$0xff]
      %v1246 = vld [vmem:[#allocation2 + $0x151] sm:$0xff]
      %v1247 = vld [vmem:[#allocation2 + $0x159] sm:$0xff]
      %v1248 = vld [vmem:[#allocation2 + $0x169] sm:$0xff]
      %v1249 = vld [vmem:[#allocation2 + $0x171] sm:$0xff]
      %v1250 = vld [vmem:[#allocation2 + $0x181] sm:$0xff]
      %v1251 = vld [vmem:[#allocation2 + $0x189] sm:$0xff]
      %v1252 = vld [vmem:[#allocation2 + $0x199] sm:$0xff]
      %v1253 = vld [vmem:[#allocation2 + $0x1a1] sm:$0xff]
      %1286 = vrot.lane.b32.xlu0 %v1222, 4
      %v1287 = vpop.permute.xlu0 %1286
      %1288 = vrot.lane.b32.xlu0 %v1223, 4
      %v1289 = vpop.permute.xlu0 %1288
      %1290 = vrot.lane.b32.xlu0 %v1224, 4
      %v1291 = vpop.permute.xlu0 %1290
      %1292 = vrot.lane.b32.xlu0 %v1225, 4
      %v1293 = vpop.permute.xlu0 %1292
      %1294 = vrot.lane.b32.xlu0 %v1226, 4
      %v1295 = vpop.permute.xlu0 %1294
      %1296 = vrot.lane.b32.xlu0 %v1227, 4
      %v1297 = vpop.permute.xlu0 %1296
      %1298 = vrot.lane.b32.xlu0 %v1228, 4
      %v1299 = vpop.permute.xlu0 %1298
      %1300 = vrot.lane.b32.xlu0 %v1229, 4
      %v1301 = vpop.permute.xlu0 %1300
      %1302 = vrot.lane.b32.xlu0 %v1230, 4
      %v1303 = vpop.permute.xlu0 %1302
      %1304 = vrot.lane.b32.xlu0 %v1231, 4
      %v1305 = vpop.permute.xlu0 %1304
      %1306 = vrot.lane.b32.xlu0 %v1232, 4
      %v1307 = vpop.permute.xlu0 %1306
      %1308 = vrot.lane.b32.xlu0 %v1233, 4
      %v1309 = vpop.permute.xlu0 %1308
      %1310 = vrot.lane.b32.xlu0 %v1234, 4
      %v1311 = vpop.permute.xlu0 %1310
      %1312 = vrot.lane.b32.xlu0 %v1235, 4
      %v1313 = vpop.permute.xlu0 %1312
      %1314 = vrot.lane.b32.xlu0 %v1236, 4
      %v1315 = vpop.permute.xlu0 %1314
      %1316 = vrot.lane.b32.xlu0 %v1237, 4
      %v1317 = vpop.permute.xlu0 %1316
      %1318 = vrot.lane.b32.xlu0 %v1238, 4
      %v1319 = vpop.permute.xlu0 %1318
      %1320 = vrot.lane.b32.xlu0 %v1239, 4
      %v1321 = vpop.permute.xlu0 %1320
      %1322 = vrot.lane.b32.xlu0 %v1240, 4
      %v1323 = vpop.permute.xlu0 %1322
      %1324 = vrot.lane.b32.xlu0 %v1241, 4
      %v1325 = vpop.permute.xlu0 %1324
      %1326 = vrot.lane.b32.xlu0 %v1242, 4
      %v1327 = vpop.permute.xlu0 %1326
      %1328 = vrot.lane.b32.xlu0 %v1243, 4
      %v1329 = vpop.permute.xlu0 %1328
      %1330 = vrot.lane.b32.xlu0 %v1244, 4
      %v1331 = vpop.permute.xlu0 %1330
      %1332 = vrot.lane.b32.xlu0 %v1245, 4
      %v1333 = vpop.permute.xlu0 %1332
      %1334 = vrot.lane.b32.xlu0 %v1246, 4
      %v1335 = vpop.permute.xlu0 %1334
      %1336 = vrot.lane.b32.xlu0 %v1247, 4
      %v1337 = vpop.permute.xlu0 %1336
      %1338 = vrot.lane.b32.xlu0 %v1248, 4
      %v1339 = vpop.permute.xlu0 %1338
      %1340 = vrot.lane.b32.xlu0 %v1249, 4
      %v1341 = vpop.permute.xlu0 %1340
      %1342 = vrot.lane.b32.xlu0 %v1250, 4
      %v1343 = vpop.permute.xlu0 %1342
      %1344 = vrot.lane.b32.xlu0 %v1251, 4
      %v1345 = vpop.permute.xlu0 %1344
      %1346 = vrot.lane.b32.xlu0 %v1252, 4
      %v1347 = vpop.permute.xlu0 %1346
      %1348 = vrot.lane.b32.xlu0 %v1253, 4
      %v1349 = vpop.permute.xlu0 %1348
      %vm1382 = vcmask 64544
      %1383 = vst.msk [vmem:[#allocation4] sm:$0xff] %vm1382, %v1287
      %1384 = vst.msk [vmem:[#allocation4 + $0x8] sm:$0xff] %vm1382, %v1289
      %1385 = vst.msk [vmem:[#allocation4 + $0x10] sm:$0xff] %vm1382, %v1291
      %1386 = vst.msk [vmem:[#allocation4 + $0x18] sm:$0xff] %vm1382, %v1293
      %1387 = vst.msk [vmem:[#allocation4 + $0x20] sm:$0xff] %vm1382, %v1295
      %1388 = vst.msk [vmem:[#allocation4 + $0x28] sm:$0xff] %vm1382, %v1297
      %1389 = vst.msk [vmem:[#allocation4 + $0x30] sm:$0xff] %vm1382, %v1299
      %1390 = vst.msk [vmem:[#allocation4 + $0x38] sm:$0xff] %vm1382, %v1301
      %1391 = vst.msk [vmem:[#allocation4 + $0x40] sm:$0xff] %vm1382, %v1303
      %1392 = vst.msk [vmem:[#allocation4 + $0x48] sm:$0xff] %vm1382, %v1305
      %1393 = vst.msk [vmem:[#allocation4 + $0x50] sm:$0xff] %vm1382, %v1307
      %1394 = vst.msk [vmem:[#allocation4 + $0x58] sm:$0xff] %vm1382, %v1309
      %1395 = vst.msk [vmem:[#allocation4 + $0x60] sm:$0xff] %vm1382, %v1311
      %1396 = vst.msk [vmem:[#allocation4 + $0x68] sm:$0xff] %vm1382, %v1313
      %1397 = vst.msk [vmem:[#allocation4 + $0x70] sm:$0xff] %vm1382, %v1315
      %1398 = vst.msk [vmem:[#allocation4 + $0x78] sm:$0xff] %vm1382, %v1317
      %1399 = vst.msk [vmem:[#allocation4 + $0x80] sm:$0xff] %vm1382, %v1319
      %1400 = vst.msk [vmem:[#allocation4 + $0x88] sm:$0xff] %vm1382, %v1321
      %1401 = vst.msk [vmem:[#allocation4 + $0x90] sm:$0xff] %vm1382, %v1323
      %1402 = vst.msk [vmem:[#allocation4 + $0x98] sm:$0xff] %vm1382, %v1325
      %1403 = vst.msk [vmem:[#allocation4 + $0xa0] sm:$0xff] %vm1382, %v1327
      %1404 = vst.msk [vmem:[#allocation4 + $0xa8] sm:$0xff] %vm1382, %v1329
      %1405 = vst.msk [vmem:[#allocation4 + $0xb0] sm:$0xff] %vm1382, %v1331
      %1406 = vst.msk [vmem:[#allocation4 + $0xb8] sm:$0xff] %vm1382, %v1333
      %1407 = vst.msk [vmem:[#allocation4 + $0xc0] sm:$0xff] %vm1382, %v1335
      %1408 = vst.msk [vmem:[#allocation4 + $0xc8] sm:$0xff] %vm1382, %v1337
      %1409 = vst.msk [vmem:[#allocation4 + $0xd0] sm:$0xff] %vm1382, %v1339
      %1410 = vst.msk [vmem:[#allocation4 + $0xd8] sm:$0xff] %vm1382, %v1341
      %1411 = vst.msk [vmem:[#allocation4 + $0xe0] sm:$0xff] %vm1382, %v1343
      %1412 = vst.msk [vmem:[#allocation4 + $0xe8] sm:$0xff] %vm1382, %v1345
      %1413 = vst.msk [vmem:[#allocation4 + $0xf0] sm:$0xff] %vm1382, %v1347
      %1414 = vst.msk [vmem:[#allocation4 + $0xf8] sm:$0xff] %vm1382, %v1349
      %v1415 = vld [vmem:[#allocation2 + $0x2] sm:$0xff]
      %v1416 = vld [vmem:[#allocation2 + $0xa] sm:$0xff]
      %v1417 = vld [vmem:[#allocation2 + $0x1a] sm:$0xff]
      %v1418 = vld [vmem:[#allocation2 + $0x22] sm:$0xff]
      %v1419 = vld [vmem:[#allocation2 + $0x32] sm:$0xff]
      %v1420 = vld [vmem:[#allocation2 + $0x3a] sm:$0xff]
      %v1421 = vld [vmem:[#allocation2 + $0x4a] sm:$0xff]
      %v1422 = vld [vmem:[#allocation2 + $0x52] sm:$0xff]
      %v1423 = vld [vmem:[#allocation2 + $0x62] sm:$0xff]
      %v1424 = vld [vmem:[#allocation2 + $0x6a] sm:$0xff]
      %v1425 = vld [vmem:[#allocation2 + $0x7a] sm:$0xff]
      %v1426 = vld [vmem:[#allocation2 + $0x82] sm:$0xff]
      %v1427 = vld [vmem:[#allocation2 + $0x92] sm:$0xff]
      %v1428 = vld [vmem:[#allocation2 + $0x9a] sm:$0xff]
      %v1429 = vld [vmem:[#allocation2 + $0xaa] sm:$0xff]
      %v1430 = vld [vmem:[#allocation2 + $0xb2] sm:$0xff]
      %v1431 = vld [vmem:[#allocation2 + $0xf2] sm:$0xff]
      %v1432 = vld [vmem:[#allocation2 + $0xfa] sm:$0xff]
      %v1433 = vld [vmem:[#allocation2 + $0x10a] sm:$0xff]
      %v1434 = vld [vmem:[#allocation2 + $0x112] sm:$0xff]
      %v1435 = vld [vmem:[#allocation2 + $0x122] sm:$0xff]
      %v1436 = vld [vmem:[#allocation2 + $0x12a] sm:$0xff]
      %v1437 = vld [vmem:[#allocation2 + $0x13a] sm:$0xff]
      %v1438 = vld [vmem:[#allocation2 + $0x142] sm:$0xff]
      %v1439 = vld [vmem:[#allocation2 + $0x152] sm:$0xff]
      %v1440 = vld [vmem:[#allocation2 + $0x15a] sm:$0xff]
      %v1441 = vld [vmem:[#allocation2 + $0x16a] sm:$0xff]
      %v1442 = vld [vmem:[#allocation2 + $0x172] sm:$0xff]
      %v1443 = vld [vmem:[#allocation2 + $0x182] sm:$0xff]
      %v1444 = vld [vmem:[#allocation2 + $0x18a] sm:$0xff]
      %v1445 = vld [vmem:[#allocation2 + $0x19a] sm:$0xff]
      %v1446 = vld [vmem:[#allocation2 + $0x1a2] sm:$0xff]
      %1479 = vrot.lane.b32.xlu0 %v1415, 8
      %v1480 = vpop.permute.xlu0 %1479
      %1481 = vrot.lane.b32.xlu0 %v1416, 8
      %v1482 = vpop.permute.xlu0 %1481
      %1483 = vrot.lane.b32.xlu0 %v1417, 8
      %v1484 = vpop.permute.xlu0 %1483
      %1485 = vrot.lane.b32.xlu0 %v1418, 8
      %v1486 = vpop.permute.xlu0 %1485
      %1487 = vrot.lane.b32.xlu0 %v1419, 8
      %v1488 = vpop.permute.xlu0 %1487
      %1489 = vrot.lane.b32.xlu0 %v1420, 8
      %v1490 = vpop.permute.xlu0 %1489
      %1491 = vrot.lane.b32.xlu0 %v1421, 8
      %v1492 = vpop.permute.xlu0 %1491
      %1493 = vrot.lane.b32.xlu0 %v1422, 8
      %v1494 = vpop.permute.xlu0 %1493
      %1495 = vrot.lane.b32.xlu0 %v1423, 8
      %v1496 = vpop.permute.xlu0 %1495
      %1497 = vrot.lane.b32.xlu0 %v1424, 8
      %v1498 = vpop.permute.xlu0 %1497
      %1499 = vrot.lane.b32.xlu0 %v1425, 8
      %v1500 = vpop.permute.xlu0 %1499
      %1501 = vrot.lane.b32.xlu0 %v1426, 8
      %v1502 = vpop.permute.xlu0 %1501
      %1503 = vrot.lane.b32.xlu0 %v1427, 8
      %v1504 = vpop.permute.xlu0 %1503
      %1505 = vrot.lane.b32.xlu0 %v1428, 8
      %v1506 = vpop.permute.xlu0 %1505
      %1507 = vrot.lane.b32.xlu0 %v1429, 8
      %v1508 = vpop.permute.xlu0 %1507
      %1509 = vrot.lane.b32.xlu0 %v1430, 8
      %v1510 = vpop.permute.xlu0 %1509
      %1511 = vrot.lane.b32.xlu0 %v1431, 8
      %v1512 = vpop.permute.xlu0 %1511
      %1513 = vrot.lane.b32.xlu0 %v1432, 8
      %v1514 = vpop.permute.xlu0 %1513
      %1515 = vrot.lane.b32.xlu0 %v1433, 8
      %v1516 = vpop.permute.xlu0 %1515
      %1517 = vrot.lane.b32.xlu0 %v1434, 8
      %v1518 = vpop.permute.xlu0 %1517
      %1519 = vrot.lane.b32.xlu0 %v1435, 8
      %v1520 = vpop.permute.xlu0 %1519
      %1521 = vrot.lane.b32.xlu0 %v1436, 8
      %v1522 = vpop.permute.xlu0 %1521
      %1523 = vrot.lane.b32.xlu0 %v1437, 8
      %v1524 = vpop.permute.xlu0 %1523
      %1525 = vrot.lane.b32.xlu0 %v1438, 8
      %v1526 = vpop.permute.xlu0 %1525
      %1527 = vrot.lane.b32.xlu0 %v1439, 8
      %v1528 = vpop.permute.xlu0 %1527
      %1529 = vrot.lane.b32.xlu0 %v1440, 8
      %v1530 = vpop.permute.xlu0 %1529
      %1531 = vrot.lane.b32.xlu0 %v1441, 8
      %v1532 = vpop.permute.xlu0 %1531
      %1533 = vrot.lane.b32.xlu0 %v1442, 8
      %v1534 = vpop.permute.xlu0 %1533
      %1535 = vrot.lane.b32.xlu0 %v1443, 8
      %v1536 = vpop.permute.xlu0 %1535
      %1537 = vrot.lane.b32.xlu0 %v1444, 8
      %v1538 = vpop.permute.xlu0 %1537
      %1539 = vrot.lane.b32.xlu0 %v1445, 8
      %v1540 = vpop.permute.xlu0 %1539
      %1541 = vrot.lane.b32.xlu0 %v1446, 8
      %v1542 = vpop.permute.xlu0 %1541
      %vm1575 = vcmask 97344
      %1576 = vst.msk [vmem:[#allocation4] sm:$0xff] %vm1575, %v1480
      %1577 = vst.msk [vmem:[#allocation4 + $0x8] sm:$0xff] %vm1575, %v1482
      %1578 = vst.msk [vmem:[#allocation4 + $0x10] sm:$0xff] %vm1575, %v1484
      %1579 = vst.msk [vmem:[#allocation4 + $0x18] sm:$0xff] %vm1575, %v1486
      %1580 = vst.msk [vmem:[#allocation4 + $0x20] sm:$0xff] %vm1575, %v1488
      %1581 = vst.msk [vmem:[#allocation4 + $0x28] sm:$0xff] %vm1575, %v1490
      %1582 = vst.msk [vmem:[#allocation4 + $0x30] sm:$0xff] %vm1575, %v1492
      %1583 = vst.msk [vmem:[#allocation4 + $0x38] sm:$0xff] %vm1575, %v1494
      %1584 = vst.msk [vmem:[#allocation4 + $0x40] sm:$0xff] %vm1575, %v1496
      %1585 = vst.msk [vmem:[#allocation4 + $0x48] sm:$0xff] %vm1575, %v1498
      %1586 = vst.msk [vmem:[#allocation4 + $0x50] sm:$0xff] %vm1575, %v1500
      %1587 = vst.msk [vmem:[#allocation4 + $0x58] sm:$0xff] %vm1575, %v1502
      %1588 = vst.msk [vmem:[#allocation4 + $0x60] sm:$0xff] %vm1575, %v1504
      %1589 = vst.msk [vmem:[#allocation4 + $0x68] sm:$0xff] %vm1575, %v1506
      %1590 = vst.msk [vmem:[#allocation4 + $0x70] sm:$0xff] %vm1575, %v1508
      %1591 = vst.msk [vmem:[#allocation4 + $0x78] sm:$0xff] %vm1575, %v1510
      %1592 = vst.msk [vmem:[#allocation4 + $0x80] sm:$0xff] %vm1575, %v1512
      %1593 = vst.msk [vmem:[#allocation4 + $0x88] sm:$0xff] %vm1575, %v1514
      %1594 = vst.msk [vmem:[#allocation4 + $0x90] sm:$0xff] %vm1575, %v1516
      %1595 = vst.msk [vmem:[#allocation4 + $0x98] sm:$0xff] %vm1575, %v1518
      %1596 = vst.msk [vmem:[#allocation4 + $0xa0] sm:$0xff] %vm1575, %v1520
      %1597 = vst.msk [vmem:[#allocation4 + $0xa8] sm:$0xff] %vm1575, %v1522
      %1598 = vst.msk [vmem:[#allocation4 + $0xb0] sm:$0xff] %vm1575, %v1524
      %1599 = vst.msk [vmem:[#allocation4 + $0xb8] sm:$0xff] %vm1575, %v1526
      %1600 = vst.msk [vmem:[#allocation4 + $0xc0] sm:$0xff] %vm1575, %v1528
      %1601 = vst.msk [vmem:[#allocation4 + $0xc8] sm:$0xff] %vm1575, %v1530
      %1602 = vst.msk [vmem:[#allocation4 + $0xd0] sm:$0xff] %vm1575, %v1532
      %1603 = vst.msk [vmem:[#allocation4 + $0xd8] sm:$0xff] %vm1575, %v1534
      %1604 = vst.msk [vmem:[#allocation4 + $0xe0] sm:$0xff] %vm1575, %v1536
      %1605 = vst.msk [vmem:[#allocation4 + $0xe8] sm:$0xff] %vm1575, %v1538
      %1606 = vst.msk [vmem:[#allocation4 + $0xf0] sm:$0xff] %vm1575, %v1540
      %1607 = vst.msk [vmem:[#allocation4 + $0xf8] sm:$0xff] %vm1575, %v1542
      %v1608 = vld [vmem:[%s1125] sm:$0xff]
      %v1609 = vld [vmem:[%s1125 + $0x8] sm:$0xff]
      %v1610 = vld [vmem:[%s1125 + $0x18] sm:$0xff]
      %v1611 = vld [vmem:[%s1125 + $0x20] sm:$0xff]
      %v1612 = vld [vmem:[%s1125 + $0x30] sm:$0xff]
      %v1613 = vld [vmem:[%s1125 + $0x38] sm:$0xff]
      %v1614 = vld [vmem:[%s1125 + $0x48] sm:$0xff]
      %v1615 = vld [vmem:[%s1125 + $0x50] sm:$0xff]
      %v1616 = vld [vmem:[%s1125 + $0x60] sm:$0xff]
      %v1617 = vld [vmem:[%s1125 + $0x68] sm:$0xff]
      %v1618 = vld [vmem:[%s1125 + $0x78] sm:$0xff]
      %v1619 = vld [vmem:[%s1125 + $0x80] sm:$0xff]
      %v1620 = vld [vmem:[%s1125 + $0x90] sm:$0xff]
      %v1621 = vld [vmem:[%s1125 + $0x98] sm:$0xff]
      %v1622 = vld [vmem:[%s1125 + $0xa8] sm:$0xff]
      %v1623 = vld [vmem:[%s1125 + $0xb0] sm:$0xff]
      %v1624 = vld [vmem:[%s1125 + $0xf0] sm:$0xff]
      %v1625 = vld [vmem:[%s1125 + $0xf8] sm:$0xff]
      %v1626 = vld [vmem:[%s1125 + $0x108] sm:$0xff]
      %v1627 = vld [vmem:[%s1125 + $0x110] sm:$0xff]
      %v1628 = vld [vmem:[%s1125 + $0x120] sm:$0xff]
      %v1629 = vld [vmem:[%s1125 + $0x128] sm:$0xff]
      %v1630 = vld [vmem:[%s1125 + $0x138] sm:$0xff]
      %v1631 = vld [vmem:[%s1125 + $0x140] sm:$0xff]
      %v1632 = vld [vmem:[%s1125 + $0x150] sm:$0xff]
      %v1633 = vld [vmem:[%s1125 + $0x158] sm:$0xff]
      %v1634 = vld [vmem:[%s1125 + $0x168] sm:$0xff]
      %v1635 = vld [vmem:[%s1125 + $0x170] sm:$0xff]
      %v1636 = vld [vmem:[%s1125 + $0x180] sm:$0xff]
      %v1637 = vld [vmem:[%s1125 + $0x188] sm:$0xff]
      %v1638 = vld [vmem:[%s1125 + $0x198] sm:$0xff]
      %v1639 = vld [vmem:[%s1125 + $0x1a0] sm:$0xff]
      %1672 = vrot.lane.b32.xlu0 %v1608, 12
      %v1673 = vpop.permute.xlu0 %1672
      %1674 = vrot.lane.b32.xlu0 %v1609, 12
      %v1675 = vpop.permute.xlu0 %1674
      %1676 = vrot.lane.b32.xlu0 %v1610, 12
      %v1677 = vpop.permute.xlu0 %1676
      %1678 = vrot.lane.b32.xlu0 %v1611, 12
      %v1679 = vpop.permute.xlu0 %1678
      %1680 = vrot.lane.b32.xlu0 %v1612, 12
      %v1681 = vpop.permute.xlu0 %1680
      %1682 = vrot.lane.b32.xlu0 %v1613, 12
      %v1683 = vpop.permute.xlu0 %1682
      %1684 = vrot.lane.b32.xlu0 %v1614, 12
      %v1685 = vpop.permute.xlu0 %1684
      %1686 = vrot.lane.b32.xlu0 %v1615, 12
      %v1687 = vpop.permute.xlu0 %1686
      %1688 = vrot.lane.b32.xlu0 %v1616, 12
      %v1689 = vpop.permute.xlu0 %1688
      %1690 = vrot.lane.b32.xlu0 %v1617, 12
      %v1691 = vpop.permute.xlu0 %1690
      %1692 = vrot.lane.b32.xlu0 %v1618, 12
      %v1693 = vpop.permute.xlu0 %1692
      %1694 = vrot.lane.b32.xlu0 %v1619, 12
      %v1695 = vpop.permute.xlu0 %1694
      %1696 = vrot.lane.b32.xlu0 %v1620, 12
      %v1697 = vpop.permute.xlu0 %1696
      %1698 = vrot.lane.b32.xlu0 %v1621, 12
      %v1699 = vpop.permute.xlu0 %1698
      %1700 = vrot.lane.b32.xlu0 %v1622, 12
      %v1701 = vpop.permute.xlu0 %1700
      %1702 = vrot.lane.b32.xlu0 %v1623, 12
      %v1703 = vpop.permute.xlu0 %1702
      %1704 = vrot.lane.b32.xlu0 %v1624, 12
      %v1705 = vpop.permute.xlu0 %1704
      %1706 = vrot.lane.b32.xlu0 %v1625, 12
      %v1707 = vpop.permute.xlu0 %1706
      %1708 = vrot.lane.b32.xlu0 %v1626, 12
      %v1709 = vpop.permute.xlu0 %1708
      %1710 = vrot.lane.b32.xlu0 %v1627, 12
      %v1711 = vpop.permute.xlu0 %1710
      %1712 = vrot.lane.b32.xlu0 %v1628, 12
      %v1713 = vpop.permute.xlu0 %1712
      %1714 = vrot.lane.b32.xlu0 %v1629, 12
      %v1715 = vpop.permute.xlu0 %1714
      %1716 = vrot.lane.b32.xlu0 %v1630, 12
      %v1717 = vpop.permute.xlu0 %1716
      %1718 = vrot.lane.b32.xlu0 %v1631, 12
      %v1719 = vpop.permute.xlu0 %1718
      %1720 = vrot.lane.b32.xlu0 %v1632, 12
      %v1721 = vpop.permute.xlu0 %1720
      %1722 = vrot.lane.b32.xlu0 %v1633, 12
      %v1723 = vpop.permute.xlu0 %1722
      %1724 = vrot.lane.b32.xlu0 %v1634, 12
      %v1725 = vpop.permute.xlu0 %1724
      %1726 = vrot.lane.b32.xlu0 %v1635, 12
      %v1727 = vpop.permute.xlu0 %1726
      %1728 = vrot.lane.b32.xlu0 %v1636, 12
      %v1729 = vpop.permute.xlu0 %1728
      %1730 = vrot.lane.b32.xlu0 %v1637, 12
      %v1731 = vpop.permute.xlu0 %1730
      %1732 = vrot.lane.b32.xlu0 %v1638, 12
      %v1733 = vpop.permute.xlu0 %1732
      %1734 = vrot.lane.b32.xlu0 %v1639, 12
      %v1735 = vpop.permute.xlu0 %1734
      %vm1768 = vcmask 130144
      %1769 = vst.msk [vmem:[#allocation4] sm:$0xff] %vm1768, %v1673
      %1770 = vst.msk [vmem:[#allocation4 + $0x8] sm:$0xff] %vm1768, %v1675
      %1771 = vst.msk [vmem:[#allocation4 + $0x10] sm:$0xff] %vm1768, %v1677
      %1772 = vst.msk [vmem:[#allocation4 + $0x18] sm:$0xff] %vm1768, %v1679
      %1773 = vst.msk [vmem:[#allocation4 + $0x20] sm:$0xff] %vm1768, %v1681
      %1774 = vst.msk [vmem:[#allocation4 + $0x28] sm:$0xff] %vm1768, %v1683
      %1775 = vst.msk [vmem:[#allocation4 + $0x30] sm:$0xff] %vm1768, %v1685
      %1776 = vst.msk [vmem:[#allocation4 + $0x38] sm:$0xff] %vm1768, %v1687
      %1777 = vst.msk [vmem:[#allocation4 + $0x40] sm:$0xff] %vm1768, %v1689
      %1778 = vst.msk [vmem:[#allocation4 + $0x48] sm:$0xff] %vm1768, %v1691
      %1779 = vst.msk [vmem:[#allocation4 + $0x50] sm:$0xff] %vm1768, %v1693
      %1780 = vst.msk [vmem:[#allocation4 + $0x58] sm:$0xff] %vm1768, %v1695
      %1781 = vst.msk [vmem:[#allocation4 + $0x60] sm:$0xff] %vm1768, %v1697
      %1782 = vst.msk [vmem:[#allocation4 + $0x68] sm:$0xff] %vm1768, %v1699
      %1783 = vst.msk [vmem:[#allocation4 + $0x70] sm:$0xff] %vm1768, %v1701
      %1784 = vst.msk [vmem:[#allocation4 + $0x78] sm:$0xff] %vm1768, %v1703
      %1785 = vst.msk [vmem:[#allocation4 + $0x80] sm:$0xff] %vm1768, %v1705
      %1786 = vst.msk [vmem:[#allocation4 + $0x88] sm:$0xff] %vm1768, %v1707
      %1787 = vst.msk [vmem:[#allocation4 + $0x90] sm:$0xff] %vm1768, %v1709
      %1788 = vst.msk [vmem:[#allocation4 + $0x98] sm:$0xff] %vm1768, %v1711
      %1789 = vst.msk [vmem:[#allocation4 + $0xa0] sm:$0xff] %vm1768, %v1713
      %1790 = vst.msk [vmem:[#allocation4 + $0xa8] sm:$0xff] %vm1768, %v1715
      %1791 = vst.msk [vmem:[#allocation4 + $0xb0] sm:$0xff] %vm1768, %v1717
      %1792 = vst.msk [vmem:[#allocation4 + $0xb8] sm:$0xff] %vm1768, %v1719
      %1793 = vst.msk [vmem:[#allocation4 + $0xc0] sm:$0xff] %vm1768, %v1721
      %1794 = vst.msk [vmem:[#allocation4 + $0xc8] sm:$0xff] %vm1768, %v1723
      %1795 = vst.msk [vmem:[#allocation4 + $0xd0] sm:$0xff] %vm1768, %v1725
      %1796 = vst.msk [vmem:[#allocation4 + $0xd8] sm:$0xff] %vm1768, %v1727
      %1797 = vst.msk [vmem:[#allocation4 + $0xe0] sm:$0xff] %vm1768, %v1729
      %1798 = vst.msk [vmem:[#allocation4 + $0xe8] sm:$0xff] %vm1768, %v1731
      %1799 = vst.msk [vmem:[#allocation4 + $0xf0] sm:$0xff] %vm1768, %v1733
      %1800 = vst.msk [vmem:[#allocation4 + $0xf8] sm:$0xff] %vm1768, %v1735
      %v1801 = vld [vmem:[%s1125 + $0x1] sm:$0xff]
      %v1802 = vld [vmem:[%s1125 + $0x9] sm:$0xff]
      %v1803 = vld [vmem:[%s1125 + $0x19] sm:$0xff]
      %v1804 = vld [vmem:[%s1125 + $0x21] sm:$0xff]
      %v1805 = vld [vmem:[%s1125 + $0x31] sm:$0xff]
      %v1806 = vld [vmem:[%s1125 + $0x39] sm:$0xff]
      %v1807 = vld [vmem:[%s1125 + $0x49] sm:$0xff]
      %v1808 = vld [vmem:[%s1125 + $0x51] sm:$0xff]
      %v1809 = vld [vmem:[%s1125 + $0x61] sm:$0xff]
      %v1810 = vld [vmem:[%s1125 + $0x69] sm:$0xff]
      %v1811 = vld [vmem:[%s1125 + $0x79] sm:$0xff]
      %v1812 = vld [vmem:[%s1125 + $0x81] sm:$0xff]
      %v1813 = vld [vmem:[%s1125 + $0x91] sm:$0xff]
      %v1814 = vld [vmem:[%s1125 + $0x99] sm:$0xff]
      %v1815 = vld [vmem:[%s1125 + $0xa9] sm:$0xff]
      %v1816 = vld [vmem:[%s1125 + $0xb1] sm:$0xff]
      %v1817 = vld [vmem:[%s1125 + $0xf1] sm:$0xff]
      %v1818 = vld [vmem:[%s1125 + $0xf9] sm:$0xff]
      %v1819 = vld [vmem:[%s1125 + $0x109] sm:$0xff]
      %v1820 = vld [vmem:[%s1125 + $0x111] sm:$0xff]
      %v1821 = vld [vmem:[%s1125 + $0x121] sm:$0xff]
      %v1822 = vld [vmem:[%s1125 + $0x129] sm:$0xff]
      %v1823 = vld [vmem:[%s1125 + $0x139] sm:$0xff]
      %v1824 = vld [vmem:[%s1125 + $0x141] sm:$0xff]
      %v1825 = vld [vmem:[%s1125 + $0x151] sm:$0xff]
      %v1826 = vld [vmem:[%s1125 + $0x159] sm:$0xff]
      %v1827 = vld [vmem:[%s1125 + $0x169] sm:$0xff]
      %v1828 = vld [vmem:[%s1125 + $0x171] sm:$0xff]
      %v1829 = vld [vmem:[%s1125 + $0x181] sm:$0xff]
      %v1830 = vld [vmem:[%s1125 + $0x189] sm:$0xff]
      %v1831 = vld [vmem:[%s1125 + $0x199] sm:$0xff]
      %v1832 = vld [vmem:[%s1125 + $0x1a1] sm:$0xff]
      %1865 = vrot.lane.b32.xlu0 %v1801, 16
      %v1866 = vpop.permute.xlu0 %1865
      %1867 = vrot.lane.b32.xlu0 %v1802, 16
      %v1868 = vpop.permute.xlu0 %1867
      %1869 = vrot.lane.b32.xlu0 %v1803, 16
      %v1870 = vpop.permute.xlu0 %1869
      %1871 = vrot.lane.b32.xlu0 %v1804, 16
      %v1872 = vpop.permute.xlu0 %1871
      %1873 = vrot.lane.b32.xlu0 %v1805, 16
      %v1874 = vpop.permute.xlu0 %1873
      %1875 = vrot.lane.b32.xlu0 %v1806, 16
      %v1876 = vpop.permute.xlu0 %1875
      %1877 = vrot.lane.b32.xlu0 %v1807, 16
      %v1878 = vpop.permute.xlu0 %1877
      %1879 = vrot.lane.b32.xlu0 %v1808, 16
      %v1880 = vpop.permute.xlu0 %1879
      %1881 = vrot.lane.b32.xlu0 %v1809, 16
      %v1882 = vpop.permute.xlu0 %1881
      %1883 = vrot.lane.b32.xlu0 %v1810, 16
      %v1884 = vpop.permute.xlu0 %1883
      %1885 = vrot.lane.b32.xlu0 %v1811, 16
      %v1886 = vpop.permute.xlu0 %1885
      %1887 = vrot.lane.b32.xlu0 %v1812, 16
      %v1888 = vpop.permute.xlu0 %1887
      %1889 = vrot.lane.b32.xlu0 %v1813, 16
      %v1890 = vpop.permute.xlu0 %1889
      %1891 = vrot.lane.b32.xlu0 %v1814, 16
      %v1892 = vpop.permute.xlu0 %1891
      %1893 = vrot.lane.b32.xlu0 %v1815, 16
      %v1894 = vpop.permute.xlu0 %1893
      %1895 = vrot.lane.b32.xlu0 %v1816, 16
      %v1896 = vpop.permute.xlu0 %1895
      %1897 = vrot.lane.b32.xlu0 %v1817, 16
      %v1898 = vpop.permute.xlu0 %1897
      %1899 = vrot.lane.b32.xlu0 %v1818, 16
      %v1900 = vpop.permute.xlu0 %1899
      %1901 = vrot.lane.b32.xlu0 %v1819, 16
      %v1902 = vpop.permute.xlu0 %1901
      %1903 = vrot.lane.b32.xlu0 %v1820, 16
      %v1904 = vpop.permute.xlu0 %1903
      %1905 = vrot.lane.b32.xlu0 %v1821, 16
      %v1906 = vpop.permute.xlu0 %1905
      %1907 = vrot.lane.b32.xlu0 %v1822, 16
      %v1908 = vpop.permute.xlu0 %1907
      %1909 = vrot.lane.b32.xlu0 %v1823, 16
      %v1910 = vpop.permute.xlu0 %1909
      %1911 = vrot.lane.b32.xlu0 %v1824, 16
      %v1912 = vpop.permute.xlu0 %1911
      %1913 = vrot.lane.b32.xlu0 %v1825, 16
      %v1914 = vpop.permute.xlu0 %1913
      %1915 = vrot.lane.b32.xlu0 %v1826, 16
      %v1916 = vpop.permute.xlu0 %1915
      %1917 = vrot.lane.b32.xlu0 %v1827, 16
      %v1918 = vpop.permute.xlu0 %1917
      %1919 = vrot.lane.b32.xlu0 %v1828, 16
      %v1920 = vpop.permute.xlu0 %1919
      %1921 = vrot.lane.b32.xlu0 %v1829, 16
      %v1922 = vpop.permute.xlu0 %1921
      %1923 = vrot.lane.b32.xlu0 %v1830, 16
      %v1924 = vpop.permute.xlu0 %1923
      %1925 = vrot.lane.b32.xlu0 %v1831, 16
      %v1926 = vpop.permute.xlu0 %1925
      %1927 = vrot.lane.b32.xlu0 %v1832, 16
      %v1928 = vpop.permute.xlu0 %1927
      %vm1961 = vcmask 162944
      %1962 = vst.msk [vmem:[#allocation4] sm:$0xff] %vm1961, %v1866
      %1963 = vst.msk [vmem:[#allocation4 + $0x8] sm:$0xff] %vm1961, %v1868
      %1964 = vst.msk [vmem:[#allocation4 + $0x10] sm:$0xff] %vm1961, %v1870
      %1965 = vst.msk [vmem:[#allocation4 + $0x18] sm:$0xff] %vm1961, %v1872
      %1966 = vst.msk [vmem:[#allocation4 + $0x20] sm:$0xff] %vm1961, %v1874
      %1967 = vst.msk [vmem:[#allocation4 + $0x28] sm:$0xff] %vm1961, %v1876
      %1968 = vst.msk [vmem:[#allocation4 + $0x30] sm:$0xff] %vm1961, %v1878
      %1969 = vst.msk [vmem:[#allocation4 + $0x38] sm:$0xff] %vm1961, %v1880
      %1970 = vst.msk [vmem:[#allocation4 + $0x40] sm:$0xff] %vm1961, %v1882
      %1971 = vst.msk [vmem:[#allocation4 + $0x48] sm:$0xff] %vm1961, %v1884
      %1972 = vst.msk [vmem:[#allocation4 + $0x50] sm:$0xff] %vm1961, %v1886
      %1973 = vst.msk [vmem:[#allocation4 + $0x58] sm:$0xff] %vm1961, %v1888
      %1974 = vst.msk [vmem:[#allocation4 + $0x60] sm:$0xff] %vm1961, %v1890
      %1975 = vst.msk [vmem:[#allocation4 + $0x68] sm:$0xff] %vm1961, %v1892
      %1976 = vst.msk [vmem:[#allocation4 + $0x70] sm:$0xff] %vm1961, %v1894
      %1977 = vst.msk [vmem:[#allocation4 + $0x78] sm:$0xff] %vm1961, %v1896
      %1978 = vst.msk [vmem:[#allocation4 + $0x80] sm:$0xff] %vm1961, %v1898
      %1979 = vst.msk [vmem:[#allocation4 + $0x88] sm:$0xff] %vm1961, %v1900
      %1980 = vst.msk [vmem:[#allocation4 + $0x90] sm:$0xff] %vm1961, %v1902
      %1981 = vst.msk [vmem:[#allocation4 + $0x98] sm:$0xff] %vm1961, %v1904
      %1982 = vst.msk [vmem:[#allocation4 + $0xa0] sm:$0xff] %vm1961, %v1906
      %1983 = vst.msk [vmem:[#allocation4 + $0xa8] sm:$0xff] %vm1961, %v1908
      %1984 = vst.msk [vmem:[#allocation4 + $0xb0] sm:$0xff] %vm1961, %v1910
      %1985 = vst.msk [vmem:[#allocation4 + $0xb8] sm:$0xff] %vm1961, %v1912
      %1986 = vst.msk [vmem:[#allocation4 + $0xc0] sm:$0xff] %vm1961, %v1914
      %1987 = vst.msk [vmem:[#allocation4 + $0xc8] sm:$0xff] %vm1961, %v1916
      %1988 = vst.msk [vmem:[#allocation4 + $0xd0] sm:$0xff] %vm1961, %v1918
      %1989 = vst.msk [vmem:[#allocation4 + $0xd8] sm:$0xff] %vm1961, %v1920
      %1990 = vst.msk [vmem:[#allocation4 + $0xe0] sm:$0xff] %vm1961, %v1922
      %1991 = vst.msk [vmem:[#allocation4 + $0xe8] sm:$0xff] %vm1961, %v1924
      %1992 = vst.msk [vmem:[#allocation4 + $0xf0] sm:$0xff] %vm1961, %v1926
      %1993 = vst.msk [vmem:[#allocation4 + $0xf8] sm:$0xff] %vm1961, %v1928
      %v1994 = vld [vmem:[%s1125 + $0x2] sm:$0xff]
      %v1995 = vld [vmem:[%s1125 + $0xa] sm:$0xff]
      %v1996 = vld [vmem:[%s1125 + $0x1a] sm:$0xff]
      %v1997 = vld [vmem:[%s1125 + $0x22] sm:$0xff]
      %v1998 = vld [vmem:[%s1125 + $0x32] sm:$0xff]
      %v1999 = vld [vmem:[%s1125 + $0x3a] sm:$0xff]
      %v2000 = vld [vmem:[%s1125 + $0x4a] sm:$0xff]
      %v2001 = vld [vmem:[%s1125 + $0x52] sm:$0xff]
      %v2002 = vld [vmem:[%s1125 + $0x62] sm:$0xff]
      %v2003 = vld [vmem:[%s1125 + $0x6a] sm:$0xff]
      %v2004 = vld [vmem:[%s1125 + $0x7a] sm:$0xff]
      %v2005 = vld [vmem:[%s1125 + $0x82] sm:$0xff]
      %v2006 = vld [vmem:[%s1125 + $0x92] sm:$0xff]
      %v2007 = vld [vmem:[%s1125 + $0x9a] sm:$0xff]
      %v2008 = vld [vmem:[%s1125 + $0xaa] sm:$0xff]
      %v2009 = vld [vmem:[%s1125 + $0xb2] sm:$0xff]
      %v2010 = vld [vmem:[%s1125 + $0xf2] sm:$0xff]
      %v2011 = vld [vmem:[%s1125 + $0xfa] sm:$0xff]
      %v2012 = vld [vmem:[%s1125 + $0x10a] sm:$0xff]
      %v2013 = vld [vmem:[%s1125 + $0x112] sm:$0xff]
      %v2014 = vld [vmem:[%s1125 + $0x122] sm:$0xff]
      %v2015 = vld [vmem:[%s1125 + $0x12a] sm:$0xff]
      %v2016 = vld [vmem:[%s1125 + $0x13a] sm:$0xff]
      %v2017 = vld [vmem:[%s1125 + $0x142] sm:$0xff]
      %v2018 = vld [vmem:[%s1125 + $0x152] sm:$0xff]
      %v2019 = vld [vmem:[%s1125 + $0x15a] sm:$0xff]
      %v2020 = vld [vmem:[%s1125 + $0x16a] sm:$0xff]
      %v2021 = vld [vmem:[%s1125 + $0x172] sm:$0xff]
      %v2022 = vld [vmem:[%s1125 + $0x182] sm:$0xff]
      %v2023 = vld [vmem:[%s1125 + $0x18a] sm:$0xff]
      %v2024 = vld [vmem:[%s1125 + $0x19a] sm:$0xff]
      %v2025 = vld [vmem:[%s1125 + $0x1a2] sm:$0xff]
      %2058 = vrot.lane.b32.xlu0 %v1994, 20
      %v2059 = vpop.permute.xlu0 %2058
      %2060 = vrot.lane.b32.xlu0 %v1995, 20
      %v2061 = vpop.permute.xlu0 %2060
      %2062 = vrot.lane.b32.xlu0 %v1996, 20
      %v2063 = vpop.permute.xlu0 %2062
      %2064 = vrot.lane.b32.xlu0 %v1997, 20
      %v2065 = vpop.permute.xlu0 %2064
      %2066 = vrot.lane.b32.xlu0 %v1998, 20
      %v2067 = vpop.permute.xlu0 %2066
      %2068 = vrot.lane.b32.xlu0 %v1999, 20
      %v2069 = vpop.permute.xlu0 %2068
      %2070 = vrot.lane.b32.xlu0 %v2000, 20
      %v2071 = vpop.permute.xlu0 %2070
      %2072 = vrot.lane.b32.xlu0 %v2001, 20
      %v2073 = vpop.permute.xlu0 %2072
      %2074 = vrot.lane.b32.xlu0 %v2002, 20
      %v2075 = vpop.permute.xlu0 %2074
      %2076 = vrot.lane.b32.xlu0 %v2003, 20
      %v2077 = vpop.permute.xlu0 %2076
      %2078 = vrot.lane.b32.xlu0 %v2004, 20
      %v2079 = vpop.permute.xlu0 %2078
      %2080 = vrot.lane.b32.xlu0 %v2005, 20
      %v2081 = vpop.permute.xlu0 %2080
      %2082 = vrot.lane.b32.xlu0 %v2006, 20
      %v2083 = vpop.permute.xlu0 %2082
      %2084 = vrot.lane.b32.xlu0 %v2007, 20
      %v2085 = vpop.permute.xlu0 %2084
      %2086 = vrot.lane.b32.xlu0 %v2008, 20
      %v2087 = vpop.permute.xlu0 %2086
      %2088 = vrot.lane.b32.xlu0 %v2009, 20
      %v2089 = vpop.permute.xlu0 %2088
      %2090 = vrot.lane.b32.xlu0 %v2010, 20
      %v2091 = vpop.permute.xlu0 %2090
      %2092 = vrot.lane.b32.xlu0 %v2011, 20
      %v2093 = vpop.permute.xlu0 %2092
      %2094 = vrot.lane.b32.xlu0 %v2012, 20
      %v2095 = vpop.permute.xlu0 %2094
      %2096 = vrot.lane.b32.xlu0 %v2013, 20
      %v2097 = vpop.permute.xlu0 %2096
      %2098 = vrot.lane.b32.xlu0 %v2014, 20
      %v2099 = vpop.permute.xlu0 %2098
      %2100 = vrot.lane.b32.xlu0 %v2015, 20
      %v2101 = vpop.permute.xlu0 %2100
      %2102 = vrot.lane.b32.xlu0 %v2016, 20
      %v2103 = vpop.permute.xlu0 %2102
      %2104 = vrot.lane.b32.xlu0 %v2017, 20
      %v2105 = vpop.permute.xlu0 %2104
      %2106 = vrot.lane.b32.xlu0 %v2018, 20
      %v2107 = vpop.permute.xlu0 %2106
      %2108 = vrot.lane.b32.xlu0 %v2019, 20
      %v2109 = vpop.permute.xlu0 %2108
      %2110 = vrot.lane.b32.xlu0 %v2020, 20
      %v2111 = vpop.permute.xlu0 %2110
      %2112 = vrot.lane.b32.xlu0 %v2021, 20
      %v2113 = vpop.permute.xlu0 %2112
      %2114 = vrot.lane.b32.xlu0 %v2022, 20
      %v2115 = vpop.permute.xlu0 %2114
      %2116 = vrot.lane.b32.xlu0 %v2023, 20
      %v2117 = vpop.permute.xlu0 %2116
      %2118 = vrot.lane.b32.xlu0 %v2024, 20
      %v2119 = vpop.permute.xlu0 %2118
      %2120 = vrot.lane.b32.xlu0 %v2025, 20
      %v2121 = vpop.permute.xlu0 %2120
      %vm2154 = vcmask 195744
      %2155 = vst.msk [vmem:[#allocation4] sm:$0xff] %vm2154, %v2059
      %2156 = vst.msk [vmem:[#allocation4 + $0x8] sm:$0xff] %vm2154, %v2061
      %2157 = vst.msk [vmem:[#allocation4 + $0x10] sm:$0xff] %vm2154, %v2063
      %2158 = vst.msk [vmem:[#allocation4 + $0x18] sm:$0xff] %vm2154, %v2065
      %2159 = vst.msk [vmem:[#allocation4 + $0x20] sm:$0xff] %vm2154, %v2067
      %2160 = vst.msk [vmem:[#allocation4 + $0x28] sm:$0xff] %vm2154, %v2069
      %2161 = vst.msk [vmem:[#allocation4 + $0x30] sm:$0xff] %vm2154, %v2071
      %2162 = vst.msk [vmem:[#allocation4 + $0x38] sm:$0xff] %vm2154, %v2073
      %2163 = vst.msk [vmem:[#allocation4 + $0x40] sm:$0xff] %vm2154, %v2075
      %2164 = vst.msk [vmem:[#allocation4 + $0x48] sm:$0xff] %vm2154, %v2077
      %2165 = vst.msk [vmem:[#allocation4 + $0x50] sm:$0xff] %vm2154, %v2079
      %2166 = vst.msk [vmem:[#allocation4 + $0x58] sm:$0xff] %vm2154, %v2081
      %2167 = vst.msk [vmem:[#allocation4 + $0x60] sm:$0xff] %vm2154, %v2083
      %2168 = vst.msk [vmem:[#allocation4 + $0x68] sm:$0xff] %vm2154, %v2085
      %2169 = vst.msk [vmem:[#allocation4 + $0x70] sm:$0xff] %vm2154, %v2087
      %2170 = vst.msk [vmem:[#allocation4 + $0x78] sm:$0xff] %vm2154, %v2089
      %2171 = vst.msk [vmem:[#allocation4 + $0x80] sm:$0xff] %vm2154, %v2091
      %2172 = vst.msk [vmem:[#allocation4 + $0x88] sm:$0xff] %vm2154, %v2093
      %2173 = vst.msk [vmem:[#allocation4 + $0x90] sm:$0xff] %vm2154, %v2095
      %2174 = vst.msk [vmem:[#allocation4 + $0x98] sm:$0xff] %vm2154, %v2097
      %2175 = vst.msk [vmem:[#allocation4 + $0xa0] sm:$0xff] %vm2154, %v2099
      %2176 = vst.msk [vmem:[#allocation4 + $0xa8] sm:$0xff] %vm2154, %v2101
      %2177 = vst.msk [vmem:[#allocation4 + $0xb0] sm:$0xff] %vm2154, %v2103
      %2178 = vst.msk [vmem:[#allocation4 + $0xb8] sm:$0xff] %vm2154, %v2105
      %2179 = vst.msk [vmem:[#allocation4 + $0xc0] sm:$0xff] %vm2154, %v2107
      %2180 = vst.msk [vmem:[#allocation4 + $0xc8] sm:$0xff] %vm2154, %v2109
      %2181 = vst.msk [vmem:[#allocation4 + $0xd0] sm:$0xff] %vm2154, %v2111
      %2182 = vst.msk [vmem:[#allocation4 + $0xd8] sm:$0xff] %vm2154, %v2113
      %2183 = vst.msk [vmem:[#allocation4 + $0xe0] sm:$0xff] %vm2154, %v2115
      %2184 = vst.msk [vmem:[#allocation4 + $0xe8] sm:$0xff] %vm2154, %v2117
      %2185 = vst.msk [vmem:[#allocation4 + $0xf0] sm:$0xff] %vm2154, %v2119
      %2186 = vst.msk [vmem:[#allocation4 + $0xf8] sm:$0xff] %vm2154, %v2121
      %s2187 = scalar_lea.vmem [#allocation2], 48
      %v2188 = vld [vmem:[%s2187] sm:$0xff]
      %v2189 = vld [vmem:[%s2187 + $0x8] sm:$0xff]
      %v2190 = vld [vmem:[%s2187 + $0x18] sm:$0xff]
      %v2191 = vld [vmem:[%s2187 + $0x20] sm:$0xff]
      %v2192 = vld [vmem:[%s2187 + $0x30] sm:$0xff]
      %v2193 = vld [vmem:[%s2187 + $0x38] sm:$0xff]
      %v2194 = vld [vmem:[%s2187 + $0x48] sm:$0xff]
      %v2195 = vld [vmem:[%s2187 + $0x50] sm:$0xff]
      %v2196 = vld [vmem:[%s2187 + $0x60] sm:$0xff]
      %v2197 = vld [vmem:[%s2187 + $0x68] sm:$0xff]
      %v2198 = vld [vmem:[%s2187 + $0x78] sm:$0xff]
      %v2199 = vld [vmem:[%s2187 + $0x80] sm:$0xff]
      %v2200 = vld [vmem:[%s2187 + $0x90] sm:$0xff]
      %v2201 = vld [vmem:[%s2187 + $0x98] sm:$0xff]
      %v2202 = vld [vmem:[%s2187 + $0xa8] sm:$0xff]
      %v2203 = vld [vmem:[%s2187 + $0xb0] sm:$0xff]
      %v2204 = vld [vmem:[%s2187 + $0xf0] sm:$0xff]
      %v2205 = vld [vmem:[%s2187 + $0xf8] sm:$0xff]
      %v2206 = vld [vmem:[%s2187 + $0x108] sm:$0xff]
      %v2207 = vld [vmem:[%s2187 + $0x110] sm:$0xff]
      %v2208 = vld [vmem:[%s2187 + $0x120] sm:$0xff]
      %v2209 = vld [vmem:[%s2187 + $0x128] sm:$0xff]
      %v2210 = vld [vmem:[%s2187 + $0x138] sm:$0xff]
      %v2211 = vld [vmem:[%s2187 + $0x140] sm:$0xff]
      %v2212 = vld [vmem:[%s2187 + $0x150] sm:$0xff]
      %v2213 = vld [vmem:[%s2187 + $0x158] sm:$0xff]
      %v2214 = vld [vmem:[%s2187 + $0x168] sm:$0xff]
      %v2215 = vld [vmem:[%s2187 + $0x170] sm:$0xff]
      %v2216 = vld [vmem:[%s2187 + $0x180] sm:$0xff]
      %v2217 = vld [vmem:[%s2187 + $0x188] sm:$0xff]
      %v2218 = vld [vmem:[%s2187 + $0x198] sm:$0xff]
      %v2219 = vld [vmem:[%s2187 + $0x1a0] sm:$0xff]
      %2252 = vrot.lane.b32.xlu0 %v2188, 24
      %v2253 = vpop.permute.xlu0 %2252
      %2254 = vrot.lane.b32.xlu0 %v2189, 24
      %v2255 = vpop.permute.xlu0 %2254
      %2256 = vrot.lane.b32.xlu0 %v2190, 24
      %v2257 = vpop.permute.xlu0 %2256
      %2258 = vrot.lane.b32.xlu0 %v2191, 24
      %v2259 = vpop.permute.xlu0 %2258
      %2260 = vrot.lane.b32.xlu0 %v2192, 24
      %v2261 = vpop.permute.xlu0 %2260
      %2262 = vrot.lane.b32.xlu0 %v2193, 24
      %v2263 = vpop.permute.xlu0 %2262
      %2264 = vrot.lane.b32.xlu0 %v2194, 24
      %v2265 = vpop.permute.xlu0 %2264
      %2266 = vrot.lane.b32.xlu0 %v2195, 24
      %v2267 = vpop.permute.xlu0 %2266
      %2268 = vrot.lane.b32.xlu0 %v2196, 24
      %v2269 = vpop.permute.xlu0 %2268
      %2270 = vrot.lane.b32.xlu0 %v2197, 24
      %v2271 = vpop.permute.xlu0 %2270
      %2272 = vrot.lane.b32.xlu0 %v2198, 24
      %v2273 = vpop.permute.xlu0 %2272
      %2274 = vrot.lane.b32.xlu0 %v2199, 24
      %v2275 = vpop.permute.xlu0 %2274
      %2276 = vrot.lane.b32.xlu0 %v2200, 24
      %v2277 = vpop.permute.xlu0 %2276
      %2278 = vrot.lane.b32.xlu0 %v2201, 24
      %v2279 = vpop.permute.xlu0 %2278
      %2280 = vrot.lane.b32.xlu0 %v2202, 24
      %v2281 = vpop.permute.xlu0 %2280
      %2282 = vrot.lane.b32.xlu0 %v2203, 24
      %v2283 = vpop.permute.xlu0 %2282
      %2284 = vrot.lane.b32.xlu0 %v2204, 24
      %v2285 = vpop.permute.xlu0 %2284
      %2286 = vrot.lane.b32.xlu0 %v2205, 24
      %v2287 = vpop.permute.xlu0 %2286
      %2288 = vrot.lane.b32.xlu0 %v2206, 24
      %v2289 = vpop.permute.xlu0 %2288
      %2290 = vrot.lane.b32.xlu0 %v2207, 24
      %v2291 = vpop.permute.xlu0 %2290
      %2292 = vrot.lane.b32.xlu0 %v2208, 24
      %v2293 = vpop.permute.xlu0 %2292
      %2294 = vrot.lane.b32.xlu0 %v2209, 24
      %v2295 = vpop.permute.xlu0 %2294
      %2296 = vrot.lane.b32.xlu0 %v2210, 24
      %v2297 = vpop.permute.xlu0 %2296
      %2298 = vrot.lane.b32.xlu0 %v2211, 24
      %v2299 = vpop.permute.xlu0 %2298
      %2300 = vrot.lane.b32.xlu0 %v2212, 24
      %v2301 = vpop.permute.xlu0 %2300
      %2302 = vrot.lane.b32.xlu0 %v2213, 24
      %v2303 = vpop.permute.xlu0 %2302
      %2304 = vrot.lane.b32.xlu0 %v2214, 24
      %v2305 = vpop.permute.xlu0 %2304
      %2306 = vrot.lane.b32.xlu0 %v2215, 24
      %v2307 = vpop.permute.xlu0 %2306
      %2308 = vrot.lane.b32.xlu0 %v2216, 24
      %v2309 = vpop.permute.xlu0 %2308
      %2310 = vrot.lane.b32.xlu0 %v2217, 24
      %v2311 = vpop.permute.xlu0 %2310
      %2312 = vrot.lane.b32.xlu0 %v2218, 24
      %v2313 = vpop.permute.xlu0 %2312
      %2314 = vrot.lane.b32.xlu0 %v2219, 24
      %v2315 = vpop.permute.xlu0 %2314
      %vm2348 = vcmask 228544
      %2349 = vst.msk [vmem:[#allocation4] sm:$0xff] %vm2348, %v2253
      %2350 = vst.msk [vmem:[#allocation4 + $0x8] sm:$0xff] %vm2348, %v2255
      %2351 = vst.msk [vmem:[#allocation4 + $0x10] sm:$0xff] %vm2348, %v2257
      %2352 = vst.msk [vmem:[#allocation4 + $0x18] sm:$0xff] %vm2348, %v2259
      %2353 = vst.msk [vmem:[#allocation4 + $0x20] sm:$0xff] %vm2348, %v2261
      %2354 = vst.msk [vmem:[#allocation4 + $0x28] sm:$0xff] %vm2348, %v2263
      %2355 = vst.msk [vmem:[#allocation4 + $0x30] sm:$0xff] %vm2348, %v2265
      %2356 = vst.msk [vmem:[#allocation4 + $0x38] sm:$0xff] %vm2348, %v2267
      %2357 = vst.msk [vmem:[#allocation4 + $0x40] sm:$0xff] %vm2348, %v2269
      %2358 = vst.msk [vmem:[#allocation4 + $0x48] sm:$0xff] %vm2348, %v2271
      %2359 = vst.msk [vmem:[#allocation4 + $0x50] sm:$0xff] %vm2348, %v2273
      %2360 = vst.msk [vmem:[#allocation4 + $0x58] sm:$0xff] %vm2348, %v2275
      %2361 = vst.msk [vmem:[#allocation4 + $0x60] sm:$0xff] %vm2348, %v2277
      %2362 = vst.msk [vmem:[#allocation4 + $0x68] sm:$0xff] %vm2348, %v2279
      %2363 = vst.msk [vmem:[#allocation4 + $0x70] sm:$0xff] %vm2348, %v2281
      %2364 = vst.msk [vmem:[#allocation4 + $0x78] sm:$0xff] %vm2348, %v2283
      %2365 = vst.msk [vmem:[#allocation4 + $0x80] sm:$0xff] %vm2348, %v2285
      %2366 = vst.msk [vmem:[#allocation4 + $0x88] sm:$0xff] %vm2348, %v2287
      %2367 = vst.msk [vmem:[#allocation4 + $0x90] sm:$0xff] %vm2348, %v2289
      %2368 = vst.msk [vmem:[#allocation4 + $0x98] sm:$0xff] %vm2348, %v2291
      %2369 = vst.msk [vmem:[#allocation4 + $0xa0] sm:$0xff] %vm2348, %v2293
      %2370 = vst.msk [vmem:[#allocation4 + $0xa8] sm:$0xff] %vm2348, %v2295
      %2371 = vst.msk [vmem:[#allocation4 + $0xb0] sm:$0xff] %vm2348, %v2297
      %2372 = vst.msk [vmem:[#allocation4 + $0xb8] sm:$0xff] %vm2348, %v2299
      %2373 = vst.msk [vmem:[#allocation4 + $0xc0] sm:$0xff] %vm2348, %v2301
      %2374 = vst.msk [vmem:[#allocation4 + $0xc8] sm:$0xff] %vm2348, %v2303
      %2375 = vst.msk [vmem:[#allocation4 + $0xd0] sm:$0xff] %vm2348, %v2305
      %2376 = vst.msk [vmem:[#allocation4 + $0xd8] sm:$0xff] %vm2348, %v2307
      %2377 = vst.msk [vmem:[#allocation4 + $0xe0] sm:$0xff] %vm2348, %v2309
      %2378 = vst.msk [vmem:[#allocation4 + $0xe8] sm:$0xff] %vm2348, %v2311
      %2379 = vst.msk [vmem:[#allocation4 + $0xf0] sm:$0xff] %vm2348, %v2313
      %2380 = vst.msk [vmem:[#allocation4 + $0xf8] sm:$0xff] %vm2348, %v2315
      %v2381 = vld [vmem:[%s2187 + $0x1] sm:$0xff]
      %v2382 = vld [vmem:[%s2187 + $0x9] sm:$0xff]
      %v2383 = vld [vmem:[%s2187 + $0x19] sm:$0xff]
      %v2384 = vld [vmem:[%s2187 + $0x21] sm:$0xff]
      %v2385 = vld [vmem:[%s2187 + $0x31] sm:$0xff]
      %v2386 = vld [vmem:[%s2187 + $0x39] sm:$0xff]
      %v2387 = vld [vmem:[%s2187 + $0x49] sm:$0xff]
      %v2388 = vld [vmem:[%s2187 + $0x51] sm:$0xff]
      %v2389 = vld [vmem:[%s2187 + $0x61] sm:$0xff]
      %v2390 = vld [vmem:[%s2187 + $0x69] sm:$0xff]
      %v2391 = vld [vmem:[%s2187 + $0x79] sm:$0xff]
      %v2392 = vld [vmem:[%s2187 + $0x81] sm:$0xff]
      %v2393 = vld [vmem:[%s2187 + $0x91] sm:$0xff]
      %v2394 = vld [vmem:[%s2187 + $0x99] sm:$0xff]
      %v2395 = vld [vmem:[%s2187 + $0xa9] sm:$0xff]
      %v2396 = vld [vmem:[%s2187 + $0xb1] sm:$0xff]
      %v2397 = vld [vmem:[%s2187 + $0xf1] sm:$0xff]
      %v2398 = vld [vmem:[%s2187 + $0xf9] sm:$0xff]
      %v2399 = vld [vmem:[%s2187 + $0x109] sm:$0xff]
      %v2400 = vld [vmem:[%s2187 + $0x111] sm:$0xff]
      %v2401 = vld [vmem:[%s2187 + $0x121] sm:$0xff]
      %v2402 = vld [vmem:[%s2187 + $0x129] sm:$0xff]
      %v2403 = vld [vmem:[%s2187 + $0x139] sm:$0xff]
      %v2404 = vld [vmem:[%s2187 + $0x141] sm:$0xff]
      %v2405 = vld [vmem:[%s2187 + $0x151] sm:$0xff]
      %v2406 = vld [vmem:[%s2187 + $0x159] sm:$0xff]
      %v2407 = vld [vmem:[%s2187 + $0x169] sm:$0xff]
      %v2408 = vld [vmem:[%s2187 + $0x171] sm:$0xff]
      %v2409 = vld [vmem:[%s2187 + $0x181] sm:$0xff]
      %v2410 = vld [vmem:[%s2187 + $0x189] sm:$0xff]
      %v2411 = vld [vmem:[%s2187 + $0x199] sm:$0xff]
      %v2412 = vld [vmem:[%s2187 + $0x1a1] sm:$0xff]
      %2445 = vrot.lane.b32.xlu0 %v2381, 28
      %v2446 = vpop.permute.xlu0 %2445
      %2447 = vrot.lane.b32.xlu0 %v2382, 28
      %v2448 = vpop.permute.xlu0 %2447
      %2449 = vrot.lane.b32.xlu0 %v2383, 28
      %v2450 = vpop.permute.xlu0 %2449
      %2451 = vrot.lane.b32.xlu0 %v2384, 28
      %v2452 = vpop.permute.xlu0 %2451
      %2453 = vrot.lane.b32.xlu0 %v2385, 28
      %v2454 = vpop.permute.xlu0 %2453
      %2455 = vrot.lane.b32.xlu0 %v2386, 28
      %v2456 = vpop.permute.xlu0 %2455
      %2457 = vrot.lane.b32.xlu0 %v2387, 28
      %v2458 = vpop.permute.xlu0 %2457
      %2459 = vrot.lane.b32.xlu0 %v2388, 28
      %v2460 = vpop.permute.xlu0 %2459
      %2461 = vrot.lane.b32.xlu0 %v2389, 28
      %v2462 = vpop.permute.xlu0 %2461
      %2463 = vrot.lane.b32.xlu0 %v2390, 28
      %v2464 = vpop.permute.xlu0 %2463
      %2465 = vrot.lane.b32.xlu0 %v2391, 28
      %v2466 = vpop.permute.xlu0 %2465
      %2467 = vrot.lane.b32.xlu0 %v2392, 28
      %v2468 = vpop.permute.xlu0 %2467
      %2469 = vrot.lane.b32.xlu0 %v2393, 28
      %v2470 = vpop.permute.xlu0 %2469
      %2471 = vrot.lane.b32.xlu0 %v2394, 28
      %v2472 = vpop.permute.xlu0 %2471
      %2473 = vrot.lane.b32.xlu0 %v2395, 28
      %v2474 = vpop.permute.xlu0 %2473
      %2475 = vrot.lane.b32.xlu0 %v2396, 28
      %v2476 = vpop.permute.xlu0 %2475
      %2477 = vrot.lane.b32.xlu0 %v2397, 28
      %v2478 = vpop.permute.xlu0 %2477
      %2479 = vrot.lane.b32.xlu0 %v2398, 28
      %v2480 = vpop.permute.xlu0 %2479
      %2481 = vrot.lane.b32.xlu0 %v2399, 28
      %v2482 = vpop.permute.xlu0 %2481
      %2483 = vrot.lane.b32.xlu0 %v2400, 28
      %v2484 = vpop.permute.xlu0 %2483
      %2485 = vrot.lane.b32.xlu0 %v2401, 28
      %v2486 = vpop.permute.xlu0 %2485
      %2487 = vrot.lane.b32.xlu0 %v2402, 28
      %v2488 = vpop.permute.xlu0 %2487
      %2489 = vrot.lane.b32.xlu0 %v2403, 28
      %v2490 = vpop.permute.xlu0 %2489
      %2491 = vrot.lane.b32.xlu0 %v2404, 28
      %v2492 = vpop.permute.xlu0 %2491
      %2493 = vrot.lane.b32.xlu0 %v2405, 28
      %v2494 = vpop.permute.xlu0 %2493
      %2495 = vrot.lane.b32.xlu0 %v2406, 28
      %v2496 = vpop.permute.xlu0 %2495
      %2497 = vrot.lane.b32.xlu0 %v2407, 28
      %v2498 = vpop.permute.xlu0 %2497
      %2499 = vrot.lane.b32.xlu0 %v2408, 28
      %v2500 = vpop.permute.xlu0 %2499
      %2501 = vrot.lane.b32.xlu0 %v2409, 28
      %v2502 = vpop.permute.xlu0 %2501
      %2503 = vrot.lane.b32.xlu0 %v2410, 28
      %v2504 = vpop.permute.xlu0 %2503
      %2505 = vrot.lane.b32.xlu0 %v2411, 28
      %v2506 = vpop.permute.xlu0 %2505
      %2507 = vrot.lane.b32.xlu0 %v2412, 28
      %v2508 = vpop.permute.xlu0 %2507
      %vm2541 = vcmask 261344
      %2542 = vst.msk [vmem:[#allocation4] sm:$0xff] %vm2541, %v2446
      %2543 = vst.msk [vmem:[#allocation4 + $0x8] sm:$0xff] %vm2541, %v2448
      %2544 = vst.msk [vmem:[#allocation4 + $0x10] sm:$0xff] %vm2541, %v2450
      %2545 = vst.msk [vmem:[#allocation4 + $0x18] sm:$0xff] %vm2541, %v2452
      %2546 = vst.msk [vmem:[#allocation4 + $0x20] sm:$0xff] %vm2541, %v2454
      %2547 = vst.msk [vmem:[#allocation4 + $0x28] sm:$0xff] %vm2541, %v2456
      %2548 = vst.msk [vmem:[#allocation4 + $0x30] sm:$0xff] %vm2541, %v2458
      %2549 = vst.msk [vmem:[#allocation4 + $0x38] sm:$0xff] %vm2541, %v2460
      %2550 = vst.msk [vmem:[#allocation4 + $0x40] sm:$0xff] %vm2541, %v2462
      %2551 = vst.msk [vmem:[#allocation4 + $0x48] sm:$0xff] %vm2541, %v2464
      %2552 = vst.msk [vmem:[#allocation4 + $0x50] sm:$0xff] %vm2541, %v2466
      %2553 = vst.msk [vmem:[#allocation4 + $0x58] sm:$0xff] %vm2541, %v2468
      %2554 = vst.msk [vmem:[#allocation4 + $0x60] sm:$0xff] %vm2541, %v2470
      %2555 = vst.msk [vmem:[#allocation4 + $0x68] sm:$0xff] %vm2541, %v2472
      %2556 = vst.msk [vmem:[#allocation4 + $0x70] sm:$0xff] %vm2541, %v2474
      %2557 = vst.msk [vmem:[#allocation4 + $0x78] sm:$0xff] %vm2541, %v2476
      %2558 = vst.msk [vmem:[#allocation4 + $0x80] sm:$0xff] %vm2541, %v2478
      %2559 = vst.msk [vmem:[#allocation4 + $0x88] sm:$0xff] %vm2541, %v2480
      %2560 = vst.msk [vmem:[#allocation4 + $0x90] sm:$0xff] %vm2541, %v2482
      %2561 = vst.msk [vmem:[#allocation4 + $0x98] sm:$0xff] %vm2541, %v2484
      %2562 = vst.msk [vmem:[#allocation4 + $0xa0] sm:$0xff] %vm2541, %v2486
      %2563 = vst.msk [vmem:[#allocation4 + $0xa8] sm:$0xff] %vm2541, %v2488
      %2564 = vst.msk [vmem:[#allocation4 + $0xb0] sm:$0xff] %vm2541, %v2490
      %2565 = vst.msk [vmem:[#allocation4 + $0xb8] sm:$0xff] %vm2541, %v2492
      %2566 = vst.msk [vmem:[#allocation4 + $0xc0] sm:$0xff] %vm2541, %v2494
      %2567 = vst.msk [vmem:[#allocation4 + $0xc8] sm:$0xff] %vm2541, %v2496
      %2568 = vst.msk [vmem:[#allocation4 + $0xd0] sm:$0xff] %vm2541, %v2498
      %2569 = vst.msk [vmem:[#allocation4 + $0xd8] sm:$0xff] %vm2541, %v2500
      %2570 = vst.msk [vmem:[#allocation4 + $0xe0] sm:$0xff] %vm2541, %v2502
      %2571 = vst.msk [vmem:[#allocation4 + $0xe8] sm:$0xff] %vm2541, %v2504
      %2572 = vst.msk [vmem:[#allocation4 + $0xf0] sm:$0xff] %vm2541, %v2506
      %2573 = vst.msk [vmem:[#allocation4 + $0xf8] sm:$0xff] %vm2541, %v2508
      %v2574 = vld [vmem:[%s2187 + $0x2] sm:$0xff]
      %v2575 = vld [vmem:[%s2187 + $0xa] sm:$0xff]
      %v2576 = vld [vmem:[%s2187 + $0x1a] sm:$0xff]
      %v2577 = vld [vmem:[%s2187 + $0x22] sm:$0xff]
      %v2578 = vld [vmem:[%s2187 + $0x32] sm:$0xff]
      %v2579 = vld [vmem:[%s2187 + $0x3a] sm:$0xff]
      %v2580 = vld [vmem:[%s2187 + $0x4a] sm:$0xff]
      %v2581 = vld [vmem:[%s2187 + $0x52] sm:$0xff]
      %v2582 = vld [vmem:[%s2187 + $0x62] sm:$0xff]
      %v2583 = vld [vmem:[%s2187 + $0x6a] sm:$0xff]
      %v2584 = vld [vmem:[%s2187 + $0x7a] sm:$0xff]
      %v2585 = vld [vmem:[%s2187 + $0x82] sm:$0xff]
      %v2586 = vld [vmem:[%s2187 + $0x92] sm:$0xff]
      %v2587 = vld [vmem:[%s2187 + $0x9a] sm:$0xff]
      %v2588 = vld [vmem:[%s2187 + $0xaa] sm:$0xff]
      %v2589 = vld [vmem:[%s2187 + $0xb2] sm:$0xff]
      %v2590 = vld [vmem:[%s2187 + $0xf2] sm:$0xff]
      %v2591 = vld [vmem:[%s2187 + $0xfa] sm:$0xff]
      %v2592 = vld [vmem:[%s2187 + $0x10a] sm:$0xff]
      %v2593 = vld [vmem:[%s2187 + $0x112] sm:$0xff]
      %v2594 = vld [vmem:[%s2187 + $0x122] sm:$0xff]
      %v2595 = vld [vmem:[%s2187 + $0x12a] sm:$0xff]
      %v2596 = vld [vmem:[%s2187 + $0x13a] sm:$0xff]
      %v2597 = vld [vmem:[%s2187 + $0x142] sm:$0xff]
      %v2598 = vld [vmem:[%s2187 + $0x152] sm:$0xff]
      %v2599 = vld [vmem:[%s2187 + $0x15a] sm:$0xff]
      %v2600 = vld [vmem:[%s2187 + $0x16a] sm:$0xff]
      %v2601 = vld [vmem:[%s2187 + $0x172] sm:$0xff]
      %v2602 = vld [vmem:[%s2187 + $0x182] sm:$0xff]
      %v2603 = vld [vmem:[%s2187 + $0x18a] sm:$0xff]
      %v2604 = vld [vmem:[%s2187 + $0x19a] sm:$0xff]
      %v2605 = vld [vmem:[%s2187 + $0x1a2] sm:$0xff]
      %2638 = vrot.lane.b32.xlu0 %v2574, 32
      %v2639 = vpop.permute.xlu0 %2638
      %2640 = vrot.lane.b32.xlu0 %v2575, 32
      %v2641 = vpop.permute.xlu0 %2640
      %2642 = vrot.lane.b32.xlu0 %v2576, 32
      %v2643 = vpop.permute.xlu0 %2642
      %2644 = vrot.lane.b32.xlu0 %v2577, 32
      %v2645 = vpop.permute.xlu0 %2644
      %2646 = vrot.lane.b32.xlu0 %v2578, 32
      %v2647 = vpop.permute.xlu0 %2646
      %2648 = vrot.lane.b32.xlu0 %v2579, 32
      %v2649 = vpop.permute.xlu0 %2648
      %2650 = vrot.lane.b32.xlu0 %v2580, 32
      %v2651 = vpop.permute.xlu0 %2650
      %2652 = vrot.lane.b32.xlu0 %v2581, 32
      %v2653 = vpop.permute.xlu0 %2652
      %2654 = vrot.lane.b32.xlu0 %v2582, 32
      %v2655 = vpop.permute.xlu0 %2654
      %2656 = vrot.lane.b32.xlu0 %v2583, 32
      %v2657 = vpop.permute.xlu0 %2656
      %2658 = vrot.lane.b32.xlu0 %v2584, 32
      %v2659 = vpop.permute.xlu0 %2658
      %2660 = vrot.lane.b32.xlu0 %v2585, 32
      %v2661 = vpop.permute.xlu0 %2660
      %2662 = vrot.lane.b32.xlu0 %v2586, 32
      %v2663 = vpop.permute.xlu0 %2662
      %2664 = vrot.lane.b32.xlu0 %v2587, 32
      %v2665 = vpop.permute.xlu0 %2664
      %2666 = vrot.lane.b32.xlu0 %v2588, 32
      %v2667 = vpop.permute.xlu0 %2666
      %2668 = vrot.lane.b32.xlu0 %v2589, 32
      %v2669 = vpop.permute.xlu0 %2668
      %2670 = vrot.lane.b32.xlu0 %v2590, 32
      %v2671 = vpop.permute.xlu0 %2670
      %2672 = vrot.lane.b32.xlu0 %v2591, 32
      %v2673 = vpop.permute.xlu0 %2672
      %2674 = vrot.lane.b32.xlu0 %v2592, 32
      %v2675 = vpop.permute.xlu0 %2674
      %2676 = vrot.lane.b32.xlu0 %v2593, 32
      %v2677 = vpop.permute.xlu0 %2676
      %2678 = vrot.lane.b32.xlu0 %v2594, 32
      %v2679 = vpop.permute.xlu0 %2678
      %2680 = vrot.lane.b32.xlu0 %v2595, 32
      %v2681 = vpop.permute.xlu0 %2680
      %2682 = vrot.lane.b32.xlu0 %v2596, 32
      %v2683 = vpop.permute.xlu0 %2682
      %2684 = vrot.lane.b32.xlu0 %v2597, 32
      %v2685 = vpop.permute.xlu0 %2684
      %2686 = vrot.lane.b32.xlu0 %v2598, 32
      %v2687 = vpop.permute.xlu0 %2686
      %2688 = vrot.lane.b32.xlu0 %v2599, 32
      %v2689 = vpop.permute.xlu0 %2688
      %2690 = vrot.lane.b32.xlu0 %v2600, 32
      %v2691 = vpop.permute.xlu0 %2690
      %2692 = vrot.lane.b32.xlu0 %v2601, 32
      %v2693 = vpop.permute.xlu0 %2692
      %2694 = vrot.lane.b32.xlu0 %v2602, 32
      %v2695 = vpop.permute.xlu0 %2694
      %2696 = vrot.lane.b32.xlu0 %v2603, 32
      %v2697 = vpop.permute.xlu0 %2696
      %2698 = vrot.lane.b32.xlu0 %v2604, 32
      %v2699 = vpop.permute.xlu0 %2698
      %2700 = vrot.lane.b32.xlu0 %v2605, 32
      %v2701 = vpop.permute.xlu0 %2700
      %vm2734 = vcmask 294144
      %2735 = vst.msk [vmem:[#allocation4] sm:$0xff] %vm2734, %v2639
      %2736 = vst.msk [vmem:[#allocation4 + $0x8] sm:$0xff] %vm2734, %v2641
      %2737 = vst.msk [vmem:[#allocation4 + $0x10] sm:$0xff] %vm2734, %v2643
      %2738 = vst.msk [vmem:[#allocation4 + $0x18] sm:$0xff] %vm2734, %v2645
      %2739 = vst.msk [vmem:[#allocation4 + $0x20] sm:$0xff] %vm2734, %v2647
      %2740 = vst.msk [vmem:[#allocation4 + $0x28] sm:$0xff] %vm2734, %v2649
      %2741 = vst.msk [vmem:[#allocation4 + $0x30] sm:$0xff] %vm2734, %v2651
      %2742 = vst.msk [vmem:[#allocation4 + $0x38] sm:$0xff] %vm2734, %v2653
      %2743 = vst.msk [vmem:[#allocation4 + $0x40] sm:$0xff] %vm2734, %v2655
      %2744 = vst.msk [vmem:[#allocation4 + $0x48] sm:$0xff] %vm2734, %v2657
      %2745 = vst.msk [vmem:[#allocation4 + $0x50] sm:$0xff] %vm2734, %v2659
      %2746 = vst.msk [vmem:[#allocation4 + $0x58] sm:$0xff] %vm2734, %v2661
      %2747 = vst.msk [vmem:[#allocation4 + $0x60] sm:$0xff] %vm2734, %v2663
      %2748 = vst.msk [vmem:[#allocation4 + $0x68] sm:$0xff] %vm2734, %v2665
      %2749 = vst.msk [vmem:[#allocation4 + $0x70] sm:$0xff] %vm2734, %v2667
      %2750 = vst.msk [vmem:[#allocation4 + $0x78] sm:$0xff] %vm2734, %v2669
      %2751 = vst.msk [vmem:[#allocation4 + $0x80] sm:$0xff] %vm2734, %v2671
      %2752 = vst.msk [vmem:[#allocation4 + $0x88] sm:$0xff] %vm2734, %v2673
      %2753 = vst.msk [vmem:[#allocation4 + $0x90] sm:$0xff] %vm2734, %v2675
      %2754 = vst.msk [vmem:[#allocation4 + $0x98] sm:$0xff] %vm2734, %v2677
      %2755 = vst.msk [vmem:[#allocation4 + $0xa0] sm:$0xff] %vm2734, %v2679
      %2756 = vst.msk [vmem:[#allocation4 + $0xa8] sm:$0xff] %vm2734, %v2681
      %2757 = vst.msk [vmem:[#allocation4 + $0xb0] sm:$0xff] %vm2734, %v2683
      %2758 = vst.msk [vmem:[#allocation4 + $0xb8] sm:$0xff] %vm2734, %v2685
      %2759 = vst.msk [vmem:[#allocation4 + $0xc0] sm:$0xff] %vm2734, %v2687
      %2760 = vst.msk [vmem:[#allocation4 + $0xc8] sm:$0xff] %vm2734, %v2689
      %2761 = vst.msk [vmem:[#allocation4 + $0xd0] sm:$0xff] %vm2734, %v2691
      %2762 = vst.msk [vmem:[#allocation4 + $0xd8] sm:$0xff] %vm2734, %v2693
      %2763 = vst.msk [vmem:[#allocation4 + $0xe0] sm:$0xff] %vm2734, %v2695
      %2764 = vst.msk [vmem:[#allocation4 + $0xe8] sm:$0xff] %vm2734, %v2697
      %2765 = vst.msk [vmem:[#allocation4 + $0xf0] sm:$0xff] %vm2734, %v2699
      %2766 = vst.msk [vmem:[#allocation4 + $0xf8] sm:$0xff] %vm2734, %v2701
      %v2767 = vld [vmem:[#allocation4] sm:$0xff]
      %v2768 = vld [vmem:[#allocation4 + $0x8] sm:$0xff]
      %v2769 = vld [vmem:[#allocation4 + $0x10] sm:$0xff]
      %v2770 = vld [vmem:[#allocation4 + $0x18] sm:$0xff]
      %v2771 = vld [vmem:[#allocation4 + $0x20] sm:$0xff]
      %v2772 = vld [vmem:[#allocation4 + $0x28] sm:$0xff]
      %v2773 = vld [vmem:[#allocation4 + $0x30] sm:$0xff]
      %v2774 = vld [vmem:[#allocation4 + $0x38] sm:$0xff]
      %v2775 = vld [vmem:[#allocation4 + $0x40] sm:$0xff]
      %v2776 = vld [vmem:[#allocation4 + $0x48] sm:$0xff]
      %v2777 = vld [vmem:[#allocation4 + $0x50] sm:$0xff]
      %v2778 = vld [vmem:[#allocation4 + $0x58] sm:$0xff]
      %v2779 = vld [vmem:[#allocation4 + $0x60] sm:$0xff]
      %v2780 = vld [vmem:[#allocation4 + $0x68] sm:$0xff]
      %v2781 = vld [vmem:[#allocation4 + $0x70] sm:$0xff]
      %v2782 = vld [vmem:[#allocation4 + $0x78] sm:$0xff]
      %v2783 = vld [vmem:[#allocation4 + $0x80] sm:$0xff]
      %v2784 = vld [vmem:[#allocation4 + $0x88] sm:$0xff]
      %v2785 = vld [vmem:[#allocation4 + $0x90] sm:$0xff]
      %v2786 = vld [vmem:[#allocation4 + $0x98] sm:$0xff]
      %v2787 = vld [vmem:[#allocation4 + $0xa0] sm:$0xff]
      %v2788 = vld [vmem:[#allocation4 + $0xa8] sm:$0xff]
      %v2789 = vld [vmem:[#allocation4 + $0xb0] sm:$0xff]
      %v2790 = vld [vmem:[#allocation4 + $0xb8] sm:$0xff]
      %v2791 = vld [vmem:[#allocation4 + $0xc0] sm:$0xff]
      %v2792 = vld [vmem:[#allocation4 + $0xc8] sm:$0xff]
      %v2793 = vld [vmem:[#allocation4 + $0xd0] sm:$0xff]
      %v2794 = vld [vmem:[#allocation4 + $0xd8] sm:$0xff]
      %v2795 = vld [vmem:[#allocation4 + $0xe0] sm:$0xff]
      %v2796 = vld [vmem:[#allocation4 + $0xe8] sm:$0xff]
      %v2797 = vld [vmem:[#allocation4 + $0xf0] sm:$0xff]
      %v2798 = vld [vmem:[#allocation4 + $0xf8] sm:$0xff]
      %v2799 = vld [vmem:[%s2] sm:$0xff]
      %v2800 = vld [vmem:[%s2 + $0x8] sm:$0xff]
      %v2801 = vld [vmem:[%s2 + $0x10] sm:$0xff]
      %v2802 = vld [vmem:[%s2 + $0x18] sm:$0xff]
      %v2803 = vld [vmem:[%s2 + $0x20] sm:$0xf]
      %v2804 = vld [vmem:[%s3] sm:$0x1]
      %v2806 = vperm.slane %v2804, 0
      %vm2808 = vcmask 293888
      %v2810 = vsel %vm2808, %v2767, 0
      %v2813 = vsel %vm2808, %v2768, 0
      %v2816 = vsel %vm2808, %v2769, 0
      %v2819 = vsel %vm2808, %v2770, 0
      %v2822 = vsel %vm2808, %v2771, 0
      %v2825 = vsel %vm2808, %v2772, 0
      %v2828 = vsel %vm2808, %v2773, 0
      %v2831 = vsel %vm2808, %v2774, 0
      %v2834 = vsel %vm2808, %v2775, 0
      %v2837 = vsel %vm2808, %v2776, 0
      %v2840 = vsel %vm2808, %v2777, 0
      %v2843 = vsel %vm2808, %v2778, 0
      %v2846 = vsel %vm2808, %v2779, 0
      %v2849 = vsel %vm2808, %v2780, 0
      %v2852 = vsel %vm2808, %v2781, 0
      %v2855 = vsel %vm2808, %v2782, 0
      %v2858 = vsel %vm2808, %v2783, 0
      %v2861 = vsel %vm2808, %v2784, 0
      %v2864 = vsel %vm2808, %v2785, 0
      %v2867 = vsel %vm2808, %v2786, 0
      %v2870 = vsel %vm2808, %v2787, 0
      %v2873 = vsel %vm2808, %v2788, 0
      %v2876 = vsel %vm2808, %v2789, 0
      %v2879 = vsel %vm2808, %v2790, 0
      %v2882 = vsel %vm2808, %v2791, 0
      %v2885 = vsel %vm2808, %v2792, 0
      %v2888 = vsel %vm2808, %v2793, 0
      %v2891 = vsel %vm2808, %v2794, 0
      %v2894 = vsel %vm2808, %v2795, 0
      %v2897 = vsel %vm2808, %v2796, 0
      %v2900 = vsel %vm2808, %v2797, 0
      %v2903 = vsel %vm2808, %v2798, 0
      %vm2905 = vcmask 1043456
      %v2907 = vsel %vm2905, %v2803, 0
      %2909 = vmatpush.msra.mxu0 0.0
      %2910 = vmatpush.msra.mxu0 0.0
      %2911 = vmatpush.msra.mxu0 0.0
      %2912 = vmatpush.msra.mxu0 0.0
      %2913 = vmatpush.msra.mxu0 0.0
      %2914 = vmatpush.msra.mxu0 0.0
      %2915 = vmatpush.msra.mxu0 0.0
      %2916 = vmatpush.msra.mxu0 0.0
      %2917 = vmatpush.msra.mxu0 0.0
      %2918 = vmatpush.msra.mxu0 0.0
      %2919 = vmatpush.msra.mxu0 0.0
      %2920 = vmatpush.msra.mxu0 %v2907
      %2921 = vmatpush.msra.mxu0 %v2802
      %2922 = vmatpush.msra.mxu0 %v2801
      %2923 = vmatpush.msra.mxu0 %v2800
      %2924 = vmatpush.msra.mxu0 %v2799
      %2925 = vmatmul.f32.gmra.mxu0 %v2810
      %v2926 = vpop.f32.mrf.mxu0
      %v2927 = vadd.f32 %v2806, %v2926
      %2928 = vmatmul.f32.gmra.mxu0 %v2813
      %v2929 = vpop.f32.mrf.mxu0
      %v2930 = vadd.f32 %v2806, %v2929
      %2931 = vmatmul.f32.gmra.mxu0 %v2816
      %v2932 = vpop.f32.mrf.mxu0
      %v2933 = vadd.f32 %v2806, %v2932
      %2934 = vmatmul.f32.gmra.mxu0 %v2819
      %v2935 = vpop.f32.mrf.mxu0
      %v2936 = vadd.f32 %v2806, %v2935
      %2937 = vmatmul.f32.gmra.mxu0 %v2822
      %v2938 = vpop.f32.mrf.mxu0
      %v2939 = vadd.f32 %v2806, %v2938
      %2940 = vmatmul.f32.gmra.mxu0 %v2825
      %v2941 = vpop.f32.mrf.mxu0
      %v2942 = vadd.f32 %v2806, %v2941
      %2943 = vmatmul.f32.gmra.mxu0 %v2828
      %v2944 = vpop.f32.mrf.mxu0
      %v2945 = vadd.f32 %v2806, %v2944
      %2946 = vmatmul.f32.gmra.mxu0 %v2831
      %v2947 = vpop.f32.mrf.mxu0
      %v2948 = vadd.f32 %v2806, %v2947
      %2949 = vmatmul.f32.gmra.mxu0 %v2834
      %v2950 = vpop.f32.mrf.mxu0
      %v2951 = vadd.f32 %v2806, %v2950
      %2952 = vmatmul.f32.gmra.mxu0 %v2837
      %v2953 = vpop.f32.mrf.mxu0
      %v2954 = vadd.f32 %v2806, %v2953
      %2955 = vmatmul.f32.gmra.mxu0 %v2840
      %v2956 = vpop.f32.mrf.mxu0
      %v2957 = vadd.f32 %v2806, %v2956
      %2958 = vmatmul.f32.gmra.mxu0 %v2843
      %v2959 = vpop.f32.mrf.mxu0
      %v2960 = vadd.f32 %v2806, %v2959
      %2961 = vmatmul.f32.gmra.mxu0 %v2846
      %v2962 = vpop.f32.mrf.mxu0
      %v2963 = vadd.f32 %v2806, %v2962
      %2964 = vmatmul.f32.gmra.mxu0 %v2849
      %v2965 = vpop.f32.mrf.mxu0
      %v2966 = vadd.f32 %v2806, %v2965
      %2967 = vmatmul.f32.gmra.mxu0 %v2852
      %v2968 = vpop.f32.mrf.mxu0
      %v2969 = vadd.f32 %v2806, %v2968
      %2970 = vmatmul.f32.gmra.mxu0 %v2855
      %v2971 = vpop.f32.mrf.mxu0
      %v2972 = vadd.f32 %v2806, %v2971
      %2973 = vmatmul.f32.gmra.mxu0 %v2858
      %v2974 = vpop.f32.mrf.mxu0
      %v2975 = vadd.f32 %v2806, %v2974
      %2976 = vmatmul.f32.gmra.mxu0 %v2861
      %v2977 = vpop.f32.mrf.mxu0
      %v2978 = vadd.f32 %v2806, %v2977
      %2979 = vmatmul.f32.gmra.mxu0 %v2864
      %v2980 = vpop.f32.mrf.mxu0
      %v2981 = vadd.f32 %v2806, %v2980
      %2982 = vmatmul.f32.gmra.mxu0 %v2867
      %v2983 = vpop.f32.mrf.mxu0
      %v2984 = vadd.f32 %v2806, %v2983
      %2985 = vmatmul.f32.gmra.mxu0 %v2870
      %v2986 = vpop.f32.mrf.mxu0
      %v2987 = vadd.f32 %v2806, %v2986
      %2988 = vmatmul.f32.gmra.mxu0 %v2873
      %v2989 = vpop.f32.mrf.mxu0
      %v2990 = vadd.f32 %v2806, %v2989
      %2991 = vmatmul.f32.gmra.mxu0 %v2876
      %v2992 = vpop.f32.mrf.mxu0
      %v2993 = vadd.f32 %v2806, %v2992
      %2994 = vmatmul.f32.gmra.mxu0 %v2879
      %v2995 = vpop.f32.mrf.mxu0
      %v2996 = vadd.f32 %v2806, %v2995
      %2997 = vmatmul.f32.gmra.mxu0 %v2882
      %v2998 = vpop.f32.mrf.mxu0
      %v2999 = vadd.f32 %v2806, %v2998
      %3000 = vmatmul.f32.gmra.mxu0 %v2885
      %v3001 = vpop.f32.mrf.mxu0
      %v3002 = vadd.f32 %v2806, %v3001
      %3003 = vmatmul.f32.gmra.mxu0 %v2888
      %v3004 = vpop.f32.mrf.mxu0
      %v3005 = vadd.f32 %v2806, %v3004
      %3006 = vmatmul.f32.gmra.mxu0 %v2891
      %v3007 = vpop.f32.mrf.mxu0
      %v3008 = vadd.f32 %v2806, %v3007
      %3009 = vmatmul.f32.gmra.mxu0 %v2894
      %v3010 = vpop.f32.mrf.mxu0
      %v3011 = vadd.f32 %v2806, %v3010
      %3012 = vmatmul.f32.gmra.mxu0 %v2897
      %v3013 = vpop.f32.mrf.mxu0
      %v3014 = vadd.f32 %v2806, %v3013
      %3015 = vmatmul.f32.gmra.mxu0 %v2900
      %v3016 = vpop.f32.mrf.mxu0
      %v3017 = vadd.f32 %v2806, %v3016
      %3018 = vmatmul.f32.gmra.mxu0 %v2903
      %v3019 = vpop.f32.mrf.mxu0
      %v3020 = vadd.f32 %v2806, %v3019
      %3021 = vdwg.mxu0
      %v3022 = vmax.f32 %v2927, 0.0
      %v3023 = vmax.f32 %v2930, 0.0
      %v3024 = vmax.f32 %v2933, 0.0
      %v3025 = vmax.f32 %v2936, 0.0
      %v3026 = vmax.f32 %v2939, 0.0
      %v3027 = vmax.f32 %v2942, 0.0
      %v3028 = vmax.f32 %v2945, 0.0
      %v3029 = vmax.f32 %v2948, 0.0
      %v3030 = vmax.f32 %v2951, 0.0
      %v3031 = vmax.f32 %v2954, 0.0
      %v3032 = vmax.f32 %v2957, 0.0
      %v3033 = vmax.f32 %v2960, 0.0
      %v3034 = vmax.f32 %v2963, 0.0
      %v3035 = vmax.f32 %v2966, 0.0
      %v3036 = vmax.f32 %v2969, 0.0
      %v3037 = vmax.f32 %v2972, 0.0
      %v3038 = vmax.f32 %v2975, 0.0
      %v3039 = vmax.f32 %v2978, 0.0
      %v3040 = vmax.f32 %v2981, 0.0
      %v3041 = vmax.f32 %v2984, 0.0
      %v3042 = vmax.f32 %v2987, 0.0
      %v3043 = vmax.f32 %v2990, 0.0
      %v3044 = vmax.f32 %v2993, 0.0
      %v3045 = vmax.f32 %v2996, 0.0
      %v3046 = vmax.f32 %v2999, 0.0
      %v3047 = vmax.f32 %v3002, 0.0
      %v3048 = vmax.f32 %v3005, 0.0
      %v3049 = vmax.f32 %v3008, 0.0
      %v3050 = vmax.f32 %v3011, 0.0
      %v3051 = vmax.f32 %v3014, 0.0
      %v3052 = vmax.f32 %v3017, 0.0
      %v3053 = vmax.f32 %v3020, 0.0
      %s3054 = scalar_lea.vmem [#allocation3], 24
      %3055 = vst.msk [vmem:[%s3054 + $0x1] sm:$0xff] %vm419, %v3022
      %3056 = vst.msk [vmem:[%s3054 + $0x9] sm:$0xff] %vm419, %v3023
      %3057 = vst.msk [vmem:[%s3054 + $0x19] sm:$0xff] %vm419, %v3024
      %3058 = vst.msk [vmem:[%s3054 + $0x21] sm:$0xff] %vm419, %v3025
      %3059 = vst.msk [vmem:[%s3054 + $0x31] sm:$0xff] %vm419, %v3026
      %3060 = vst.msk [vmem:[%s3054 + $0x39] sm:$0xff] %vm419, %v3027
      %3061 = vst.msk [vmem:[%s3054 + $0x49] sm:$0xff] %vm419, %v3028
      %3062 = vst.msk [vmem:[%s3054 + $0x51] sm:$0xff] %vm419, %v3029
      %3063 = vst.msk [vmem:[%s3054 + $0x61] sm:$0xff] %vm419, %v3030
      %3064 = vst.msk [vmem:[%s3054 + $0x69] sm:$0xff] %vm419, %v3031
      %3065 = vst.msk [vmem:[%s3054 + $0x79] sm:$0xff] %vm419, %v3032
      %3066 = vst.msk [vmem:[%s3054 + $0x81] sm:$0xff] %vm419, %v3033
      %3067 = vst.msk [vmem:[%s3054 + $0x91] sm:$0xff] %vm419, %v3034
      %3068 = vst.msk [vmem:[%s3054 + $0x99] sm:$0xff] %vm419, %v3035
      %3069 = vst.msk [vmem:[%s3054 + $0xa9] sm:$0xff] %vm419, %v3036
      %3070 = vst.msk [vmem:[%s3054 + $0xb1] sm:$0xff] %vm419, %v3037
      %3071 = vst.msk [vmem:[%s3054 + $0xf1] sm:$0xff] %vm419, %v3038
      %3072 = vst.msk [vmem:[%s3054 + $0xf9] sm:$0xff] %vm419, %v3039
      %3073 = vst.msk [vmem:[%s3054 + $0x109] sm:$0xff] %vm419, %v3040
      %3074 = vst.msk [vmem:[%s3054 + $0x111] sm:$0xff] %vm419, %v3041
      %3075 = vst.msk [vmem:[%s3054 + $0x121] sm:$0xff] %vm419, %v3042
      %3076 = vst.msk [vmem:[%s3054 + $0x129] sm:$0xff] %vm419, %v3043
      %3077 = vst.msk [vmem:[%s3054 + $0x139] sm:$0xff] %vm419, %v3044
      %3078 = vst.msk [vmem:[%s3054 + $0x141] sm:$0xff] %vm419, %v3045
      %3079 = vst.msk [vmem:[%s3054 + $0x151] sm:$0xff] %vm419, %v3046
      %3080 = vst.msk [vmem:[%s3054 + $0x159] sm:$0xff] %vm419, %v3047
      %3081 = vst.msk [vmem:[%s3054 + $0x169] sm:$0xff] %vm419, %v3048
      %3082 = vst.msk [vmem:[%s3054 + $0x171] sm:$0xff] %vm419, %v3049
      %3083 = vst.msk [vmem:[%s3054 + $0x181] sm:$0xff] %vm419, %v3050
      %3084 = vst.msk [vmem:[%s3054 + $0x189] sm:$0xff] %vm419, %v3051
      %3085 = vst.msk [vmem:[%s3054 + $0x199] sm:$0xff] %vm419, %v3052
      %3086 = vst.msk [vmem:[%s3054 + $0x1a1] sm:$0xff] %vm419, %v3053
      %v3087 = vld [vmem:[#allocation3] sm:$0xff]
      %v3088 = vld [vmem:[#allocation3 + $0x8] sm:$0xff]
      %v3089 = vld [vmem:[#allocation3 + $0x18] sm:$0xff]
      %v3090 = vld [vmem:[#allocation3 + $0x20] sm:$0xff]
      %v3091 = vld [vmem:[#allocation3 + $0x30] sm:$0xff]
      %v3092 = vld [vmem:[#allocation3 + $0x38] sm:$0xff]
      %v3093 = vld [vmem:[#allocation3 + $0x48] sm:$0xff]
      %v3094 = vld [vmem:[#allocation3 + $0x50] sm:$0xff]
      %v3095 = vld [vmem:[#allocation3 + $0x60] sm:$0xff]
      %v3096 = vld [vmem:[#allocation3 + $0x68] sm:$0xff]
      %v3097 = vld [vmem:[#allocation3 + $0x78] sm:$0xff]
      %v3098 = vld [vmem:[#allocation3 + $0x80] sm:$0xff]
      %v3099 = vld [vmem:[#allocation3 + $0x90] sm:$0xff]
      %v3100 = vld [vmem:[#allocation3 + $0x98] sm:$0xff]
      %v3101 = vld [vmem:[#allocation3 + $0xa8] sm:$0xff]
      %v3102 = vld [vmem:[#allocation3 + $0xb0] sm:$0xff]
      %v3103 = vld [vmem:[#allocation3 + $0xf0] sm:$0xff]
      %v3104 = vld [vmem:[#allocation3 + $0xf8] sm:$0xff]
      %v3105 = vld [vmem:[#allocation3 + $0x108] sm:$0xff]
      %v3106 = vld [vmem:[#allocation3 + $0x110] sm:$0xff]
      %v3107 = vld [vmem:[#allocation3 + $0x120] sm:$0xff]
      %v3108 = vld [vmem:[#allocation3 + $0x128] sm:$0xff]
      %v3109 = vld [vmem:[#allocation3 + $0x138] sm:$0xff]
      %v3110 = vld [vmem:[#allocation3 + $0x140] sm:$0xff]
      %v3111 = vld [vmem:[#allocation3 + $0x150] sm:$0xff]
      %v3112 = vld [vmem:[#allocation3 + $0x158] sm:$0xff]
      %v3113 = vld [vmem:[#allocation3 + $0x168] sm:$0xff]
      %v3114 = vld [vmem:[#allocation3 + $0x170] sm:$0xff]
      %v3115 = vld [vmem:[#allocation3 + $0x180] sm:$0xff]
      %v3116 = vld [vmem:[#allocation3 + $0x188] sm:$0xff]
      %v3117 = vld [vmem:[#allocation3 + $0x198] sm:$0xff]
      %v3118 = vld [vmem:[#allocation3 + $0x1a0] sm:$0xff]
      %3119 = vst.msk [vmem:[#allocation5] sm:$0xff] %vm419, %v3087
      %3120 = vst.msk [vmem:[#allocation5 + $0x18] sm:$0xff] %vm419, %v3088
      %3121 = vst.msk [vmem:[#allocation5 + $0x30] sm:$0xff] %vm419, %v3089
      %3122 = vst.msk [vmem:[#allocation5 + $0x48] sm:$0xff] %vm419, %v3090
      %3123 = vst.msk [vmem:[#allocation5 + $0x60] sm:$0xff] %vm419, %v3091
      %3124 = vst.msk [vmem:[#allocation5 + $0x78] sm:$0xff] %vm419, %v3092
      %3125 = vst.msk [vmem:[#allocation5 + $0x90] sm:$0xff] %vm419, %v3093
      %3126 = vst.msk [vmem:[#allocation5 + $0xa8] sm:$0xff] %vm419, %v3094
      %3127 = vst.msk [vmem:[#allocation5 + $0xc0] sm:$0xff] %vm419, %v3095
      %3128 = vst.msk [vmem:[#allocation5 + $0xd8] sm:$0xff] %vm419, %v3096
      %3129 = vst.msk [vmem:[#allocation5 + $0xf0] sm:$0xff] %vm419, %v3097
      %3130 = vst.msk [vmem:[#allocation5 + $0x108] sm:$0xff] %vm419, %v3098
      %3131 = vst.msk [vmem:[#allocation5 + $0x120] sm:$0xff] %vm419, %v3099
      %3132 = vst.msk [vmem:[#allocation5 + $0x138] sm:$0xff] %vm419, %v3100
      %3133 = vst.msk [vmem:[#allocation5 + $0x150] sm:$0xff] %vm419, %v3101
      %3134 = vst.msk [vmem:[#allocation5 + $0x168] sm:$0xff] %vm419, %v3102
      %3135 = vst.msk [vmem:[#allocation5 + $0x180] sm:$0xff] %vm419, %v3103
      %3136 = vst.msk [vmem:[#allocation5 + $0x198] sm:$0xff] %vm419, %v3104
      %3137 = vst.msk [vmem:[#allocation5 + $0x1b0] sm:$0xff] %vm419, %v3105
      %3138 = vst.msk [vmem:[#allocation5 + $0x1c8] sm:$0xff] %vm419, %v3106
      %3139 = vst.msk [vmem:[#allocation5 + $0x1e0] sm:$0xff] %vm419, %v3107
      %3140 = vst.msk [vmem:[#allocation5 + $0x1f8] sm:$0xff] %vm419, %v3108
      %3141 = vst.msk [vmem:[#allocation5 + $0x210] sm:$0xff] %vm419, %v3109
      %3142 = vst.msk [vmem:[#allocation5 + $0x228] sm:$0xff] %vm419, %v3110
      %3143 = vst.msk [vmem:[#allocation5 + $0x240] sm:$0xff] %vm419, %v3111
      %3144 = vst.msk [vmem:[#allocation5 + $0x258] sm:$0xff] %vm419, %v3112
      %3145 = vst.msk [vmem:[#allocation5 + $0x270] sm:$0xff] %vm419, %v3113
      %3146 = vst.msk [vmem:[#allocation5 + $0x288] sm:$0xff] %vm419, %v3114
      %3147 = vst.msk [vmem:[#allocation5 + $0x2a0] sm:$0xff] %vm419, %v3115
      %3148 = vst.msk [vmem:[#allocation5 + $0x2b8] sm:$0xff] %vm419, %v3116
      %3149 = vst.msk [vmem:[#allocation5 + $0x2d0] sm:$0xff] %vm419, %v3117
      %3150 = vst.msk [vmem:[#allocation5 + $0x2e8] sm:$0xff] %vm419, %v3118
      %v3151 = vld [vmem:[#allocation3 + $0x1] sm:$0xff]
      %v3152 = vld [vmem:[#allocation3 + $0x9] sm:$0xff]
      %v3153 = vld [vmem:[#allocation3 + $0x19] sm:$0xff]
      %v3154 = vld [vmem:[#allocation3 + $0x21] sm:$0xff]
      %v3155 = vld [vmem:[#allocation3 + $0x31] sm:$0xff]
      %v3156 = vld [vmem:[#allocation3 + $0x39] sm:$0xff]
      %v3157 = vld [vmem:[#allocation3 + $0x49] sm:$0xff]
      %v3158 = vld [vmem:[#allocation3 + $0x51] sm:$0xff]
      %v3159 = vld [vmem:[#allocation3 + $0x61] sm:$0xff]
      %v3160 = vld [vmem:[#allocation3 + $0x69] sm:$0xff]
      %v3161 = vld [vmem:[#allocation3 + $0x79] sm:$0xff]
      %v3162 = vld [vmem:[#allocation3 + $0x81] sm:$0xff]
      %v3163 = vld [vmem:[#allocation3 + $0x91] sm:$0xff]
      %v3164 = vld [vmem:[#allocation3 + $0x99] sm:$0xff]
      %v3165 = vld [vmem:[#allocation3 + $0xa9] sm:$0xff]
      %v3166 = vld [vmem:[#allocation3 + $0xb1] sm:$0xff]
      %v3167 = vld [vmem:[#allocation3 + $0xf1] sm:$0xff]
      %v3168 = vld [vmem:[#allocation3 + $0xf9] sm:$0xff]
      %v3169 = vld [vmem:[#allocation3 + $0x109] sm:$0xff]
      %v3170 = vld [vmem:[#allocation3 + $0x111] sm:$0xff]
      %v3171 = vld [vmem:[#allocation3 + $0x121] sm:$0xff]
      %v3172 = vld [vmem:[#allocation3 + $0x129] sm:$0xff]
      %v3173 = vld [vmem:[#allocation3 + $0x139] sm:$0xff]
      %v3174 = vld [vmem:[#allocation3 + $0x141] sm:$0xff]
      %v3175 = vld [vmem:[#allocation3 + $0x151] sm:$0xff]
      %v3176 = vld [vmem:[#allocation3 + $0x159] sm:$0xff]
      %v3177 = vld [vmem:[#allocation3 + $0x169] sm:$0xff]
      %v3178 = vld [vmem:[#allocation3 + $0x171] sm:$0xff]
      %v3179 = vld [vmem:[#allocation3 + $0x181] sm:$0xff]
      %v3180 = vld [vmem:[#allocation3 + $0x189] sm:$0xff]
      %v3181 = vld [vmem:[#allocation3 + $0x199] sm:$0xff]
      %v3182 = vld [vmem:[#allocation3 + $0x1a1] sm:$0xff]
      %3215 = vrot.lane.b32.xlu0 %v3151, 32
      %v3216 = vpop.permute.xlu0 %3215
      %3217 = vrot.lane.b32.xlu0 %v3152, 32
      %v3218 = vpop.permute.xlu0 %3217
      %3219 = vrot.lane.b32.xlu0 %v3153, 32
      %v3220 = vpop.permute.xlu0 %3219
      %3221 = vrot.lane.b32.xlu0 %v3154, 32
      %v3222 = vpop.permute.xlu0 %3221
      %3223 = vrot.lane.b32.xlu0 %v3155, 32
      %v3224 = vpop.permute.xlu0 %3223
      %3225 = vrot.lane.b32.xlu0 %v3156, 32
      %v3226 = vpop.permute.xlu0 %3225
      %3227 = vrot.lane.b32.xlu0 %v3157, 32
      %v3228 = vpop.permute.xlu0 %3227
      %3229 = vrot.lane.b32.xlu0 %v3158, 32
      %v3230 = vpop.permute.xlu0 %3229
      %3231 = vrot.lane.b32.xlu0 %v3159, 32
      %v3232 = vpop.permute.xlu0 %3231
      %3233 = vrot.lane.b32.xlu0 %v3160, 32
      %v3234 = vpop.permute.xlu0 %3233
      %3235 = vrot.lane.b32.xlu0 %v3161, 32
      %v3236 = vpop.permute.xlu0 %3235
      %3237 = vrot.lane.b32.xlu0 %v3162, 32
      %v3238 = vpop.permute.xlu0 %3237
      %3239 = vrot.lane.b32.xlu0 %v3163, 32
      %v3240 = vpop.permute.xlu0 %3239
      %3241 = vrot.lane.b32.xlu0 %v3164, 32
      %v3242 = vpop.permute.xlu0 %3241
      %3243 = vrot.lane.b32.xlu0 %v3165, 32
      %v3244 = vpop.permute.xlu0 %3243
      %3245 = vrot.lane.b32.xlu0 %v3166, 32
      %v3246 = vpop.permute.xlu0 %3245
      %3247 = vrot.lane.b32.xlu0 %v3167, 32
      %v3248 = vpop.permute.xlu0 %3247
      %3249 = vrot.lane.b32.xlu0 %v3168, 32
      %v3250 = vpop.permute.xlu0 %3249
      %3251 = vrot.lane.b32.xlu0 %v3169, 32
      %v3252 = vpop.permute.xlu0 %3251
      %3253 = vrot.lane.b32.xlu0 %v3170, 32
      %v3254 = vpop.permute.xlu0 %3253
      %3255 = vrot.lane.b32.xlu0 %v3171, 32
      %v3256 = vpop.permute.xlu0 %3255
      %3257 = vrot.lane.b32.xlu0 %v3172, 32
      %v3258 = vpop.permute.xlu0 %3257
      %3259 = vrot.lane.b32.xlu0 %v3173, 32
      %v3260 = vpop.permute.xlu0 %3259
      %3261 = vrot.lane.b32.xlu0 %v3174, 32
      %v3262 = vpop.permute.xlu0 %3261
      %3263 = vrot.lane.b32.xlu0 %v3175, 32
      %v3264 = vpop.permute.xlu0 %3263
      %3265 = vrot.lane.b32.xlu0 %v3176, 32
      %v3266 = vpop.permute.xlu0 %3265
      %3267 = vrot.lane.b32.xlu0 %v3177, 32
      %v3268 = vpop.permute.xlu0 %3267
      %3269 = vrot.lane.b32.xlu0 %v3178, 32
      %v3270 = vpop.permute.xlu0 %3269
      %3271 = vrot.lane.b32.xlu0 %v3179, 32
      %v3272 = vpop.permute.xlu0 %3271
      %3273 = vrot.lane.b32.xlu0 %v3180, 32
      %v3274 = vpop.permute.xlu0 %3273
      %3275 = vrot.lane.b32.xlu0 %v3181, 32
      %v3276 = vpop.permute.xlu0 %3275
      %3277 = vrot.lane.b32.xlu0 %v3182, 32
      %v3278 = vpop.permute.xlu0 %3277
      %vm3311 = vcmask 523520
      %3312 = vst.msk [vmem:[#allocation5] sm:$0xff] %vm3311, %v3216
      %3313 = vst.msk [vmem:[#allocation5 + $0x18] sm:$0xff] %vm3311, %v3218
      %3314 = vst.msk [vmem:[#allocation5 + $0x30] sm:$0xff] %vm3311, %v3220
      %3315 = vst.msk [vmem:[#allocation5 + $0x48] sm:$0xff] %vm3311, %v3222
      %3316 = vst.msk [vmem:[#allocation5 + $0x60] sm:$0xff] %vm3311, %v3224
      %3317 = vst.msk [vmem:[#allocation5 + $0x78] sm:$0xff] %vm3311, %v3226
      %3318 = vst.msk [vmem:[#allocation5 + $0x90] sm:$0xff] %vm3311, %v3228
      %3319 = vst.msk [vmem:[#allocation5 + $0xa8] sm:$0xff] %vm3311, %v3230
      %3320 = vst.msk [vmem:[#allocation5 + $0xc0] sm:$0xff] %vm3311, %v3232
      %3321 = vst.msk [vmem:[#allocation5 + $0xd8] sm:$0xff] %vm3311, %v3234
      %3322 = vst.msk [vmem:[#allocation5 + $0xf0] sm:$0xff] %vm3311, %v3236
      %3323 = vst.msk [vmem:[#allocation5 + $0x108] sm:$0xff] %vm3311, %v3238
      %3324 = vst.msk [vmem:[#allocation5 + $0x120] sm:$0xff] %vm3311, %v3240
      %3325 = vst.msk [vmem:[#allocation5 + $0x138] sm:$0xff] %vm3311, %v3242
      %3326 = vst.msk [vmem:[#allocation5 + $0x150] sm:$0xff] %vm3311, %v3244
      %3327 = vst.msk [vmem:[#allocation5 + $0x168] sm:$0xff] %vm3311, %v3246
      %3328 = vst.msk [vmem:[#allocation5 + $0x180] sm:$0xff] %vm3311, %v3248
      %3329 = vst.msk [vmem:[#allocation5 + $0x198] sm:$0xff] %vm3311, %v3250
      %3330 = vst.msk [vmem:[#allocation5 + $0x1b0] sm:$0xff] %vm3311, %v3252
      %3331 = vst.msk [vmem:[#allocation5 + $0x1c8] sm:$0xff] %vm3311, %v3254
      %3332 = vst.msk [vmem:[#allocation5 + $0x1e0] sm:$0xff] %vm3311, %v3256
      %3333 = vst.msk [vmem:[#allocation5 + $0x1f8] sm:$0xff] %vm3311, %v3258
      %3334 = vst.msk [vmem:[#allocation5 + $0x210] sm:$0xff] %vm3311, %v3260
      %3335 = vst.msk [vmem:[#allocation5 + $0x228] sm:$0xff] %vm3311, %v3262
      %3336 = vst.msk [vmem:[#allocation5 + $0x240] sm:$0xff] %vm3311, %v3264
      %3337 = vst.msk [vmem:[#allocation5 + $0x258] sm:$0xff] %vm3311, %v3266
      %3338 = vst.msk [vmem:[#allocation5 + $0x270] sm:$0xff] %vm3311, %v3268
      %3339 = vst.msk [vmem:[#allocation5 + $0x288] sm:$0xff] %vm3311, %v3270
      %3340 = vst.msk [vmem:[#allocation5 + $0x2a0] sm:$0xff] %vm3311, %v3272
      %3341 = vst.msk [vmem:[#allocation5 + $0x2b8] sm:$0xff] %vm3311, %v3274
      %3342 = vst.msk [vmem:[#allocation5 + $0x2d0] sm:$0xff] %vm3311, %v3276
      %3343 = vst.msk [vmem:[#allocation5 + $0x2e8] sm:$0xff] %vm3311, %v3278
      %v3344 = vld [vmem:[#allocation3 + $0x2] sm:$0xff]
      %v3345 = vld [vmem:[#allocation3 + $0xa] sm:$0xff]
      %v3346 = vld [vmem:[#allocation3 + $0x1a] sm:$0xff]
      %v3347 = vld [vmem:[#allocation3 + $0x22] sm:$0xff]
      %v3348 = vld [vmem:[#allocation3 + $0x32] sm:$0xff]
      %v3349 = vld [vmem:[#allocation3 + $0x3a] sm:$0xff]
      %v3350 = vld [vmem:[#allocation3 + $0x4a] sm:$0xff]
      %v3351 = vld [vmem:[#allocation3 + $0x52] sm:$0xff]
      %v3352 = vld [vmem:[#allocation3 + $0x62] sm:$0xff]
      %v3353 = vld [vmem:[#allocation3 + $0x6a] sm:$0xff]
      %v3354 = vld [vmem:[#allocation3 + $0x7a] sm:$0xff]
      %v3355 = vld [vmem:[#allocation3 + $0x82] sm:$0xff]
      %v3356 = vld [vmem:[#allocation3 + $0x92] sm:$0xff]
      %v3357 = vld [vmem:[#allocation3 + $0x9a] sm:$0xff]
      %v3358 = vld [vmem:[#allocation3 + $0xaa] sm:$0xff]
      %v3359 = vld [vmem:[#allocation3 + $0xb2] sm:$0xff]
      %v3360 = vld [vmem:[#allocation3 + $0xf2] sm:$0xff]
      %v3361 = vld [vmem:[#allocation3 + $0xfa] sm:$0xff]
      %v3362 = vld [vmem:[#allocation3 + $0x10a] sm:$0xff]
      %v3363 = vld [vmem:[#allocation3 + $0x112] sm:$0xff]
      %v3364 = vld [vmem:[#allocation3 + $0x122] sm:$0xff]
      %v3365 = vld [vmem:[#allocation3 + $0x12a] sm:$0xff]
      %v3366 = vld [vmem:[#allocation3 + $0x13a] sm:$0xff]
      %v3367 = vld [vmem:[#allocation3 + $0x142] sm:$0xff]
      %v3368 = vld [vmem:[#allocation3 + $0x152] sm:$0xff]
      %v3369 = vld [vmem:[#allocation3 + $0x15a] sm:$0xff]
      %v3370 = vld [vmem:[#allocation3 + $0x16a] sm:$0xff]
      %v3371 = vld [vmem:[#allocation3 + $0x172] sm:$0xff]
      %v3372 = vld [vmem:[#allocation3 + $0x182] sm:$0xff]
      %v3373 = vld [vmem:[#allocation3 + $0x18a] sm:$0xff]
      %v3374 = vld [vmem:[#allocation3 + $0x19a] sm:$0xff]
      %v3375 = vld [vmem:[#allocation3 + $0x1a2] sm:$0xff]
      %3408 = vrot.lane.b32.xlu0 %v3344, 64
      %v3409 = vpop.permute.xlu0 %3408
      %3410 = vrot.lane.b32.xlu0 %v3345, 64
      %v3411 = vpop.permute.xlu0 %3410
      %3412 = vrot.lane.b32.xlu0 %v3346, 64
      %v3413 = vpop.permute.xlu0 %3412
      %3414 = vrot.lane.b32.xlu0 %v3347, 64
      %v3415 = vpop.permute.xlu0 %3414
      %3416 = vrot.lane.b32.xlu0 %v3348, 64
      %v3417 = vpop.permute.xlu0 %3416
      %3418 = vrot.lane.b32.xlu0 %v3349, 64
      %v3419 = vpop.permute.xlu0 %3418
      %3420 = vrot.lane.b32.xlu0 %v3350, 64
      %v3421 = vpop.permute.xlu0 %3420
      %3422 = vrot.lane.b32.xlu0 %v3351, 64
      %v3423 = vpop.permute.xlu0 %3422
      %3424 = vrot.lane.b32.xlu0 %v3352, 64
      %v3425 = vpop.permute.xlu0 %3424
      %3426 = vrot.lane.b32.xlu0 %v3353, 64
      %v3427 = vpop.permute.xlu0 %3426
      %3428 = vrot.lane.b32.xlu0 %v3354, 64
      %v3429 = vpop.permute.xlu0 %3428
      %3430 = vrot.lane.b32.xlu0 %v3355, 64
      %v3431 = vpop.permute.xlu0 %3430
      %3432 = vrot.lane.b32.xlu0 %v3356, 64
      %v3433 = vpop.permute.xlu0 %3432
      %3434 = vrot.lane.b32.xlu0 %v3357, 64
      %v3435 = vpop.permute.xlu0 %3434
      %3436 = vrot.lane.b32.xlu0 %v3358, 64
      %v3437 = vpop.permute.xlu0 %3436
      %3438 = vrot.lane.b32.xlu0 %v3359, 64
      %v3439 = vpop.permute.xlu0 %3438
      %3440 = vrot.lane.b32.xlu0 %v3360, 64
      %v3441 = vpop.permute.xlu0 %3440
      %3442 = vrot.lane.b32.xlu0 %v3361, 64
      %v3443 = vpop.permute.xlu0 %3442
      %3444 = vrot.lane.b32.xlu0 %v3362, 64
      %v3445 = vpop.permute.xlu0 %3444
      %3446 = vrot.lane.b32.xlu0 %v3363, 64
      %v3447 = vpop.permute.xlu0 %3446
      %3448 = vrot.lane.b32.xlu0 %v3364, 64
      %v3449 = vpop.permute.xlu0 %3448
      %3450 = vrot.lane.b32.xlu0 %v3365, 64
      %v3451 = vpop.permute.xlu0 %3450
      %3452 = vrot.lane.b32.xlu0 %v3366, 64
      %v3453 = vpop.permute.xlu0 %3452
      %3454 = vrot.lane.b32.xlu0 %v3367, 64
      %v3455 = vpop.permute.xlu0 %3454
      %3456 = vrot.lane.b32.xlu0 %v3368, 64
      %v3457 = vpop.permute.xlu0 %3456
      %3458 = vrot.lane.b32.xlu0 %v3369, 64
      %v3459 = vpop.permute.xlu0 %3458
      %3460 = vrot.lane.b32.xlu0 %v3370, 64
      %v3461 = vpop.permute.xlu0 %3460
      %3462 = vrot.lane.b32.xlu0 %v3371, 64
      %v3463 = vpop.permute.xlu0 %3462
      %3464 = vrot.lane.b32.xlu0 %v3372, 64
      %v3465 = vpop.permute.xlu0 %3464
      %3466 = vrot.lane.b32.xlu0 %v3373, 64
      %v3467 = vpop.permute.xlu0 %3466
      %3468 = vrot.lane.b32.xlu0 %v3374, 64
      %v3469 = vpop.permute.xlu0 %3468
      %3470 = vrot.lane.b32.xlu0 %v3375, 64
      %v3471 = vpop.permute.xlu0 %3470
      %vm3504 = vcmask 785920
      %3505 = vst.msk [vmem:[#allocation5] sm:$0xff] %vm3504, %v3409
      %3506 = vst.msk [vmem:[#allocation5 + $0x18] sm:$0xff] %vm3504, %v3411
      %3507 = vst.msk [vmem:[#allocation5 + $0x30] sm:$0xff] %vm3504, %v3413
      %3508 = vst.msk [vmem:[#allocation5 + $0x48] sm:$0xff] %vm3504, %v3415
      %3509 = vst.msk [vmem:[#allocation5 + $0x60] sm:$0xff] %vm3504, %v3417
      %3510 = vst.msk [vmem:[#allocation5 + $0x78] sm:$0xff] %vm3504, %v3419
      %3511 = vst.msk [vmem:[#allocation5 + $0x90] sm:$0xff] %vm3504, %v3421
      %3512 = vst.msk [vmem:[#allocation5 + $0xa8] sm:$0xff] %vm3504, %v3423
      %3513 = vst.msk [vmem:[#allocation5 + $0xc0] sm:$0xff] %vm3504, %v3425
      %3514 = vst.msk [vmem:[#allocation5 + $0xd8] sm:$0xff] %vm3504, %v3427
      %3515 = vst.msk [vmem:[#allocation5 + $0xf0] sm:$0xff] %vm3504, %v3429
      %3516 = vst.msk [vmem:[#allocation5 + $0x108] sm:$0xff] %vm3504, %v3431
      %3517 = vst.msk [vmem:[#allocation5 + $0x120] sm:$0xff] %vm3504, %v3433
      %3518 = vst.msk [vmem:[#allocation5 + $0x138] sm:$0xff] %vm3504, %v3435
      %3519 = vst.msk [vmem:[#allocation5 + $0x150] sm:$0xff] %vm3504, %v3437
      %3520 = vst.msk [vmem:[#allocation5 + $0x168] sm:$0xff] %vm3504, %v3439
      %3521 = vst.msk [vmem:[#allocation5 + $0x180] sm:$0xff] %vm3504, %v3441
      %3522 = vst.msk [vmem:[#allocation5 + $0x198] sm:$0xff] %vm3504, %v3443
      %3523 = vst.msk [vmem:[#allocation5 + $0x1b0] sm:$0xff] %vm3504, %v3445
      %3524 = vst.msk [vmem:[#allocation5 + $0x1c8] sm:$0xff] %vm3504, %v3447
      %3525 = vst.msk [vmem:[#allocation5 + $0x1e0] sm:$0xff] %vm3504, %v3449
      %3526 = vst.msk [vmem:[#allocation5 + $0x1f8] sm:$0xff] %vm3504, %v3451
      %3527 = vst.msk [vmem:[#allocation5 + $0x210] sm:$0xff] %vm3504, %v3453
      %3528 = vst.msk [vmem:[#allocation5 + $0x228] sm:$0xff] %vm3504, %v3455
      %3529 = vst.msk [vmem:[#allocation5 + $0x240] sm:$0xff] %vm3504, %v3457
      %3530 = vst.msk [vmem:[#allocation5 + $0x258] sm:$0xff] %vm3504, %v3459
      %3531 = vst.msk [vmem:[#allocation5 + $0x270] sm:$0xff] %vm3504, %v3461
      %3532 = vst.msk [vmem:[#allocation5 + $0x288] sm:$0xff] %vm3504, %v3463
      %3533 = vst.msk [vmem:[#allocation5 + $0x2a0] sm:$0xff] %vm3504, %v3465
      %3534 = vst.msk [vmem:[#allocation5 + $0x2b8] sm:$0xff] %vm3504, %v3467
      %3535 = vst.msk [vmem:[#allocation5 + $0x2d0] sm:$0xff] %vm3504, %v3469
      %3536 = vst.msk [vmem:[#allocation5 + $0x2e8] sm:$0xff] %vm3504, %v3471
      %v3537 = vld [vmem:[%s3054] sm:$0xff]
      %v3538 = vld [vmem:[%s3054 + $0x8] sm:$0xff]
      %v3539 = vld [vmem:[%s3054 + $0x18] sm:$0xff]
      %v3540 = vld [vmem:[%s3054 + $0x20] sm:$0xff]
      %v3541 = vld [vmem:[%s3054 + $0x30] sm:$0xff]
      %v3542 = vld [vmem:[%s3054 + $0x38] sm:$0xff]
      %v3543 = vld [vmem:[%s3054 + $0x48] sm:$0xff]
      %v3544 = vld [vmem:[%s3054 + $0x50] sm:$0xff]
      %v3545 = vld [vmem:[%s3054 + $0x60] sm:$0xff]
      %v3546 = vld [vmem:[%s3054 + $0x68] sm:$0xff]
      %v3547 = vld [vmem:[%s3054 + $0x78] sm:$0xff]
      %v3548 = vld [vmem:[%s3054 + $0x80] sm:$0xff]
      %v3549 = vld [vmem:[%s3054 + $0x90] sm:$0xff]
      %v3550 = vld [vmem:[%s3054 + $0x98] sm:$0xff]
      %v3551 = vld [vmem:[%s3054 + $0xa8] sm:$0xff]
      %v3552 = vld [vmem:[%s3054 + $0xb0] sm:$0xff]
      %v3553 = vld [vmem:[%s3054 + $0xf0] sm:$0xff]
      %v3554 = vld [vmem:[%s3054 + $0xf8] sm:$0xff]
      %v3555 = vld [vmem:[%s3054 + $0x108] sm:$0xff]
      %v3556 = vld [vmem:[%s3054 + $0x110] sm:$0xff]
      %v3557 = vld [vmem:[%s3054 + $0x120] sm:$0xff]
      %v3558 = vld [vmem:[%s3054 + $0x128] sm:$0xff]
      %v3559 = vld [vmem:[%s3054 + $0x138] sm:$0xff]
      %v3560 = vld [vmem:[%s3054 + $0x140] sm:$0xff]
      %v3561 = vld [vmem:[%s3054 + $0x150] sm:$0xff]
      %v3562 = vld [vmem:[%s3054 + $0x158] sm:$0xff]
      %v3563 = vld [vmem:[%s3054 + $0x168] sm:$0xff]
      %v3564 = vld [vmem:[%s3054 + $0x170] sm:$0xff]
      %v3565 = vld [vmem:[%s3054 + $0x180] sm:$0xff]
      %v3566 = vld [vmem:[%s3054 + $0x188] sm:$0xff]
      %v3567 = vld [vmem:[%s3054 + $0x198] sm:$0xff]
      %v3568 = vld [vmem:[%s3054 + $0x1a0] sm:$0xff]
      %3601 = vrot.lane.b32.xlu0 %v3537, 96
      %v3602 = vpop.permute.xlu0 %3601
      %3603 = vrot.lane.b32.xlu0 %v3538, 96
      %v3604 = vpop.permute.xlu0 %3603
      %3605 = vrot.lane.b32.xlu0 %v3539, 96
      %v3606 = vpop.permute.xlu0 %3605
      %3607 = vrot.lane.b32.xlu0 %v3540, 96
      %v3608 = vpop.permute.xlu0 %3607
      %3609 = vrot.lane.b32.xlu0 %v3541, 96
      %v3610 = vpop.permute.xlu0 %3609
      %3611 = vrot.lane.b32.xlu0 %v3542, 96
      %v3612 = vpop.permute.xlu0 %3611
      %3613 = vrot.lane.b32.xlu0 %v3543, 96
      %v3614 = vpop.permute.xlu0 %3613
      %3615 = vrot.lane.b32.xlu0 %v3544, 96
      %v3616 = vpop.permute.xlu0 %3615
      %3617 = vrot.lane.b32.xlu0 %v3545, 96
      %v3618 = vpop.permute.xlu0 %3617
      %3619 = vrot.lane.b32.xlu0 %v3546, 96
      %v3620 = vpop.permute.xlu0 %3619
      %3621 = vrot.lane.b32.xlu0 %v3547, 96
      %v3622 = vpop.permute.xlu0 %3621
      %3623 = vrot.lane.b32.xlu0 %v3548, 96
      %v3624 = vpop.permute.xlu0 %3623
      %3625 = vrot.lane.b32.xlu0 %v3549, 96
      %v3626 = vpop.permute.xlu0 %3625
      %3627 = vrot.lane.b32.xlu0 %v3550, 96
      %v3628 = vpop.permute.xlu0 %3627
      %3629 = vrot.lane.b32.xlu0 %v3551, 96
      %v3630 = vpop.permute.xlu0 %3629
      %3631 = vrot.lane.b32.xlu0 %v3552, 96
      %v3632 = vpop.permute.xlu0 %3631
      %3633 = vrot.lane.b32.xlu0 %v3553, 96
      %v3634 = vpop.permute.xlu0 %3633
      %3635 = vrot.lane.b32.xlu0 %v3554, 96
      %v3636 = vpop.permute.xlu0 %3635
      %3637 = vrot.lane.b32.xlu0 %v3555, 96
      %v3638 = vpop.permute.xlu0 %3637
      %3639 = vrot.lane.b32.xlu0 %v3556, 96
      %v3640 = vpop.permute.xlu0 %3639
      %3641 = vrot.lane.b32.xlu0 %v3557, 96
      %v3642 = vpop.permute.xlu0 %3641
      %3643 = vrot.lane.b32.xlu0 %v3558, 96
      %v3644 = vpop.permute.xlu0 %3643
      %3645 = vrot.lane.b32.xlu0 %v3559, 96
      %v3646 = vpop.permute.xlu0 %3645
      %3647 = vrot.lane.b32.xlu0 %v3560, 96
      %v3648 = vpop.permute.xlu0 %3647
      %3649 = vrot.lane.b32.xlu0 %v3561, 96
      %v3650 = vpop.permute.xlu0 %3649
      %3651 = vrot.lane.b32.xlu0 %v3562, 96
      %v3652 = vpop.permute.xlu0 %3651
      %3653 = vrot.lane.b32.xlu0 %v3563, 96
      %v3654 = vpop.permute.xlu0 %3653
      %3655 = vrot.lane.b32.xlu0 %v3564, 96
      %v3656 = vpop.permute.xlu0 %3655
      %3657 = vrot.lane.b32.xlu0 %v3565, 96
      %v3658 = vpop.permute.xlu0 %3657
      %3659 = vrot.lane.b32.xlu0 %v3566, 96
      %v3660 = vpop.permute.xlu0 %3659
      %3661 = vrot.lane.b32.xlu0 %v3567, 96
      %v3662 = vpop.permute.xlu0 %3661
      %3663 = vrot.lane.b32.xlu0 %v3568, 96
      %v3664 = vpop.permute.xlu0 %3663
      %vm3697 = vcmask 1048320
      %3698 = vst.msk [vmem:[#allocation5] sm:$0xff] %vm3697, %v3602
      %3699 = vst.msk [vmem:[#allocation5 + $0x18] sm:$0xff] %vm3697, %v3604
      %3700 = vst.msk [vmem:[#allocation5 + $0x30] sm:$0xff] %vm3697, %v3606
      %3701 = vst.msk [vmem:[#allocation5 + $0x48] sm:$0xff] %vm3697, %v3608
      %3702 = vst.msk [vmem:[#allocation5 + $0x60] sm:$0xff] %vm3697, %v3610
      %3703 = vst.msk [vmem:[#allocation5 + $0x78] sm:$0xff] %vm3697, %v3612
      %3704 = vst.msk [vmem:[#allocation5 + $0x90] sm:$0xff] %vm3697, %v3614
      %3705 = vst.msk [vmem:[#allocation5 + $0xa8] sm:$0xff] %vm3697, %v3616
      %3706 = vst.msk [vmem:[#allocation5 + $0xc0] sm:$0xff] %vm3697, %v3618
      %3707 = vst.msk [vmem:[#allocation5 + $0xd8] sm:$0xff] %vm3697, %v3620
      %3708 = vst.msk [vmem:[#allocation5 + $0xf0] sm:$0xff] %vm3697, %v3622
      %3709 = vst.msk [vmem:[#allocation5 + $0x108] sm:$0xff] %vm3697, %v3624
      %3710 = vst.msk [vmem:[#allocation5 + $0x120] sm:$0xff] %vm3697, %v3626
      %3711 = vst.msk [vmem:[#allocation5 + $0x138] sm:$0xff] %vm3697, %v3628
      %3712 = vst.msk [vmem:[#allocation5 + $0x150] sm:$0xff] %vm3697, %v3630
      %3713 = vst.msk [vmem:[#allocation5 + $0x168] sm:$0xff] %vm3697, %v3632
      %3714 = vst.msk [vmem:[#allocation5 + $0x180] sm:$0xff] %vm3697, %v3634
      %3715 = vst.msk [vmem:[#allocation5 + $0x198] sm:$0xff] %vm3697, %v3636
      %3716 = vst.msk [vmem:[#allocation5 + $0x1b0] sm:$0xff] %vm3697, %v3638
      %3717 = vst.msk [vmem:[#allocation5 + $0x1c8] sm:$0xff] %vm3697, %v3640
      %3718 = vst.msk [vmem:[#allocation5 + $0x1e0] sm:$0xff] %vm3697, %v3642
      %3719 = vst.msk [vmem:[#allocation5 + $0x1f8] sm:$0xff] %vm3697, %v3644
      %3720 = vst.msk [vmem:[#allocation5 + $0x210] sm:$0xff] %vm3697, %v3646
      %3721 = vst.msk [vmem:[#allocation5 + $0x228] sm:$0xff] %vm3697, %v3648
      %3722 = vst.msk [vmem:[#allocation5 + $0x240] sm:$0xff] %vm3697, %v3650
      %3723 = vst.msk [vmem:[#allocation5 + $0x258] sm:$0xff] %vm3697, %v3652
      %3724 = vst.msk [vmem:[#allocation5 + $0x270] sm:$0xff] %vm3697, %v3654
      %3725 = vst.msk [vmem:[#allocation5 + $0x288] sm:$0xff] %vm3697, %v3656
      %3726 = vst.msk [vmem:[#allocation5 + $0x2a0] sm:$0xff] %vm3697, %v3658
      %3727 = vst.msk [vmem:[#allocation5 + $0x2b8] sm:$0xff] %vm3697, %v3660
      %3728 = vst.msk [vmem:[#allocation5 + $0x2d0] sm:$0xff] %vm3697, %v3662
      %3729 = vst.msk [vmem:[#allocation5 + $0x2e8] sm:$0xff] %vm3697, %v3664
      %v3730 = vld [vmem:[%s3054 + $0x1] sm:$0xff]
      %v3731 = vld [vmem:[%s3054 + $0x9] sm:$0xff]
      %v3732 = vld [vmem:[%s3054 + $0x19] sm:$0xff]
      %v3733 = vld [vmem:[%s3054 + $0x21] sm:$0xff]
      %v3734 = vld [vmem:[%s3054 + $0x31] sm:$0xff]
      %v3735 = vld [vmem:[%s3054 + $0x39] sm:$0xff]
      %v3736 = vld [vmem:[%s3054 + $0x49] sm:$0xff]
      %v3737 = vld [vmem:[%s3054 + $0x51] sm:$0xff]
      %v3738 = vld [vmem:[%s3054 + $0x61] sm:$0xff]
      %v3739 = vld [vmem:[%s3054 + $0x69] sm:$0xff]
      %v3740 = vld [vmem:[%s3054 + $0x79] sm:$0xff]
      %v3741 = vld [vmem:[%s3054 + $0x81] sm:$0xff]
      %v3742 = vld [vmem:[%s3054 + $0x91] sm:$0xff]
      %v3743 = vld [vmem:[%s3054 + $0x99] sm:$0xff]
      %v3744 = vld [vmem:[%s3054 + $0xa9] sm:$0xff]
      %v3745 = vld [vmem:[%s3054 + $0xb1] sm:$0xff]
      %v3746 = vld [vmem:[%s3054 + $0xf1] sm:$0xff]
      %v3747 = vld [vmem:[%s3054 + $0xf9] sm:$0xff]
      %v3748 = vld [vmem:[%s3054 + $0x109] sm:$0xff]
      %v3749 = vld [vmem:[%s3054 + $0x111] sm:$0xff]
      %v3750 = vld [vmem:[%s3054 + $0x121] sm:$0xff]
      %v3751 = vld [vmem:[%s3054 + $0x129] sm:$0xff]
      %v3752 = vld [vmem:[%s3054 + $0x139] sm:$0xff]
      %v3753 = vld [vmem:[%s3054 + $0x141] sm:$0xff]
      %v3754 = vld [vmem:[%s3054 + $0x151] sm:$0xff]
      %v3755 = vld [vmem:[%s3054 + $0x159] sm:$0xff]
      %v3756 = vld [vmem:[%s3054 + $0x169] sm:$0xff]
      %v3757 = vld [vmem:[%s3054 + $0x171] sm:$0xff]
      %v3758 = vld [vmem:[%s3054 + $0x181] sm:$0xff]
      %v3759 = vld [vmem:[%s3054 + $0x189] sm:$0xff]
      %v3760 = vld [vmem:[%s3054 + $0x199] sm:$0xff]
      %v3761 = vld [vmem:[%s3054 + $0x1a1] sm:$0xff]
      %3762 = vst.msk [vmem:[#allocation5 + $0x8] sm:$0xff] %vm419, %v3730
      %3763 = vst.msk [vmem:[#allocation5 + $0x20] sm:$0xff] %vm419, %v3731
      %3764 = vst.msk [vmem:[#allocation5 + $0x38] sm:$0xff] %vm419, %v3732
      %3765 = vst.msk [vmem:[#allocation5 + $0x50] sm:$0xff] %vm419, %v3733
      %3766 = vst.msk [vmem:[#allocation5 + $0x68] sm:$0xff] %vm419, %v3734
      %3767 = vst.msk [vmem:[#allocation5 + $0x80] sm:$0xff] %vm419, %v3735
      %3768 = vst.msk [vmem:[#allocation5 + $0x98] sm:$0xff] %vm419, %v3736
      %3769 = vst.msk [vmem:[#allocation5 + $0xb0] sm:$0xff] %vm419, %v3737
      %3770 = vst.msk [vmem:[#allocation5 + $0xc8] sm:$0xff] %vm419, %v3738
      %3771 = vst.msk [vmem:[#allocation5 + $0xe0] sm:$0xff] %vm419, %v3739
      %3772 = vst.msk [vmem:[#allocation5 + $0xf8] sm:$0xff] %vm419, %v3740
      %3773 = vst.msk [vmem:[#allocation5 + $0x110] sm:$0xff] %vm419, %v3741
      %3774 = vst.msk [vmem:[#allocation5 + $0x128] sm:$0xff] %vm419, %v3742
      %3775 = vst.msk [vmem:[#allocation5 + $0x140] sm:$0xff] %vm419, %v3743
      %3776 = vst.msk [vmem:[#allocation5 + $0x158] sm:$0xff] %vm419, %v3744
      %3777 = vst.msk [vmem:[#allocation5 + $0x170] sm:$0xff] %vm419, %v3745
      %3778 = vst.msk [vmem:[#allocation5 + $0x188] sm:$0xff] %vm419, %v3746
      %3779 = vst.msk [vmem:[#allocation5 + $0x1a0] sm:$0xff] %vm419, %v3747
      %3780 = vst.msk [vmem:[#allocation5 + $0x1b8] sm:$0xff] %vm419, %v3748
      %3781 = vst.msk [vmem:[#allocation5 + $0x1d0] sm:$0xff] %vm419, %v3749
      %3782 = vst.msk [vmem:[#allocation5 + $0x1e8] sm:$0xff] %vm419, %v3750
      %3783 = vst.msk [vmem:[#allocation5 + $0x200] sm:$0xff] %vm419, %v3751
      %3784 = vst.msk [vmem:[#allocation5 + $0x218] sm:$0xff] %vm419, %v3752
      %3785 = vst.msk [vmem:[#allocation5 + $0x230] sm:$0xff] %vm419, %v3753
      %3786 = vst.msk [vmem:[#allocation5 + $0x248] sm:$0xff] %vm419, %v3754
      %3787 = vst.msk [vmem:[#allocation5 + $0x260] sm:$0xff] %vm419, %v3755
      %3788 = vst.msk [vmem:[#allocation5 + $0x278] sm:$0xff] %vm419, %v3756
      %3789 = vst.msk [vmem:[#allocation5 + $0x290] sm:$0xff] %vm419, %v3757
      %3790 = vst.msk [vmem:[#allocation5 + $0x2a8] sm:$0xff] %vm419, %v3758
      %3791 = vst.msk [vmem:[#allocation5 + $0x2c0] sm:$0xff] %vm419, %v3759
      %3792 = vst.msk [vmem:[#allocation5 + $0x2d8] sm:$0xff] %vm419, %v3760
      %3793 = vst.msk [vmem:[#allocation5 + $0x2f0] sm:$0xff] %vm419, %v3761
      %v3794 = vld [vmem:[%s3054 + $0x2] sm:$0xff]
      %v3795 = vld [vmem:[%s3054 + $0xa] sm:$0xff]
      %v3796 = vld [vmem:[%s3054 + $0x1a] sm:$0xff]
      %v3797 = vld [vmem:[%s3054 + $0x22] sm:$0xff]
      %v3798 = vld [vmem:[%s3054 + $0x32] sm:$0xff]
      %v3799 = vld [vmem:[%s3054 + $0x3a] sm:$0xff]
      %v3800 = vld [vmem:[%s3054 + $0x4a] sm:$0xff]
      %v3801 = vld [vmem:[%s3054 + $0x52] sm:$0xff]
      %v3802 = vld [vmem:[%s3054 + $0x62] sm:$0xff]
      %v3803 = vld [vmem:[%s3054 + $0x6a] sm:$0xff]
      %v3804 = vld [vmem:[%s3054 + $0x7a] sm:$0xff]
      %v3805 = vld [vmem:[%s3054 + $0x82] sm:$0xff]
      %v3806 = vld [vmem:[%s3054 + $0x92] sm:$0xff]
      %v3807 = vld [vmem:[%s3054 + $0x9a] sm:$0xff]
      %v3808 = vld [vmem:[%s3054 + $0xaa] sm:$0xff]
      %v3809 = vld [vmem:[%s3054 + $0xb2] sm:$0xff]
      %v3810 = vld [vmem:[%s3054 + $0xf2] sm:$0xff]
      %v3811 = vld [vmem:[%s3054 + $0xfa] sm:$0xff]
      %v3812 = vld [vmem:[%s3054 + $0x10a] sm:$0xff]
      %v3813 = vld [vmem:[%s3054 + $0x112] sm:$0xff]
      %v3814 = vld [vmem:[%s3054 + $0x122] sm:$0xff]
      %v3815 = vld [vmem:[%s3054 + $0x12a] sm:$0xff]
      %v3816 = vld [vmem:[%s3054 + $0x13a] sm:$0xff]
      %v3817 = vld [vmem:[%s3054 + $0x142] sm:$0xff]
      %v3818 = vld [vmem:[%s3054 + $0x152] sm:$0xff]
      %v3819 = vld [vmem:[%s3054 + $0x15a] sm:$0xff]
      %v3820 = vld [vmem:[%s3054 + $0x16a] sm:$0xff]
      %v3821 = vld [vmem:[%s3054 + $0x172] sm:$0xff]
      %v3822 = vld [vmem:[%s3054 + $0x182] sm:$0xff]
      %v3823 = vld [vmem:[%s3054 + $0x18a] sm:$0xff]
      %v3824 = vld [vmem:[%s3054 + $0x19a] sm:$0xff]
      %v3825 = vld [vmem:[%s3054 + $0x1a2] sm:$0xff]
      %3858 = vrot.lane.b32.xlu0 %v3794, 32
      %v3859 = vpop.permute.xlu0 %3858
      %3860 = vrot.lane.b32.xlu0 %v3795, 32
      %v3861 = vpop.permute.xlu0 %3860
      %3862 = vrot.lane.b32.xlu0 %v3796, 32
      %v3863 = vpop.permute.xlu0 %3862
      %3864 = vrot.lane.b32.xlu0 %v3797, 32
      %v3865 = vpop.permute.xlu0 %3864
      %3866 = vrot.lane.b32.xlu0 %v3798, 32
      %v3867 = vpop.permute.xlu0 %3866
      %3868 = vrot.lane.b32.xlu0 %v3799, 32
      %v3869 = vpop.permute.xlu0 %3868
      %3870 = vrot.lane.b32.xlu0 %v3800, 32
      %v3871 = vpop.permute.xlu0 %3870
      %3872 = vrot.lane.b32.xlu0 %v3801, 32
      %v3873 = vpop.permute.xlu0 %3872
      %3874 = vrot.lane.b32.xlu0 %v3802, 32
      %v3875 = vpop.permute.xlu0 %3874
      %3876 = vrot.lane.b32.xlu0 %v3803, 32
      %v3877 = vpop.permute.xlu0 %3876
      %3878 = vrot.lane.b32.xlu0 %v3804, 32
      %v3879 = vpop.permute.xlu0 %3878
      %3880 = vrot.lane.b32.xlu0 %v3805, 32
      %v3881 = vpop.permute.xlu0 %3880
      %3882 = vrot.lane.b32.xlu0 %v3806, 32
      %v3883 = vpop.permute.xlu0 %3882
      %3884 = vrot.lane.b32.xlu0 %v3807, 32
      %v3885 = vpop.permute.xlu0 %3884
      %3886 = vrot.lane.b32.xlu0 %v3808, 32
      %v3887 = vpop.permute.xlu0 %3886
      %3888 = vrot.lane.b32.xlu0 %v3809, 32
      %v3889 = vpop.permute.xlu0 %3888
      %3890 = vrot.lane.b32.xlu0 %v3810, 32
      %v3891 = vpop.permute.xlu0 %3890
      %3892 = vrot.lane.b32.xlu0 %v3811, 32
      %v3893 = vpop.permute.xlu0 %3892
      %3894 = vrot.lane.b32.xlu0 %v3812, 32
      %v3895 = vpop.permute.xlu0 %3894
      %3896 = vrot.lane.b32.xlu0 %v3813, 32
      %v3897 = vpop.permute.xlu0 %3896
      %3898 = vrot.lane.b32.xlu0 %v3814, 32
      %v3899 = vpop.permute.xlu0 %3898
      %3900 = vrot.lane.b32.xlu0 %v3815, 32
      %v3901 = vpop.permute.xlu0 %3900
      %3902 = vrot.lane.b32.xlu0 %v3816, 32
      %v3903 = vpop.permute.xlu0 %3902
      %3904 = vrot.lane.b32.xlu0 %v3817, 32
      %v3905 = vpop.permute.xlu0 %3904
      %3906 = vrot.lane.b32.xlu0 %v3818, 32
      %v3907 = vpop.permute.xlu0 %3906
      %3908 = vrot.lane.b32.xlu0 %v3819, 32
      %v3909 = vpop.permute.xlu0 %3908
      %3910 = vrot.lane.b32.xlu0 %v3820, 32
      %v3911 = vpop.permute.xlu0 %3910
      %3912 = vrot.lane.b32.xlu0 %v3821, 32
      %v3913 = vpop.permute.xlu0 %3912
      %3914 = vrot.lane.b32.xlu0 %v3822, 32
      %v3915 = vpop.permute.xlu0 %3914
      %3916 = vrot.lane.b32.xlu0 %v3823, 32
      %v3917 = vpop.permute.xlu0 %3916
      %3918 = vrot.lane.b32.xlu0 %v3824, 32
      %v3919 = vpop.permute.xlu0 %3918
      %3920 = vrot.lane.b32.xlu0 %v3825, 32
      %v3921 = vpop.permute.xlu0 %3920
      %3954 = vst.msk [vmem:[#allocation5 + $0x8] sm:$0xff] %vm3311, %v3859
      %3955 = vst.msk [vmem:[#allocation5 + $0x20] sm:$0xff] %vm3311, %v3861
      %3956 = vst.msk [vmem:[#allocation5 + $0x38] sm:$0xff] %vm3311, %v3863
      %3957 = vst.msk [vmem:[#allocation5 + $0x50] sm:$0xff] %vm3311, %v3865
      %3958 = vst.msk [vmem:[#allocation5 + $0x68] sm:$0xff] %vm3311, %v3867
      %3959 = vst.msk [vmem:[#allocation5 + $0x80] sm:$0xff] %vm3311, %v3869
      %3960 = vst.msk [vmem:[#allocation5 + $0x98] sm:$0xff] %vm3311, %v3871
      %3961 = vst.msk [vmem:[#allocation5 + $0xb0] sm:$0xff] %vm3311, %v3873
      %3962 = vst.msk [vmem:[#allocation5 + $0xc8] sm:$0xff] %vm3311, %v3875
      %3963 = vst.msk [vmem:[#allocation5 + $0xe0] sm:$0xff] %vm3311, %v3877
      %3964 = vst.msk [vmem:[#allocation5 + $0xf8] sm:$0xff] %vm3311, %v3879
      %3965 = vst.msk [vmem:[#allocation5 + $0x110] sm:$0xff] %vm3311, %v3881
      %3966 = vst.msk [vmem:[#allocation5 + $0x128] sm:$0xff] %vm3311, %v3883
      %3967 = vst.msk [vmem:[#allocation5 + $0x140] sm:$0xff] %vm3311, %v3885
      %3968 = vst.msk [vmem:[#allocation5 + $0x158] sm:$0xff] %vm3311, %v3887
      %3969 = vst.msk [vmem:[#allocation5 + $0x170] sm:$0xff] %vm3311, %v3889
      %3970 = vst.msk [vmem:[#allocation5 + $0x188] sm:$0xff] %vm3311, %v3891
      %3971 = vst.msk [vmem:[#allocation5 + $0x1a0] sm:$0xff] %vm3311, %v3893
      %3972 = vst.msk [vmem:[#allocation5 + $0x1b8] sm:$0xff] %vm3311, %v3895
      %3973 = vst.msk [vmem:[#allocation5 + $0x1d0] sm:$0xff] %vm3311, %v3897
      %3974 = vst.msk [vmem:[#allocation5 + $0x1e8] sm:$0xff] %vm3311, %v3899
      %3975 = vst.msk [vmem:[#allocation5 + $0x200] sm:$0xff] %vm3311, %v3901
      %3976 = vst.msk [vmem:[#allocation5 + $0x218] sm:$0xff] %vm3311, %v3903
      %3977 = vst.msk [vmem:[#allocation5 + $0x230] sm:$0xff] %vm3311, %v3905
      %3978 = vst.msk [vmem:[#allocation5 + $0x248] sm:$0xff] %vm3311, %v3907
      %3979 = vst.msk [vmem:[#allocation5 + $0x260] sm:$0xff] %vm3311, %v3909
      %3980 = vst.msk [vmem:[#allocation5 + $0x278] sm:$0xff] %vm3311, %v3911
      %3981 = vst.msk [vmem:[#allocation5 + $0x290] sm:$0xff] %vm3311, %v3913
      %3982 = vst.msk [vmem:[#allocation5 + $0x2a8] sm:$0xff] %vm3311, %v3915
      %3983 = vst.msk [vmem:[#allocation5 + $0x2c0] sm:$0xff] %vm3311, %v3917
      %3984 = vst.msk [vmem:[#allocation5 + $0x2d8] sm:$0xff] %vm3311, %v3919
      %3985 = vst.msk [vmem:[#allocation5 + $0x2f0] sm:$0xff] %vm3311, %v3921
      %s3986 = scalar_lea.vmem [#allocation3], 48
      %v3987 = vld [vmem:[%s3986] sm:$0xff]
      %v3988 = vld [vmem:[%s3986 + $0x8] sm:$0xff]
      %v3989 = vld [vmem:[%s3986 + $0x18] sm:$0xff]
      %v3990 = vld [vmem:[%s3986 + $0x20] sm:$0xff]
      %v3991 = vld [vmem:[%s3986 + $0x30] sm:$0xff]
      %v3992 = vld [vmem:[%s3986 + $0x38] sm:$0xff]
      %v3993 = vld [vmem:[%s3986 + $0x48] sm:$0xff]
      %v3994 = vld [vmem:[%s3986 + $0x50] sm:$0xff]
      %v3995 = vld [vmem:[%s3986 + $0x60] sm:$0xff]
      %v3996 = vld [vmem:[%s3986 + $0x68] sm:$0xff]
      %v3997 = vld [vmem:[%s3986 + $0x78] sm:$0xff]
      %v3998 = vld [vmem:[%s3986 + $0x80] sm:$0xff]
      %v3999 = vld [vmem:[%s3986 + $0x90] sm:$0xff]
      %v4000 = vld [vmem:[%s3986 + $0x98] sm:$0xff]
      %v4001 = vld [vmem:[%s3986 + $0xa8] sm:$0xff]
      %v4002 = vld [vmem:[%s3986 + $0xb0] sm:$0xff]
      %v4003 = vld [vmem:[%s3986 + $0xf0] sm:$0xff]
      %v4004 = vld [vmem:[%s3986 + $0xf8] sm:$0xff]
      %v4005 = vld [vmem:[%s3986 + $0x108] sm:$0xff]
      %v4006 = vld [vmem:[%s3986 + $0x110] sm:$0xff]
      %v4007 = vld [vmem:[%s3986 + $0x120] sm:$0xff]
      %v4008 = vld [vmem:[%s3986 + $0x128] sm:$0xff]
      %v4009 = vld [vmem:[%s3986 + $0x138] sm:$0xff]
      %v4010 = vld [vmem:[%s3986 + $0x140] sm:$0xff]
      %v4011 = vld [vmem:[%s3986 + $0x150] sm:$0xff]
      %v4012 = vld [vmem:[%s3986 + $0x158] sm:$0xff]
      %v4013 = vld [vmem:[%s3986 + $0x168] sm:$0xff]
      %v4014 = vld [vmem:[%s3986 + $0x170] sm:$0xff]
      %v4015 = vld [vmem:[%s3986 + $0x180] sm:$0xff]
      %v4016 = vld [vmem:[%s3986 + $0x188] sm:$0xff]
      %v4017 = vld [vmem:[%s3986 + $0x198] sm:$0xff]
      %v4018 = vld [vmem:[%s3986 + $0x1a0] sm:$0xff]
      %4051 = vrot.lane.b32.xlu0 %v3987, 64
      %v4052 = vpop.permute.xlu0 %4051
      %4053 = vrot.lane.b32.xlu0 %v3988, 64
      %v4054 = vpop.permute.xlu0 %4053
      %4055 = vrot.lane.b32.xlu0 %v3989, 64
      %v4056 = vpop.permute.xlu0 %4055
      %4057 = vrot.lane.b32.xlu0 %v3990, 64
      %v4058 = vpop.permute.xlu0 %4057
      %4059 = vrot.lane.b32.xlu0 %v3991, 64
      %v4060 = vpop.permute.xlu0 %4059
      %4061 = vrot.lane.b32.xlu0 %v3992, 64
      %v4062 = vpop.permute.xlu0 %4061
      %4063 = vrot.lane.b32.xlu0 %v3993, 64
      %v4064 = vpop.permute.xlu0 %4063
      %4065 = vrot.lane.b32.xlu0 %v3994, 64
      %v4066 = vpop.permute.xlu0 %4065
      %4067 = vrot.lane.b32.xlu0 %v3995, 64
      %v4068 = vpop.permute.xlu0 %4067
      %4069 = vrot.lane.b32.xlu0 %v3996, 64
      %v4070 = vpop.permute.xlu0 %4069
      %4071 = vrot.lane.b32.xlu0 %v3997, 64
      %v4072 = vpop.permute.xlu0 %4071
      %4073 = vrot.lane.b32.xlu0 %v3998, 64
      %v4074 = vpop.permute.xlu0 %4073
      %4075 = vrot.lane.b32.xlu0 %v3999, 64
      %v4076 = vpop.permute.xlu0 %4075
      %4077 = vrot.lane.b32.xlu0 %v4000, 64
      %v4078 = vpop.permute.xlu0 %4077
      %4079 = vrot.lane.b32.xlu0 %v4001, 64
      %v4080 = vpop.permute.xlu0 %4079
      %4081 = vrot.lane.b32.xlu0 %v4002, 64
      %v4082 = vpop.permute.xlu0 %4081
      %4083 = vrot.lane.b32.xlu0 %v4003, 64
      %v4084 = vpop.permute.xlu0 %4083
      %4085 = vrot.lane.b32.xlu0 %v4004, 64
      %v4086 = vpop.permute.xlu0 %4085
      %4087 = vrot.lane.b32.xlu0 %v4005, 64
      %v4088 = vpop.permute.xlu0 %4087
      %4089 = vrot.lane.b32.xlu0 %v4006, 64
      %v4090 = vpop.permute.xlu0 %4089
      %4091 = vrot.lane.b32.xlu0 %v4007, 64
      %v4092 = vpop.permute.xlu0 %4091
      %4093 = vrot.lane.b32.xlu0 %v4008, 64
      %v4094 = vpop.permute.xlu0 %4093
      %4095 = vrot.lane.b32.xlu0 %v4009, 64
      %v4096 = vpop.permute.xlu0 %4095
      %4097 = vrot.lane.b32.xlu0 %v4010, 64
      %v4098 = vpop.permute.xlu0 %4097
      %4099 = vrot.lane.b32.xlu0 %v4011, 64
      %v4100 = vpop.permute.xlu0 %4099
      %4101 = vrot.lane.b32.xlu0 %v4012, 64
      %v4102 = vpop.permute.xlu0 %4101
      %4103 = vrot.lane.b32.xlu0 %v4013, 64
      %v4104 = vpop.permute.xlu0 %4103
      %4105 = vrot.lane.b32.xlu0 %v4014, 64
      %v4106 = vpop.permute.xlu0 %4105
      %4107 = vrot.lane.b32.xlu0 %v4015, 64
      %v4108 = vpop.permute.xlu0 %4107
      %4109 = vrot.lane.b32.xlu0 %v4016, 64
      %v4110 = vpop.permute.xlu0 %4109
      %4111 = vrot.lane.b32.xlu0 %v4017, 64
      %v4112 = vpop.permute.xlu0 %4111
      %4113 = vrot.lane.b32.xlu0 %v4018, 64
      %v4114 = vpop.permute.xlu0 %4113
      %4147 = vst.msk [vmem:[#allocation5 + $0x8] sm:$0xff] %vm3504, %v4052
      %4148 = vst.msk [vmem:[#allocation5 + $0x20] sm:$0xff] %vm3504, %v4054
      %4149 = vst.msk [vmem:[#allocation5 + $0x38] sm:$0xff] %vm3504, %v4056
      %4150 = vst.msk [vmem:[#allocation5 + $0x50] sm:$0xff] %vm3504, %v4058
      %4151 = vst.msk [vmem:[#allocation5 + $0x68] sm:$0xff] %vm3504, %v4060
      %4152 = vst.msk [vmem:[#allocation5 + $0x80] sm:$0xff] %vm3504, %v4062
      %4153 = vst.msk [vmem:[#allocation5 + $0x98] sm:$0xff] %vm3504, %v4064
      %4154 = vst.msk [vmem:[#allocation5 + $0xb0] sm:$0xff] %vm3504, %v4066
      %4155 = vst.msk [vmem:[#allocation5 + $0xc8] sm:$0xff] %vm3504, %v4068
      %4156 = vst.msk [vmem:[#allocation5 + $0xe0] sm:$0xff] %vm3504, %v4070
      %4157 = vst.msk [vmem:[#allocation5 + $0xf8] sm:$0xff] %vm3504, %v4072
      %4158 = vst.msk [vmem:[#allocation5 + $0x110] sm:$0xff] %vm3504, %v4074
      %4159 = vst.msk [vmem:[#allocation5 + $0x128] sm:$0xff] %vm3504, %v4076
      %4160 = vst.msk [vmem:[#allocation5 + $0x140] sm:$0xff] %vm3504, %v4078
      %4161 = vst.msk [vmem:[#allocation5 + $0x158] sm:$0xff] %vm3504, %v4080
      %4162 = vst.msk [vmem:[#allocation5 + $0x170] sm:$0xff] %vm3504, %v4082
      %4163 = vst.msk [vmem:[#allocation5 + $0x188] sm:$0xff] %vm3504, %v4084
      %4164 = vst.msk [vmem:[#allocation5 + $0x1a0] sm:$0xff] %vm3504, %v4086
      %4165 = vst.msk [vmem:[#allocation5 + $0x1b8] sm:$0xff] %vm3504, %v4088
      %4166 = vst.msk [vmem:[#allocation5 + $0x1d0] sm:$0xff] %vm3504, %v4090
      %4167 = vst.msk [vmem:[#allocation5 + $0x1e8] sm:$0xff] %vm3504, %v4092
      %4168 = vst.msk [vmem:[#allocation5 + $0x200] sm:$0xff] %vm3504, %v4094
      %4169 = vst.msk [vmem:[#allocation5 + $0x218] sm:$0xff] %vm3504, %v4096
      %4170 = vst.msk [vmem:[#allocation5 + $0x230] sm:$0xff] %vm3504, %v4098
      %4171 = vst.msk [vmem:[#allocation5 + $0x248] sm:$0xff] %vm3504, %v4100
      %4172 = vst.msk [vmem:[#allocation5 + $0x260] sm:$0xff] %vm3504, %v4102
      %4173 = vst.msk [vmem:[#allocation5 + $0x278] sm:$0xff] %vm3504, %v4104
      %4174 = vst.msk [vmem:[#allocation5 + $0x290] sm:$0xff] %vm3504, %v4106
      %4175 = vst.msk [vmem:[#allocation5 + $0x2a8] sm:$0xff] %vm3504, %v4108
      %4176 = vst.msk [vmem:[#allocation5 + $0x2c0] sm:$0xff] %vm3504, %v4110
      %4177 = vst.msk [vmem:[#allocation5 + $0x2d8] sm:$0xff] %vm3504, %v4112
      %4178 = vst.msk [vmem:[#allocation5 + $0x2f0] sm:$0xff] %vm3504, %v4114
      %v4179 = vld [vmem:[%s3986 + $0x1] sm:$0xff]
      %v4180 = vld [vmem:[%s3986 + $0x9] sm:$0xff]
      %v4181 = vld [vmem:[%s3986 + $0x19] sm:$0xff]
      %v4182 = vld [vmem:[%s3986 + $0x21] sm:$0xff]
      %v4183 = vld [vmem:[%s3986 + $0x31] sm:$0xff]
      %v4184 = vld [vmem:[%s3986 + $0x39] sm:$0xff]
      %v4185 = vld [vmem:[%s3986 + $0x49] sm:$0xff]
      %v4186 = vld [vmem:[%s3986 + $0x51] sm:$0xff]
      %v4187 = vld [vmem:[%s3986 + $0x61] sm:$0xff]
      %v4188 = vld [vmem:[%s3986 + $0x69] sm:$0xff]
      %v4189 = vld [vmem:[%s3986 + $0x79] sm:$0xff]
      %v4190 = vld [vmem:[%s3986 + $0x81] sm:$0xff]
      %v4191 = vld [vmem:[%s3986 + $0x91] sm:$0xff]
      %v4192 = vld [vmem:[%s3986 + $0x99] sm:$0xff]
      %v4193 = vld [vmem:[%s3986 + $0xa9] sm:$0xff]
      %v4194 = vld [vmem:[%s3986 + $0xb1] sm:$0xff]
      %v4195 = vld [vmem:[%s3986 + $0xf1] sm:$0xff]
      %v4196 = vld [vmem:[%s3986 + $0xf9] sm:$0xff]
      %v4197 = vld [vmem:[%s3986 + $0x109] sm:$0xff]
      %v4198 = vld [vmem:[%s3986 + $0x111] sm:$0xff]
      %v4199 = vld [vmem:[%s3986 + $0x121] sm:$0xff]
      %v4200 = vld [vmem:[%s3986 + $0x129] sm:$0xff]
      %v4201 = vld [vmem:[%s3986 + $0x139] sm:$0xff]
      %v4202 = vld [vmem:[%s3986 + $0x141] sm:$0xff]
      %v4203 = vld [vmem:[%s3986 + $0x151] sm:$0xff]
      %v4204 = vld [vmem:[%s3986 + $0x159] sm:$0xff]
      %v4205 = vld [vmem:[%s3986 + $0x169] sm:$0xff]
      %v4206 = vld [vmem:[%s3986 + $0x171] sm:$0xff]
      %v4207 = vld [vmem:[%s3986 + $0x181] sm:$0xff]
      %v4208 = vld [vmem:[%s3986 + $0x189] sm:$0xff]
      %v4209 = vld [vmem:[%s3986 + $0x199] sm:$0xff]
      %v4210 = vld [vmem:[%s3986 + $0x1a1] sm:$0xff]
      %4243 = vrot.lane.b32.xlu0 %v4179, 96
      %v4244 = vpop.permute.xlu0 %4243
      %4245 = vrot.lane.b32.xlu0 %v4180, 96
      %v4246 = vpop.permute.xlu0 %4245
      %4247 = vrot.lane.b32.xlu0 %v4181, 96
      %v4248 = vpop.permute.xlu0 %4247
      %4249 = vrot.lane.b32.xlu0 %v4182, 96
      %v4250 = vpop.permute.xlu0 %4249
      %4251 = vrot.lane.b32.xlu0 %v4183, 96
      %v4252 = vpop.permute.xlu0 %4251
      %4253 = vrot.lane.b32.xlu0 %v4184, 96
      %v4254 = vpop.permute.xlu0 %4253
      %4255 = vrot.lane.b32.xlu0 %v4185, 96
      %v4256 = vpop.permute.xlu0 %4255
      %4257 = vrot.lane.b32.xlu0 %v4186, 96
      %v4258 = vpop.permute.xlu0 %4257
      %4259 = vrot.lane.b32.xlu0 %v4187, 96
      %v4260 = vpop.permute.xlu0 %4259
      %4261 = vrot.lane.b32.xlu0 %v4188, 96
      %v4262 = vpop.permute.xlu0 %4261
      %4263 = vrot.lane.b32.xlu0 %v4189, 96
      %v4264 = vpop.permute.xlu0 %4263
      %4265 = vrot.lane.b32.xlu0 %v4190, 96
      %v4266 = vpop.permute.xlu0 %4265
      %4267 = vrot.lane.b32.xlu0 %v4191, 96
      %v4268 = vpop.permute.xlu0 %4267
      %4269 = vrot.lane.b32.xlu0 %v4192, 96
      %v4270 = vpop.permute.xlu0 %4269
      %4271 = vrot.lane.b32.xlu0 %v4193, 96
      %v4272 = vpop.permute.xlu0 %4271
      %4273 = vrot.lane.b32.xlu0 %v4194, 96
      %v4274 = vpop.permute.xlu0 %4273
      %4275 = vrot.lane.b32.xlu0 %v4195, 96
      %v4276 = vpop.permute.xlu0 %4275
      %4277 = vrot.lane.b32.xlu0 %v4196, 96
      %v4278 = vpop.permute.xlu0 %4277
      %4279 = vrot.lane.b32.xlu0 %v4197, 96
      %v4280 = vpop.permute.xlu0 %4279
      %4281 = vrot.lane.b32.xlu0 %v4198, 96
      %v4282 = vpop.permute.xlu0 %4281
      %4283 = vrot.lane.b32.xlu0 %v4199, 96
      %v4284 = vpop.permute.xlu0 %4283
      %4285 = vrot.lane.b32.xlu0 %v4200, 96
      %v4286 = vpop.permute.xlu0 %4285
      %4287 = vrot.lane.b32.xlu0 %v4201, 96
      %v4288 = vpop.permute.xlu0 %4287
      %4289 = vrot.lane.b32.xlu0 %v4202, 96
      %v4290 = vpop.permute.xlu0 %4289
      %4291 = vrot.lane.b32.xlu0 %v4203, 96
      %v4292 = vpop.permute.xlu0 %4291
      %4293 = vrot.lane.b32.xlu0 %v4204, 96
      %v4294 = vpop.permute.xlu0 %4293
      %4295 = vrot.lane.b32.xlu0 %v4205, 96
      %v4296 = vpop.permute.xlu0 %4295
      %4297 = vrot.lane.b32.xlu0 %v4206, 96
      %v4298 = vpop.permute.xlu0 %4297
      %4299 = vrot.lane.b32.xlu0 %v4207, 96
      %v4300 = vpop.permute.xlu0 %4299
      %4301 = vrot.lane.b32.xlu0 %v4208, 96
      %v4302 = vpop.permute.xlu0 %4301
      %4303 = vrot.lane.b32.xlu0 %v4209, 96
      %v4304 = vpop.permute.xlu0 %4303
      %4305 = vrot.lane.b32.xlu0 %v4210, 96
      %v4306 = vpop.permute.xlu0 %4305
      %4339 = vst.msk [vmem:[#allocation5 + $0x8] sm:$0xff] %vm3697, %v4244
      %4340 = vst.msk [vmem:[#allocation5 + $0x20] sm:$0xff] %vm3697, %v4246
      %4341 = vst.msk [vmem:[#allocation5 + $0x38] sm:$0xff] %vm3697, %v4248
      %4342 = vst.msk [vmem:[#allocation5 + $0x50] sm:$0xff] %vm3697, %v4250
      %4343 = vst.msk [vmem:[#allocation5 + $0x68] sm:$0xff] %vm3697, %v4252
      %4344 = vst.msk [vmem:[#allocation5 + $0x80] sm:$0xff] %vm3697, %v4254
      %4345 = vst.msk [vmem:[#allocation5 + $0x98] sm:$0xff] %vm3697, %v4256
      %4346 = vst.msk [vmem:[#allocation5 + $0xb0] sm:$0xff] %vm3697, %v4258
      %4347 = vst.msk [vmem:[#allocation5 + $0xc8] sm:$0xff] %vm3697, %v4260
      %4348 = vst.msk [vmem:[#allocation5 + $0xe0] sm:$0xff] %vm3697, %v4262
      %4349 = vst.msk [vmem:[#allocation5 + $0xf8] sm:$0xff] %vm3697, %v4264
      %4350 = vst.msk [vmem:[#allocation5 + $0x110] sm:$0xff] %vm3697, %v4266
      %4351 = vst.msk [vmem:[#allocation5 + $0x128] sm:$0xff] %vm3697, %v4268
      %4352 = vst.msk [vmem:[#allocation5 + $0x140] sm:$0xff] %vm3697, %v4270
      %4353 = vst.msk [vmem:[#allocation5 + $0x158] sm:$0xff] %vm3697, %v4272
      %4354 = vst.msk [vmem:[#allocation5 + $0x170] sm:$0xff] %vm3697, %v4274
      %4355 = vst.msk [vmem:[#allocation5 + $0x188] sm:$0xff] %vm3697, %v4276
      %4356 = vst.msk [vmem:[#allocation5 + $0x1a0] sm:$0xff] %vm3697, %v4278
      %4357 = vst.msk [vmem:[#allocation5 + $0x1b8] sm:$0xff] %vm3697, %v4280
      %4358 = vst.msk [vmem:[#allocation5 + $0x1d0] sm:$0xff] %vm3697, %v4282
      %4359 = vst.msk [vmem:[#allocation5 + $0x1e8] sm:$0xff] %vm3697, %v4284
      %4360 = vst.msk [vmem:[#allocation5 + $0x200] sm:$0xff] %vm3697, %v4286
      %4361 = vst.msk [vmem:[#allocation5 + $0x218] sm:$0xff] %vm3697, %v4288
      %4362 = vst.msk [vmem:[#allocation5 + $0x230] sm:$0xff] %vm3697, %v4290
      %4363 = vst.msk [vmem:[#allocation5 + $0x248] sm:$0xff] %vm3697, %v4292
      %4364 = vst.msk [vmem:[#allocation5 + $0x260] sm:$0xff] %vm3697, %v4294
      %4365 = vst.msk [vmem:[#allocation5 + $0x278] sm:$0xff] %vm3697, %v4296
      %4366 = vst.msk [vmem:[#allocation5 + $0x290] sm:$0xff] %vm3697, %v4298
      %4367 = vst.msk [vmem:[#allocation5 + $0x2a8] sm:$0xff] %vm3697, %v4300
      %4368 = vst.msk [vmem:[#allocation5 + $0x2c0] sm:$0xff] %vm3697, %v4302
      %4369 = vst.msk [vmem:[#allocation5 + $0x2d8] sm:$0xff] %vm3697, %v4304
      %4370 = vst.msk [vmem:[#allocation5 + $0x2f0] sm:$0xff] %vm3697, %v4306
      %v4371 = vld [vmem:[%s3986 + $0x2] sm:$0xff]
      %v4372 = vld [vmem:[%s3986 + $0xa] sm:$0xff]
      %v4373 = vld [vmem:[%s3986 + $0x1a] sm:$0xff]
      %v4374 = vld [vmem:[%s3986 + $0x22] sm:$0xff]
      %v4375 = vld [vmem:[%s3986 + $0x32] sm:$0xff]
      %v4376 = vld [vmem:[%s3986 + $0x3a] sm:$0xff]
      %v4377 = vld [vmem:[%s3986 + $0x4a] sm:$0xff]
      %v4378 = vld [vmem:[%s3986 + $0x52] sm:$0xff]
      %v4379 = vld [vmem:[%s3986 + $0x62] sm:$0xff]
      %v4380 = vld [vmem:[%s3986 + $0x6a] sm:$0xff]
      %v4381 = vld [vmem:[%s3986 + $0x7a] sm:$0xff]
      %v4382 = vld [vmem:[%s3986 + $0x82] sm:$0xff]
      %v4383 = vld [vmem:[%s3986 + $0x92] sm:$0xff]
      %v4384 = vld [vmem:[%s3986 + $0x9a] sm:$0xff]
      %v4385 = vld [vmem:[%s3986 + $0xaa] sm:$0xff]
      %v4386 = vld [vmem:[%s3986 + $0xb2] sm:$0xff]
      %v4387 = vld [vmem:[%s3986 + $0xf2] sm:$0xff]
      %v4388 = vld [vmem:[%s3986 + $0xfa] sm:$0xff]
      %v4389 = vld [vmem:[%s3986 + $0x10a] sm:$0xff]
      %v4390 = vld [vmem:[%s3986 + $0x112] sm:$0xff]
      %v4391 = vld [vmem:[%s3986 + $0x122] sm:$0xff]
      %v4392 = vld [vmem:[%s3986 + $0x12a] sm:$0xff]
      %v4393 = vld [vmem:[%s3986 + $0x13a] sm:$0xff]
      %v4394 = vld [vmem:[%s3986 + $0x142] sm:$0xff]
      %v4395 = vld [vmem:[%s3986 + $0x152] sm:$0xff]
      %v4396 = vld [vmem:[%s3986 + $0x15a] sm:$0xff]
      %v4397 = vld [vmem:[%s3986 + $0x16a] sm:$0xff]
      %v4398 = vld [vmem:[%s3986 + $0x172] sm:$0xff]
      %v4399 = vld [vmem:[%s3986 + $0x182] sm:$0xff]
      %v4400 = vld [vmem:[%s3986 + $0x18a] sm:$0xff]
      %v4401 = vld [vmem:[%s3986 + $0x19a] sm:$0xff]
      %v4402 = vld [vmem:[%s3986 + $0x1a2] sm:$0xff]
      %4403 = vst.msk [vmem:[#allocation5 + $0x10] sm:$0xff] %vm419, %v4371
      %4404 = vst.msk [vmem:[#allocation5 + $0x28] sm:$0xff] %vm419, %v4372
      %4405 = vst.msk [vmem:[#allocation5 + $0x40] sm:$0xff] %vm419, %v4373
      %4406 = vst.msk [vmem:[#allocation5 + $0x58] sm:$0xff] %vm419, %v4374
      %4407 = vst.msk [vmem:[#allocation5 + $0x70] sm:$0xff] %vm419, %v4375
      %4408 = vst.msk [vmem:[#allocation5 + $0x88] sm:$0xff] %vm419, %v4376
      %4409 = vst.msk [vmem:[#allocation5 + $0xa0] sm:$0xff] %vm419, %v4377
      %4410 = vst.msk [vmem:[#allocation5 + $0xb8] sm:$0xff] %vm419, %v4378
      %4411 = vst.msk [vmem:[#allocation5 + $0xd0] sm:$0xff] %vm419, %v4379
      %4412 = vst.msk [vmem:[#allocation5 + $0xe8] sm:$0xff] %vm419, %v4380
      %4413 = vst.msk [vmem:[#allocation5 + $0x100] sm:$0xff] %vm419, %v4381
      %4414 = vst.msk [vmem:[#allocation5 + $0x118] sm:$0xff] %vm419, %v4382
      %4415 = vst.msk [vmem:[#allocation5 + $0x130] sm:$0xff] %vm419, %v4383
      %4416 = vst.msk [vmem:[#allocation5 + $0x148] sm:$0xff] %vm419, %v4384
      %4417 = vst.msk [vmem:[#allocation5 + $0x160] sm:$0xff] %vm419, %v4385
      %4418 = vst.msk [vmem:[#allocation5 + $0x178] sm:$0xff] %vm419, %v4386
      %4419 = vst.msk [vmem:[#allocation5 + $0x190] sm:$0xff] %vm419, %v4387
      %4420 = vst.msk [vmem:[#allocation5 + $0x1a8] sm:$0xff] %vm419, %v4388
      %4421 = vst.msk [vmem:[#allocation5 + $0x1c0] sm:$0xff] %vm419, %v4389
      %4422 = vst.msk [vmem:[#allocation5 + $0x1d8] sm:$0xff] %vm419, %v4390
      %4423 = vst.msk [vmem:[#allocation5 + $0x1f0] sm:$0xff] %vm419, %v4391
      %4424 = vst.msk [vmem:[#allocation5 + $0x208] sm:$0xff] %vm419, %v4392
      %4425 = vst.msk [vmem:[#allocation5 + $0x220] sm:$0xff] %vm419, %v4393
      %4426 = vst.msk [vmem:[#allocation5 + $0x238] sm:$0xff] %vm419, %v4394
      %4427 = vst.msk [vmem:[#allocation5 + $0x250] sm:$0xff] %vm419, %v4395
      %4428 = vst.msk [vmem:[#allocation5 + $0x268] sm:$0xff] %vm419, %v4396
      %4429 = vst.msk [vmem:[#allocation5 + $0x280] sm:$0xff] %vm419, %v4397
      %4430 = vst.msk [vmem:[#allocation5 + $0x298] sm:$0xff] %vm419, %v4398
      %4431 = vst.msk [vmem:[#allocation5 + $0x2b0] sm:$0xff] %vm419, %v4399
      %4432 = vst.msk [vmem:[#allocation5 + $0x2c8] sm:$0xff] %vm419, %v4400
      %4433 = vst.msk [vmem:[#allocation5 + $0x2e0] sm:$0xff] %vm419, %v4401
      %4434 = vst.msk [vmem:[#allocation5 + $0x2f8] sm:$0xff] %vm419, %v4402
      %v4435 = vld [vmem:[%s4] sm:$0xff]
      %v4436 = vld [vmem:[%s4 + $0x8] sm:$0xff]
      %v4437 = vld [vmem:[%s4 + $0x10] sm:$0xff]
      %v4438 = vld [vmem:[%s4 + $0x18] sm:$0xff]
      %v4439 = vld [vmem:[%s4 + $0x20] sm:$0xff]
      %v4440 = vld [vmem:[%s4 + $0x28] sm:$0xff]
      %v4441 = vld [vmem:[%s4 + $0x30] sm:$0xff]
      %v4442 = vld [vmem:[%s4 + $0x38] sm:$0xff]
      %v4443 = vld [vmem:[%s4 + $0x40] sm:$0xff]
      %v4444 = vld [vmem:[%s4 + $0x48] sm:$0xff]
      %v4445 = vld [vmem:[%s4 + $0x50] sm:$0xff]
      %v4446 = vld [vmem:[%s4 + $0x58] sm:$0xff]
      %v4447 = vld [vmem:[#allocation5] sm:$0xff]
      %v4448 = vld [vmem:[#allocation5 + $0x8] sm:$0xff]
      %v4449 = vld [vmem:[#allocation5 + $0x10] sm:$0xff]
      %v4450 = vld [vmem:[#allocation5 + $0x18] sm:$0xff]
      %v4451 = vld [vmem:[#allocation5 + $0x20] sm:$0xff]
      %v4452 = vld [vmem:[#allocation5 + $0x28] sm:$0xff]
      %v4453 = vld [vmem:[#allocation5 + $0x30] sm:$0xff]
      %v4454 = vld [vmem:[#allocation5 + $0x38] sm:$0xff]
      %v4455 = vld [vmem:[#allocation5 + $0x40] sm:$0xff]
      %v4456 = vld [vmem:[#allocation5 + $0x48] sm:$0xff]
      %v4457 = vld [vmem:[#allocation5 + $0x50] sm:$0xff]
      %v4458 = vld [vmem:[#allocation5 + $0x58] sm:$0xff]
      %v4459 = vld [vmem:[#allocation5 + $0x60] sm:$0xff]
      %v4460 = vld [vmem:[#allocation5 + $0x68] sm:$0xff]
      %v4461 = vld [vmem:[#allocation5 + $0x70] sm:$0xff]
      %v4462 = vld [vmem:[#allocation5 + $0x78] sm:$0xff]
      %v4463 = vld [vmem:[#allocation5 + $0x80] sm:$0xff]
      %v4464 = vld [vmem:[#allocation5 + $0x88] sm:$0xff]
      %v4465 = vld [vmem:[#allocation5 + $0x90] sm:$0xff]
      %v4466 = vld [vmem:[#allocation5 + $0x98] sm:$0xff]
      %v4467 = vld [vmem:[#allocation5 + $0xa0] sm:$0xff]
      %v4468 = vld [vmem:[#allocation5 + $0xa8] sm:$0xff]
      %v4469 = vld [vmem:[#allocation5 + $0xb0] sm:$0xff]
      %v4470 = vld [vmem:[#allocation5 + $0xb8] sm:$0xff]
      %v4471 = vld [vmem:[#allocation5 + $0xc0] sm:$0xff]
      %v4472 = vld [vmem:[#allocation5 + $0xc8] sm:$0xff]
      %v4473 = vld [vmem:[#allocation5 + $0xd0] sm:$0xff]
      %v4474 = vld [vmem:[#allocation5 + $0xd8] sm:$0xff]
      %v4475 = vld [vmem:[#allocation5 + $0xe0] sm:$0xff]
      %v4476 = vld [vmem:[#allocation5 + $0xe8] sm:$0xff]
      %v4477 = vld [vmem:[#allocation5 + $0xf0] sm:$0xff]
      %v4478 = vld [vmem:[#allocation5 + $0xf8] sm:$0xff]
      %v4479 = vld [vmem:[#allocation5 + $0x100] sm:$0xff]
      %v4480 = vld [vmem:[#allocation5 + $0x108] sm:$0xff]
      %v4481 = vld [vmem:[#allocation5 + $0x110] sm:$0xff]
      %v4482 = vld [vmem:[#allocation5 + $0x118] sm:$0xff]
      %v4483 = vld [vmem:[#allocation5 + $0x120] sm:$0xff]
      %v4484 = vld [vmem:[#allocation5 + $0x128] sm:$0xff]
      %v4485 = vld [vmem:[#allocation5 + $0x130] sm:$0xff]
      %v4486 = vld [vmem:[#allocation5 + $0x138] sm:$0xff]
      %v4487 = vld [vmem:[#allocation5 + $0x140] sm:$0xff]
      %v4488 = vld [vmem:[#allocation5 + $0x148] sm:$0xff]
      %v4489 = vld [vmem:[#allocation5 + $0x150] sm:$0xff]
      %v4490 = vld [vmem:[#allocation5 + $0x158] sm:$0xff]
      %v4491 = vld [vmem:[#allocation5 + $0x160] sm:$0xff]
      %v4492 = vld [vmem:[#allocation5 + $0x168] sm:$0xff]
      %v4493 = vld [vmem:[#allocation5 + $0x170] sm:$0xff]
      %v4494 = vld [vmem:[#allocation5 + $0x178] sm:$0xff]
      %v4495 = vld [vmem:[#allocation5 + $0x180] sm:$0xff]
      %v4496 = vld [vmem:[#allocation5 + $0x188] sm:$0xff]
      %v4497 = vld [vmem:[#allocation5 + $0x190] sm:$0xff]
      %v4498 = vld [vmem:[#allocation5 + $0x198] sm:$0xff]
      %v4499 = vld [vmem:[#allocation5 + $0x1a0] sm:$0xff]
      %v4500 = vld [vmem:[#allocation5 + $0x1a8] sm:$0xff]
      %v4501 = vld [vmem:[#allocation5 + $0x1b0] sm:$0xff]
      %v4502 = vld [vmem:[#allocation5 + $0x1b8] sm:$0xff]
      %v4503 = vld [vmem:[#allocation5 + $0x1c0] sm:$0xff]
      %v4504 = vld [vmem:[#allocation5 + $0x1c8] sm:$0xff]
      %v4505 = vld [vmem:[#allocation5 + $0x1d0] sm:$0xff]
      %v4506 = vld [vmem:[#allocation5 + $0x1d8] sm:$0xff]
      %v4507 = vld [vmem:[#allocation5 + $0x1e0] sm:$0xff]
      %v4508 = vld [vmem:[#allocation5 + $0x1e8] sm:$0xff]
      %v4509 = vld [vmem:[#allocation5 + $0x1f0] sm:$0xff]
      %v4510 = vld [vmem:[#allocation5 + $0x1f8] sm:$0xff]
      %v4511 = vld [vmem:[#allocation5 + $0x200] sm:$0xff]
      %v4512 = vld [vmem:[#allocation5 + $0x208] sm:$0xff]
      %v4513 = vld [vmem:[#allocation5 + $0x210] sm:$0xff]
      %v4514 = vld [vmem:[#allocation5 + $0x218] sm:$0xff]
      %v4515 = vld [vmem:[#allocation5 + $0x220] sm:$0xff]
      %v4516 = vld [vmem:[#allocation5 + $0x228] sm:$0xff]
      %v4517 = vld [vmem:[#allocation5 + $0x230] sm:$0xff]
      %v4518 = vld [vmem:[#allocation5 + $0x238] sm:$0xff]
      %v4519 = vld [vmem:[#allocation5 + $0x240] sm:$0xff]
      %v4520 = vld [vmem:[#allocation5 + $0x248] sm:$0xff]
      %v4521 = vld [vmem:[#allocation5 + $0x250] sm:$0xff]
      %v4522 = vld [vmem:[#allocation5 + $0x258] sm:$0xff]
      %v4523 = vld [vmem:[#allocation5 + $0x260] sm:$0xff]
      %v4524 = vld [vmem:[#allocation5 + $0x268] sm:$0xff]
      %v4525 = vld [vmem:[#allocation5 + $0x270] sm:$0xff]
      %v4526 = vld [vmem:[#allocation5 + $0x278] sm:$0xff]
      %v4527 = vld [vmem:[#allocation5 + $0x280] sm:$0xff]
      %v4528 = vld [vmem:[#allocation5 + $0x288] sm:$0xff]
      %v4529 = vld [vmem:[#allocation5 + $0x290] sm:$0xff]
      %v4530 = vld [vmem:[#allocation5 + $0x298] sm:$0xff]
      %v4531 = vld [vmem:[#allocation5 + $0x2a0] sm:$0xff]
      %v4532 = vld [vmem:[#allocation5 + $0x2a8] sm:$0xff]
      %v4533 = vld [vmem:[#allocation5 + $0x2b0] sm:$0xff]
      %v4534 = vld [vmem:[#allocation5 + $0x2b8] sm:$0xff]
      %v4535 = vld [vmem:[#allocation5 + $0x2c0] sm:$0xff]
      %v4536 = vld [vmem:[#allocation5 + $0x2c8] sm:$0xff]
      %v4537 = vld [vmem:[#allocation5 + $0x2d0] sm:$0xff]
      %v4538 = vld [vmem:[#allocation5 + $0x2d8] sm:$0xff]
      %v4539 = vld [vmem:[#allocation5 + $0x2e0] sm:$0xff]
      %v4540 = vld [vmem:[#allocation5 + $0x2e8] sm:$0xff]
      %v4541 = vld [vmem:[#allocation5 + $0x2f0] sm:$0xff]
      %v4542 = vld [vmem:[#allocation5 + $0x2f8] sm:$0xff]
      %v4543 = vld [vmem:[%s5] sm:$0xff]
      %v4544 = vld [vmem:[%s5 + $0x8] sm:$0xff]
      %v4545 = vld [vmem:[%s5 + $0x10] sm:$0xff]
      %v4546 = vld [vmem:[%s5 + $0x18] sm:$0xff]
      %4548 = vset.pattern.permute.xlu0 0
      %4549 = vperm.xlu0 %4548, %v4543
      %v4550 = vpop.permute.xlu0 %4549
      %4553 = vset.pattern.permute.xlu0 0
      %4554 = vperm.xlu0 %4553, %v4544
      %v4555 = vpop.permute.xlu0 %4554
      %4558 = vset.pattern.permute.xlu0 0
      %4559 = vperm.xlu0 %4558, %v4545
      %v4560 = vpop.permute.xlu0 %4559
      %4563 = vset.pattern.permute.xlu0 0
      %4564 = vperm.xlu0 %4563, %v4546
      %v4565 = vpop.permute.xlu0 %4564
      %v4568 = vsel %vm419, %v4437, 0
      %v4571 = vsel %vm419, %v4440, 0
      %v4574 = vsel %vm419, %v4443, 0
      %v4577 = vsel %vm419, %v4446, 0
      %v4580 = vsel %vm419, %v4449, 0
      %v4583 = vsel %vm419, %v4452, 0
      %v4586 = vsel %vm419, %v4455, 0
      %v4589 = vsel %vm419, %v4458, 0
      %v4592 = vsel %vm419, %v4461, 0
      %v4595 = vsel %vm419, %v4464, 0
      %v4598 = vsel %vm419, %v4467, 0
      %v4601 = vsel %vm419, %v4470, 0
      %v4604 = vsel %vm419, %v4473, 0
      %v4607 = vsel %vm419, %v4476, 0
      %v4610 = vsel %vm419, %v4479, 0
      %v4613 = vsel %vm419, %v4482, 0
      %v4616 = vsel %vm419, %v4485, 0
      %v4619 = vsel %vm419, %v4488, 0
      %v4622 = vsel %vm419, %v4491, 0
      %v4625 = vsel %vm419, %v4494, 0
      %v4628 = vsel %vm419, %v4497, 0
      %v4631 = vsel %vm419, %v4500, 0
      %v4634 = vsel %vm419, %v4503, 0
      %v4637 = vsel %vm419, %v4506, 0
      %v4640 = vsel %vm419, %v4509, 0
      %v4643 = vsel %vm419, %v4512, 0
      %v4646 = vsel %vm419, %v4515, 0
      %v4649 = vsel %vm419, %v4518, 0
      %v4652 = vsel %vm419, %v4521, 0
      %v4655 = vsel %vm419, %v4524, 0
      %v4658 = vsel %vm419, %v4527, 0
      %v4661 = vsel %vm419, %v4530, 0
      %v4664 = vsel %vm419, %v4533, 0
      %v4667 = vsel %vm419, %v4536, 0
      %v4670 = vsel %vm419, %v4539, 0
      %v4673 = vsel %vm419, %v4542, 0
      %4675 = vmatpush.xpose.msra.mxu0 %v4492
      %4676 = vmatpush.xpose.msra.mxu0 %v4489
      %4677 = vmatpush.xpose.msra.mxu0 %v4486
      %4678 = vmatpush.xpose.msra.mxu0 %v4483
      %4679 = vmatpush.xpose.msra.mxu0 %v4480
      %4680 = vmatpush.xpose.msra.mxu0 %v4477
      %4681 = vmatpush.xpose.msra.mxu0 %v4474
      %4682 = vmatpush.xpose.msra.mxu0 %v4471
      %4683 = vmatpush.xpose.msra.mxu0 %v4468
      %4684 = vmatpush.xpose.msra.mxu0 %v4465
      %4685 = vmatpush.xpose.msra.mxu0 %v4462
      %4686 = vmatpush.xpose.msra.mxu0 %v4459
      %4687 = vmatpush.xpose.msra.mxu0 %v4456
      %4688 = vmatpush.xpose.msra.mxu0 %v4453
      %4689 = vmatpush.xpose.msra.mxu0 %v4450
      %4690 = vmatpush.xpose.msra.mxu0 %v4447
      %4691 = vmatmul.f32.gmra.mxu0 %v4435
      %v4692 = vpop.f32.mrf.mxu0
      %v4693 = vadd.f32 %v4550, %v4692
      %4694 = vmatmul.f32.gmra.mxu0 %v4438
      %v4695 = vpop.f32.mrf.mxu0
      %v4696 = vadd.f32 %v4555, %v4695
      %4697 = vmatmul.f32.gmra.mxu0 %v4441
      %v4698 = vpop.f32.mrf.mxu0
      %v4699 = vadd.f32 %v4560, %v4698
      %4700 = vmatmul.f32.gmra.mxu0 %v4444
      %v4701 = vpop.f32.mrf.mxu0
      %v4702 = vadd.f32 %v4565, %v4701
      %4703 = vdwg.mxu0
      %4704 = vmatpush.xpose.msra.mxu0 %v4493
      %4705 = vmatpush.xpose.msra.mxu0 %v4490
      %4706 = vmatpush.xpose.msra.mxu0 %v4487
      %4707 = vmatpush.xpose.msra.mxu0 %v4484
      %4708 = vmatpush.xpose.msra.mxu0 %v4481
      %4709 = vmatpush.xpose.msra.mxu0 %v4478
      %4710 = vmatpush.xpose.msra.mxu0 %v4475
      %4711 = vmatpush.xpose.msra.mxu0 %v4472
      %4712 = vmatpush.xpose.msra.mxu0 %v4469
      %4713 = vmatpush.xpose.msra.mxu0 %v4466
      %4714 = vmatpush.xpose.msra.mxu0 %v4463
      %4715 = vmatpush.xpose.msra.mxu0 %v4460
      %4716 = vmatpush.xpose.msra.mxu0 %v4457
      %4717 = vmatpush.xpose.msra.mxu0 %v4454
      %4718 = vmatpush.xpose.msra.mxu0 %v4451
      %4719 = vmatpush.xpose.msra.mxu0 %v4448
      %4720 = vmatmul.f32.gmra.mxu0 %v4436
      %v4721 = vpop.f32.mrf.mxu0
      %v4722 = vadd.f32 %v4693, %v4721
      %4723 = vmatmul.f32.gmra.mxu0 %v4439
      %v4724 = vpop.f32.mrf.mxu0
      %v4725 = vadd.f32 %v4696, %v4724
      %4726 = vmatmul.f32.gmra.mxu0 %v4442
      %v4727 = vpop.f32.mrf.mxu0
      %v4728 = vadd.f32 %v4699, %v4727
      %4729 = vmatmul.f32.gmra.mxu0 %v4445
      %v4730 = vpop.f32.mrf.mxu0
      %v4731 = vadd.f32 %v4702, %v4730
      %4732 = vdwg.mxu0
      %4733 = vmatpush.xpose.msra.mxu0 %v4625
      %4734 = vmatpush.xpose.msra.mxu0 %v4622
      %4735 = vmatpush.xpose.msra.mxu0 %v4619
      %4736 = vmatpush.xpose.msra.mxu0 %v4616
      %4737 = vmatpush.xpose.msra.mxu0 %v4613
      %4738 = vmatpush.xpose.msra.mxu0 %v4610
      %4739 = vmatpush.xpose.msra.mxu0 %v4607
      %4740 = vmatpush.xpose.msra.mxu0 %v4604
      %4741 = vmatpush.xpose.msra.mxu0 %v4601
      %4742 = vmatpush.xpose.msra.mxu0 %v4598
      %4743 = vmatpush.xpose.msra.mxu0 %v4595
      %4744 = vmatpush.xpose.msra.mxu0 %v4592
      %4745 = vmatpush.xpose.msra.mxu0 %v4589
      %4746 = vmatpush.xpose.msra.mxu0 %v4586
      %4747 = vmatpush.xpose.msra.mxu0 %v4583
      %4748 = vmatpush.xpose.msra.mxu0 %v4580
      %4749 = vmatmul.f32.gmra.mxu0 %v4568
      %v4750 = vpop.f32.mrf.mxu0
      %v4751 = vadd.f32 %v4722, %v4750
      %4752 = vmatmul.f32.gmra.mxu0 %v4571
      %v4753 = vpop.f32.mrf.mxu0
      %v4754 = vadd.f32 %v4725, %v4753
      %4755 = vmatmul.f32.gmra.mxu0 %v4574
      %v4756 = vpop.f32.mrf.mxu0
      %v4757 = vadd.f32 %v4728, %v4756
      %4758 = vmatmul.f32.gmra.mxu0 %v4577
      %v4759 = vpop.f32.mrf.mxu0
      %v4760 = vadd.f32 %v4731, %v4759
      %4761 = vdwg.mxu0
      %4762 = vmatpush.xpose.msra.mxu0 %v4540
      %4763 = vmatpush.xpose.msra.mxu0 %v4537
      %4764 = vmatpush.xpose.msra.mxu0 %v4534
      %4765 = vmatpush.xpose.msra.mxu0 %v4531
      %4766 = vmatpush.xpose.msra.mxu0 %v4528
      %4767 = vmatpush.xpose.msra.mxu0 %v4525
      %4768 = vmatpush.xpose.msra.mxu0 %v4522
      %4769 = vmatpush.xpose.msra.mxu0 %v4519
      %4770 = vmatpush.xpose.msra.mxu0 %v4516
      %4771 = vmatpush.xpose.msra.mxu0 %v4513
      %4772 = vmatpush.xpose.msra.mxu0 %v4510
      %4773 = vmatpush.xpose.msra.mxu0 %v4507
      %4774 = vmatpush.xpose.msra.mxu0 %v4504
      %4775 = vmatpush.xpose.msra.mxu0 %v4501
      %4776 = vmatpush.xpose.msra.mxu0 %v4498
      %4777 = vmatpush.xpose.msra.mxu0 %v4495
      %4778 = vmatmul.f32.gmra.mxu0 %v4435
      %v4779 = vpop.f32.mrf.mxu0
      %v4780 = vadd.f32 %v4550, %v4779
      %4781 = vmatmul.f32.gmra.mxu0 %v4438
      %v4782 = vpop.f32.mrf.mxu0
      %v4783 = vadd.f32 %v4555, %v4782
      %4784 = vmatmul.f32.gmra.mxu0 %v4441
      %v4785 = vpop.f32.mrf.mxu0
      %v4786 = vadd.f32 %v4560, %v4785
      %4787 = vmatmul.f32.gmra.mxu0 %v4444
      %v4788 = vpop.f32.mrf.mxu0
      %v4789 = vadd.f32 %v4565, %v4788
      %4790 = vdwg.mxu0
      %4791 = vmatpush.xpose.msra.mxu0 %v4541
      %4792 = vmatpush.xpose.msra.mxu0 %v4538
      %4793 = vmatpush.xpose.msra.mxu0 %v4535
      %4794 = vmatpush.xpose.msra.mxu0 %v4532
      %4795 = vmatpush.xpose.msra.mxu0 %v4529
      %4796 = vmatpush.xpose.msra.mxu0 %v4526
      %4797 = vmatpush.xpose.msra.mxu0 %v4523
      %4798 = vmatpush.xpose.msra.mxu0 %v4520
      %4799 = vmatpush.xpose.msra.mxu0 %v4517
      %4800 = vmatpush.xpose.msra.mxu0 %v4514
      %4801 = vmatpush.xpose.msra.mxu0 %v4511
      %4802 = vmatpush.xpose.msra.mxu0 %v4508
      %4803 = vmatpush.xpose.msra.mxu0 %v4505
      %4804 = vmatpush.xpose.msra.mxu0 %v4502
      %4805 = vmatpush.xpose.msra.mxu0 %v4499
      %4806 = vmatpush.xpose.msra.mxu0 %v4496
      %4807 = vmatmul.f32.gmra.mxu0 %v4436
      %v4808 = vpop.f32.mrf.mxu0
      %v4809 = vadd.f32 %v4780, %v4808
      %4810 = vmatmul.f32.gmra.mxu0 %v4439
      %v4811 = vpop.f32.mrf.mxu0
      %v4812 = vadd.f32 %v4783, %v4811
      %4813 = vmatmul.f32.gmra.mxu0 %v4442
      %v4814 = vpop.f32.mrf.mxu0
      %v4815 = vadd.f32 %v4786, %v4814
      %4816 = vmatmul.f32.gmra.mxu0 %v4445
      %v4817 = vpop.f32.mrf.mxu0
      %v4818 = vadd.f32 %v4789, %v4817
      %4819 = vdwg.mxu0
      %4820 = vmatpush.xpose.msra.mxu0 %v4673
      %4821 = vmatpush.xpose.msra.mxu0 %v4670
      %4822 = vmatpush.xpose.msra.mxu0 %v4667
      %4823 = vmatpush.xpose.msra.mxu0 %v4664
      %4824 = vmatpush.xpose.msra.mxu0 %v4661
      %4825 = vmatpush.xpose.msra.mxu0 %v4658
      %4826 = vmatpush.xpose.msra.mxu0 %v4655
      %4827 = vmatpush.xpose.msra.mxu0 %v4652
      %4828 = vmatpush.xpose.msra.mxu0 %v4649
      %4829 = vmatpush.xpose.msra.mxu0 %v4646
      %4830 = vmatpush.xpose.msra.mxu0 %v4643
      %4831 = vmatpush.xpose.msra.mxu0 %v4640
      %4832 = vmatpush.xpose.msra.mxu0 %v4637
      %4833 = vmatpush.xpose.msra.mxu0 %v4634
      %4834 = vmatpush.xpose.msra.mxu0 %v4631
      %4835 = vmatpush.xpose.msra.mxu0 %v4628
      %4836 = vmatmul.f32.gmra.mxu0 %v4568
      %v4837 = vpop.f32.mrf.mxu0
      %v4838 = vadd.f32 %v4809, %v4837
      %4839 = vmatmul.f32.gmra.mxu0 %v4571
      %v4840 = vpop.f32.mrf.mxu0
      %v4841 = vadd.f32 %v4812, %v4840
      %4842 = vmatmul.f32.gmra.mxu0 %v4574
      %v4843 = vpop.f32.mrf.mxu0
      %v4844 = vadd.f32 %v4815, %v4843
      %4845 = vmatmul.f32.gmra.mxu0 %v4577
      %v4846 = vpop.f32.mrf.mxu0
      %v4847 = vadd.f32 %v4818, %v4846
      %4848 = vdwg.mxu0
      %v4849 = vmax.f32 %v4751, 0.0
      %v4850 = vmax.f32 %v4838, 0.0
      %v4851 = vmax.f32 %v4754, 0.0
      %v4852 = vmax.f32 %v4841, 0.0
      %v4853 = vmax.f32 %v4757, 0.0
      %v4854 = vmax.f32 %v4844, 0.0
      %v4855 = vmax.f32 %v4760, 0.0
      %v4856 = vmax.f32 %v4847, 0.0
      %v4857 = vld [vmem:[%s6] sm:$0xff]
      %v4858 = vld [vmem:[%s6 + $0x8] sm:$0xff]
      %v4859 = vld [vmem:[%s6 + $0x10] sm:$0xff]
      %v4860 = vld [vmem:[%s6 + $0x18] sm:$0xff]
      %v4861 = vld [vmem:[%s6 + $0x20] sm:$0x1f]
      %v4862 = vld [vmem:[%s7] sm:$0xff]
      %v4863 = vld [vmem:[%s7 + $0x8] sm:$0xff]
      %v4864 = vld [vmem:[%s7 + $0x10] sm:$0xff]
      %v4865 = vld [vmem:[%s7 + $0x18] sm:$0xff]
      %v4866 = vld [vmem:[%s7 + $0x20] sm:$0x1f]
      %4868 = vset.pattern.permute.xlu0 0
      %4869 = vperm.xlu0 %4868, %v4862
      %v4870 = vpop.permute.xlu0 %4869
      %4873 = vset.pattern.permute.xlu0 0
      %4874 = vperm.xlu0 %4873, %v4863
      %v4875 = vpop.permute.xlu0 %4874
      %4878 = vset.pattern.permute.xlu0 0
      %4879 = vperm.xlu0 %4878, %v4864
      %v4880 = vpop.permute.xlu0 %4879
      %4883 = vset.pattern.permute.xlu0 0
      %4884 = vperm.xlu0 %4883, %v4865
      %v4885 = vpop.permute.xlu0 %4884
      %4888 = vset.pattern.permute.xlu0 0
      %4889 = vperm.xlu0 %4888, %v4866
      %v4890 = vpop.permute.xlu0 %4889
      %v4893 = vsel %vm419, %v4857, 0
      %v4896 = vsel %vm419, %v4858, 0
      %v4899 = vsel %vm419, %v4859, 0
      %v4902 = vsel %vm419, %v4860, 0
      %v4905 = vsel %vm419, %v4861, 0
      %4907 = vmatpush.msra.mxu0 0.0
      %4908 = vmatpush.msra.mxu0 0.0
      %4909 = vmatpush.msra.mxu0 0.0
      %4910 = vmatpush.msra.mxu0 0.0
      %4911 = vmatpush.msra.mxu0 0.0
      %4912 = vmatpush.msra.mxu0 0.0
      %4913 = vmatpush.msra.mxu0 0.0
      %4914 = vmatpush.msra.mxu0 0.0
      %4915 = vmatpush.msra.mxu0 0.0
      %4916 = vmatpush.msra.mxu0 0.0
      %4917 = vmatpush.msra.mxu0 0.0
      %4918 = vmatpush.msra.mxu0 0.0
      %4919 = vmatpush.msra.mxu0 %v4855
      %4920 = vmatpush.msra.mxu0 %v4853
      %4921 = vmatpush.msra.mxu0 %v4851
      %4922 = vmatpush.msra.mxu0 %v4849
      %4923 = vmatmul.f32.gmra.mxu0 %v4893
      %v4924 = vpop.f32.mrf.mxu0
      %v4925 = vadd.f32 %v4870, %v4924
      %4926 = vmatmul.f32.gmra.mxu0 %v4896
      %v4927 = vpop.f32.mrf.mxu0
      %v4928 = vadd.f32 %v4875, %v4927
      %4929 = vmatmul.f32.gmra.mxu0 %v4899
      %v4930 = vpop.f32.mrf.mxu0
      %v4931 = vadd.f32 %v4880, %v4930
      %4932 = vmatmul.f32.gmra.mxu0 %v4902
      %v4933 = vpop.f32.mrf.mxu0
      %v4934 = vadd.f32 %v4885, %v4933
      %4935 = vmatmul.f32.gmra.mxu0 %v4905
      %v4936 = vpop.f32.mrf.mxu0
      %v4937 = vadd.f32 %v4890, %v4936
      %4938 = vdwg.mxu0
      %4939 = vmatpush.msra.mxu0 0.0
      %4940 = vmatpush.msra.mxu0 0.0
      %4941 = vmatpush.msra.mxu0 0.0
      %4942 = vmatpush.msra.mxu0 0.0
      %4943 = vmatpush.msra.mxu0 0.0
      %4944 = vmatpush.msra.mxu0 0.0
      %4945 = vmatpush.msra.mxu0 0.0
      %4946 = vmatpush.msra.mxu0 0.0
      %4947 = vmatpush.msra.mxu0 0.0
      %4948 = vmatpush.msra.mxu0 0.0
      %4949 = vmatpush.msra.mxu0 0.0
      %4950 = vmatpush.msra.mxu0 0.0
      %4951 = vmatpush.msra.mxu0 %v4856
      %4952 = vmatpush.msra.mxu0 %v4854
      %4953 = vmatpush.msra.mxu0 %v4852
      %4954 = vmatpush.msra.mxu0 %v4850
      %4955 = vmatmul.f32.gmra.mxu0 %v4893
      %v4956 = vpop.f32.mrf.mxu0
      %v4957 = vadd.f32 %v4870, %v4956
      %4958 = vmatmul.f32.gmra.mxu0 %v4896
      %v4959 = vpop.f32.mrf.mxu0
      %v4960 = vadd.f32 %v4875, %v4959
      %4961 = vmatmul.f32.gmra.mxu0 %v4899
      %v4962 = vpop.f32.mrf.mxu0
      %v4963 = vadd.f32 %v4880, %v4962
      %4964 = vmatmul.f32.gmra.mxu0 %v4902
      %v4965 = vpop.f32.mrf.mxu0
      %v4966 = vadd.f32 %v4885, %v4965
      %4967 = vmatmul.f32.gmra.mxu0 %v4905
      %v4968 = vpop.f32.mrf.mxu0
      %v4969 = vadd.f32 %v4890, %v4968
      %4970 = vdwg.mxu0
      %4971 = vst [vmem:[%s348] sm:$0xff] %v4849
      %4972 = vst [vmem:[%s348 + $0x8] sm:$0xff] %v4851
      %4973 = vst [vmem:[%s348 + $0x10] sm:$0xff] %v4853
      %4974 = vst [vmem:[%s348 + $0x18] sm:$0xff] %v4855
      %4975 = vst [vmem:[%s355] sm:$0xff] %v4925
      %4976 = vst [vmem:[%s355 + $0x8] sm:$0xff] %v4928
      %4977 = vst [vmem:[%s355 + $0x10] sm:$0xff] %v4931
      %4978 = vst [vmem:[%s355 + $0x18] sm:$0xff] %v4934
      %4979 = vst [vmem:[%s355 + $0x20] sm:$0x1f] %v4937
      %s4980 = scalar_lea.vmem %s348, 32
      %4981 = vst [vmem:[%s4980] sm:$0xff] %v4850
      %4982 = vst [vmem:[%s4980 + $0x8] sm:$0xff] %v4852
      %4983 = vst [vmem:[%s4980 + $0x10] sm:$0xff] %v4854
      %4984 = vst [vmem:[%s4980 + $0x18] sm:$0xff] %v4856
      %s4985 = scalar_lea.vmem %s355, 40
      %4986 = vst [vmem:[%s4985] sm:$0xff] %v4957
      %4987 = vst [vmem:[%s4985 + $0x8] sm:$0xff] %v4960
      %4988 = vst [vmem:[%s4985 + $0x10] sm:$0xff] %v4963
      %4989 = vst [vmem:[%s4985 + $0x18] sm:$0xff] %v4966
      %4990 = vst [vmem:[%s4985 + $0x20] sm:$0x1f] %v4969
      %s4991 = smul.u32 2, %s21
      %p4992 = scmp.lt.s32.totalorder %s4991, 3
      %s4993 = scalar_select %p4992, %s4991, 3
      %s4994 = smul.addr %s4993, 4
      %s4995 = smul.addr %s4994, 8
      %s4996 = scalar_lea.vmem %s8, %s4995
      %s4997 = smul.u32 2, %s21
      %p4998 = scmp.lt.s32.totalorder %s4997, 3
      %s4999 = scalar_select %p4998, %s4997, 3
      %s5000 = smul.addr %s4999, 5
      %s5001 = smul.addr %s5000, 8
      %s5002 = scalar_lea.vmem %s9, %s5001
      // Predicated region
      $region53: #{forward.1} parent=51 // pred_check
        %p5003 = pneg %p212
      $region54: #{forward.1} parent=51 // pred_check_branch
        %5005 = sbr.rel (%p5003) target = $region56
      $region55: #{forward.1} parent=51 // pred_region
        %s5006 = smul.u32 2, %s21
      $region56: #{forward.1} parent=51 // pred_fallthru
        _
      // Predicated region
      $region57: #{forward.1} parent=51 // pred_check
        %p5007 = pneg %p238
      $region58: #{forward.1} parent=51 // pred_check_branch
        %5009 = sbr.rel (%p5007) target = $region60
      $region59: #{forward.1} parent=51 // pred_region
        %s5010 = smul.u32 2, %s21
      $region60: #{forward.1} parent=51 // pred_fallthru
        _
    $region52: #{forward.1} parent=5 // pred_fallthru
      _
    %p5011 = scmp.le.s32.totalorder 2, %s16
    // Predicated region
    $region61: #{forward.1} parent=5 // pred_check
      %p5012 = pneg %p5011
    $region62: #{forward.1} parent=5 // pred_check_branch
      %5014 = sbr.rel (%p5012) target = $region64
    $region63: #{forward.1} parent=5 // pred_region
      %s5015 = ssub.s32 %s16, 2
      // Predicated region
      $region65: #{forward.1} parent=63 // pred_check
        %p5016 = pneg %p218
      $region66: #{forward.1} parent=63 // pred_check_branch
        %5018 = sbr.rel (%p5016) target = $region68
      $region67: #{forward.1} parent=63 // pred_region
        %s5019 = smul.u32 2, %s22
        %p5020 = scmp.lt.s32.totalorder %s5019, 3
        %s5021 = scalar_select %p5020, %s5019, 3
        %s5022 = smul.addr %s5021, 4
        %s5023 = smul.addr %s5022, 8
        %s5024 = scalar_lea.vmem %s8, %s5023
      $region68: #{forward.1} parent=63 // pred_fallthru
        _
      // Predicated region
      $region69: #{forward.1} parent=63 // pred_check
        %p5025 = pneg %p244
      $region70: #{forward.1} parent=63 // pred_check_branch
        %5027 = sbr.rel (%p5025) target = $region72
      $region71: #{forward.1} parent=63 // pred_region
        %s5028 = smul.u32 2, %s22
        %p5029 = scmp.lt.s32.totalorder %s5028, 3
        %s5030 = scalar_select %p5029, %s5028, 3
        %s5031 = smul.addr %s5030, 5
        %s5032 = smul.addr %s5031, 8
        %s5033 = scalar_lea.vmem %s9, %s5032
      $region72: #{forward.1} parent=63 // pred_fallthru
        _
    $region64: #{forward.1} parent=5 // pred_fallthru
      _
  $region6: #{forward.1} parent=0 // loop_footer
    %s20 = sadd.s32 1, %s16
  $region7: #{forward.1} parent=0 // loop_footer_branch
    %15 = sbr.rel target = $region3
  $region8: #{forward.1} parent=0 // loop_exit
    _

</llo_original>
